<compile_context>
chip_gen: v6e
topology: v6e:2x2x1
jax: 0.10.0
libtpu: 0.0.40
codegen_flags: <defaults>
</compile_context>

<pallas_src>
import functools

import jax
import jax.numpy as jnp
from jax import lax
from jax.experimental import pallas as pl
from jax.experimental.pallas import tpu as pltpu

# ---------------------------------------------------------------------------
# Problem sizes (small, consistent with the module's forward pass)
# ---------------------------------------------------------------------------
B = 2            # batch
CIN = 4          # input_channels
CH = 32          # hidden_channels (must be even per the module assert)
H = W = 16       # spatial
K = 3            # kernel_size
P = (K - 1) // 2
G4 = 4 * CH      # fused gate channel dim (i, f, c, o) = 128 lanes
M = B * H * W    # batch folded into matmul M axis = 512 rows

KKX = K * K * CIN            # 36  x-patch columns
KKH = K * K * CH             # 288 h-patch columns
CD_RAW = KKX + KKH + 1       # 325 = x taps | h taps | bias ones-column
CD = 384                     # contraction depth padded to a multiple of 128


# ---------------------------------------------------------------------------
# Pallas kernel: one deep matmul + fused gate math per grid step
# ---------------------------------------------------------------------------
def convlstm_kernel(patch_ref, w_ref, c_ref, peep_ref, out_ref):
    # patch_ref: (MB, CD)    bf16  im2col rows: [x taps | h taps | 1 | 0-pad]
    # w_ref:     (CD, 4*CH)  bf16  fused [Wx | Wh | bias | 0-pad], gates i,f,c,o
    # c_ref:     (MB, CH)    f32   cell state rows
    # peep_ref:  (MB, 3*CH)  f32   packed peephole weights [Wci | Wcf | Wco]
    # out_ref:   (MB, 2*CH)  f32   packed output [ch | cc]
    # Single MXU matmul: contraction depth 384, N = 128 lanes, bias included
    # via the ones-column, f32 accumulation.
    acc = jnp.dot(patch_ref[...], w_ref[...],
                  preferred_element_type=jnp.float32)

    c = c_ref[...]
    gi = acc[:, 0 * CH:1 * CH]
    gf = acc[:, 1 * CH:2 * CH]
    gc = acc[:, 2 * CH:3 * CH]
    go = acc[:, 3 * CH:4 * CH]
    wci = peep_ref[:, 0 * CH:1 * CH]
    wcf = peep_ref[:, 1 * CH:2 * CH]
    wco = peep_ref[:, 2 * CH:3 * CH]

    # o-gate's peephole uses the *new* cell state, so the nonlinearities can't
    # all be fused into one 128-lane pass; keep the dependency chain explicit.
    ci = jax.nn.sigmoid(gi + c * wci)
    cf = jax.nn.sigmoid(gf + c * wcf)
    cc = cf * c + ci * jnp.tanh(gc)
    co = jax.nn.sigmoid(go + cc * wco)
    ch = co * jnp.tanh(cc)

    # Single packed store (64 lanes) instead of two 32-lane outputs.
    out_ref[...] = jnp.concatenate([ch, cc], axis=-1)


# ---------------------------------------------------------------------------
# Wrapper: im2col + weight fusion + pallas_call (+ NCHW interface glue)
# ---------------------------------------------------------------------------
def _im2col(a_nhwc):
    """(B,H,W,C) -> (B*H*W, K*K*C) 'same'-conv patches, tap-major (dy,dx,c)."""
    c = a_nhwc.shape[-1]
    ap = jnp.pad(a_nhwc, ((0, 0), (P, P), (P, P), (0, 0)))
    taps = [ap[:, dy:dy + H, dx:dx + W, :]
            for dy in range(K) for dx in range(K)]
    return jnp.concatenate(taps, axis=-1).reshape(M, K * K * c)


@functools.partial(jax.jit, static_argnames=("num_row_blocks",))
def convlstm_cell(x_nchw, h_nchw, c_nchw, wx, wh, bias, wci, wcf, wco,
                  *, num_row_blocks=1):
    # NCHW -> NHWC (PyTorch interface glue; drop if the model stays NHWC).
    x = jnp.transpose(x_nchw, (0, 2, 3, 1))
    h = jnp.transpose(h_nchw, (0, 2, 3, 1))
    c = jnp.transpose(c_nchw, (0, 2, 3, 1)).reshape(M, CH)

    # im2col patch matrix: x taps | h taps | ones (bias) | zero pad  -> bf16.
    ones = jnp.ones((M, 1), jnp.float32)
    zpad = jnp.zeros((M, CD - CD_RAW), jnp.float32)
    patches = jnp.concatenate([_im2col(x), _im2col(h), ones, zpad],
                              axis=-1).astype(jnp.bfloat16)

    # Fused weight matrix (CD, 4*CH): [Wx taps | Wh taps | bias row | 0 pad].
    w_full = jnp.concatenate([
        wx.reshape(KKX, G4),
        wh.reshape(KKH, G4),
        bias.reshape(1, G4),
        jnp.zeros((CD - CD_RAW, G4), jnp.float32),
    ], axis=0).astype(jnp.bfloat16)

    # Packed peephole weights, tiled over batch to match the fused row axis.
    peep = jnp.concatenate([wci, wcf, wco], axis=-1).reshape(H * W, 3 * CH)
    peep = jnp.tile(peep, (B, 1))

    nb = num_row_blocks
    mb = M // nb
    out = pl.pallas_call(
        convlstm_kernel,
        out_shape=jax.ShapeDtypeStruct((M, 2 * CH), jnp.float32),
        grid_spec=pltpu.PrefetchScalarGridSpec(
            num_scalar_prefetch=0,
            grid=(nb,),
            in_specs=[
                pl.BlockSpec((mb, CD), lambda i: (i, 0)),        # patches
                pl.BlockSpec((CD, G4), lambda i: (0, 0)),        # fused weights
                pl.BlockSpec((mb, CH), lambda i: (i, 0)),        # cell state
                pl.BlockSpec((mb, 3 * CH), lambda i: (i, 0)),    # peepholes
            ],
            out_specs=pl.BlockSpec((mb, 2 * CH), lambda i: (i, 0)),
        ),
        compiler_params=pltpu.CompilerParams(
            dimension_semantics=("parallel",)),
    )(patches, w_full, c, peep)

    ch = out[:, :CH].reshape(B, H, W, CH)
    cc = out[:, CH:].reshape(B, H, W, CH)
    # Back to NCHW to match PyTorch output convention.
    return (jnp.transpose(ch, (0, 3, 1, 2)),
            jnp.transpose(cc, (0, 3, 1, 2)))


def _row_blocks_for_device():
    # Multi-TensorCore chips (e.g. v7x / megacore): split the fused row axis
    # into 2 "parallel" grid blocks so each TC takes half.  Single-TC chips
    # (v5e/v6e): one grid step = minimal per-call overhead.  Any value is
    # numerically correct; this is a perf-only choice.
    try:
        n = int(getattr(jax.devices()[0], "num_cores", 1) or 1)
    except Exception:
        n = 1
    return 2 if (n >= 2 and M % 2 == 0) else 1


# ---------------------------------------------------------------------------
# Pure-JAX reference (lax.conv, f32) for a correctness check
# ---------------------------------------------------------------------------
def reference_forward(x_nchw, h_nchw, c_nchw, wx, wh, bias, wci, wcf, wco):
    x = jnp.transpose(x_nchw, (0, 2, 3, 1))
    h = jnp.transpose(h_nchw, (0, 2, 3, 1))
    c = jnp.transpose(c_nchw, (0, 2, 3, 1))
    dn = ('NHWC', 'HWIO', 'NHWC')
    gx = lax.conv_general_dilated(x, wx, (1, 1), 'SAME', dimension_numbers=dn)
    gh = lax.conv_general_dilated(h, wh, (1, 1), 'SAME', dimension_numbers=dn)
    g = gx + gh + bias.reshape(1, 1, 1, G4)
    gi, gf, gc, go = (g[..., i * CH:(i + 1) * CH] for i in range(4))
    ci = jax.nn.sigmoid(gi + c * wci)
    cf = jax.nn.sigmoid(gf + c * wcf)
    cc = cf * c + ci * jnp.tanh(gc)
    co = jax.nn.sigmoid(go + cc * wco)
    ch = co * jnp.tanh(cc)
    return (jnp.transpose(ch, (0, 3, 1, 2)),
            jnp.transpose(cc, (0, 3, 1, 2)))


if __name__ == "__main__":
    key = jax.random.PRNGKey(0)
    ks = jax.random.split(key, 8)

    # Deterministic synthetic parameters (shapes implied by nn.Conv2d):
    #   Wx*: (hidden, input, K, K) with bias; Wh*: (hidden, hidden, K, K) no bias.
    # Stored fused in HWIO layout: (K, K, Cin, 4*CH), gate order i, f, c, o.
    wx = 0.1 * jax.random.normal(ks[0], (K, K, CIN, G4), jnp.float32)
    wh = 0.1 * jax.random.normal(ks[1], (K, K, CH, G4), jnp.float32)
    bias = 0.1 * jax.random.normal(ks[2], (G4,), jnp.float32)
    # Peephole weights Wci/Wcf/Wco (the module's init_hidden creates them as
    # zeros; small random values exercise the full forward math here).
    wci = 0.1 * jax.random.normal(ks[3], (1, H, W, CH), jnp.float32)
    wcf = 0.1 * jax.random.normal(ks[4], (1, H, W, CH), jnp.float32)
    wco = 0.1 * jax.random.normal(ks[5], (1, H, W, CH), jnp.float32)

    # Inputs in PyTorch NCHW convention.
    x = jax.random.normal(ks[6], (B, CIN, H, W), jnp.float32)
    hc = jax.random.normal(ks[7], (2, B, CH, H, W), jnp.float32)
    h0, c0 = hc[0], hc[1]

    nb = _row_blocks_for_device()
    ch, cc = convlstm_cell(x, h0, c0, wx, wh, bias, wci, wcf, wco,
                           num_row_blocks=nb)
    jax.block_until_ready((ch, cc))

    ch_ref, cc_ref = reference_forward(x, h0, c0, wx, wh, bias, wci, wcf, wco)
    assert ch.shape == (B, CH, H, W) and cc.shape == (B, CH, H, W)
    # bf16 matmul inputs (f32 accumulation) vs. an all-f32 reference: loosen
    # the tolerance accordingly.
    assert jnp.allclose(ch, ch_ref, atol=5e-2, rtol=5e-2)
    assert jnp.allclose(cc, cc_ref, atol=5e-2, rtol=5e-2)

    print("KERNEL_OK")
</pallas_src>

<mosaic_0001>
module attributes {stable_mosaic.version = 11 : i64} {
  func.func @convlstm_kernel(%arg0: i32, %arg1: memref<512x384xbf16, #tpu.memory_space<vmem>>, %arg2: memref<384x128xbf16, #tpu.memory_space<vmem>>, %arg3: memref<512x32xf32, #tpu.memory_space<vmem>>, %arg4: memref<512x96xf32, #tpu.memory_space<vmem>>, %arg5: memref<512x64xf32, #tpu.memory_space<vmem>>) attributes {dimension_semantics = [#tpu.dimension_semantics<parallel>], iteration_bounds = array<i64: 1>, scalar_prefetch = 0 : i64, scratch_operands = 0 : i64, tpu.core_type = #tpu.core_type<tc>, window_params = [{transform_indices = @transform_0, window_bounds = array<i64: 512, 384>}, {pipeline_mode = #tpu.pipeline_mode<synchronous>, transform_indices = @transform_1, window_bounds = array<i64: 384, 128>}, {transform_indices = @transform_2, window_bounds = array<i64: 512, 32>}, {transform_indices = @transform_3, window_bounds = array<i64: 512, 96>}, {transform_indices = @transform_4, window_bounds = array<i64: 512, 64>}]} {
    %c0 = arith.constant 0 : index
    %c0_0 = arith.constant 0 : index
    %0 = vector.load %arg1[%c0, %c0_0] : memref<512x384xbf16, #tpu.memory_space<vmem>>, vector<512x384xbf16>
    %c0_1 = arith.constant 0 : index
    %c0_2 = arith.constant 0 : index
    %1 = vector.load %arg2[%c0_1, %c0_2] : memref<384x128xbf16, #tpu.memory_space<vmem>>, vector<384x128xbf16>
    %cst = arith.constant dense<0.000000e+00> : vector<512x128xf32>
    %2 = tpu.matmul %0, %1, %cst {dimension_numbers = #tpu.dot_dimension_numbers<[1], [0], [0], [1], [0, 0, 1, 1], [], []>} : vector<512x384xbf16>, vector<384x128xbf16>, vector<512x128xf32> -> vector<512x128xf32>
    %c0_3 = arith.constant 0 : index
    %c0_4 = arith.constant 0 : index
    %3 = vector.load %arg3[%c0_3, %c0_4] : memref<512x32xf32, #tpu.memory_space<vmem>>, vector<512x32xf32>
    %4 = vector.extract_strided_slice %2 {offsets = [0, 0], sizes = [512, 32], strides = [1, 1]} : vector<512x128xf32> to vector<512x32xf32>
    %5 = vector.extract_strided_slice %2 {offsets = [0, 32], sizes = [512, 32], strides = [1, 1]} : vector<512x128xf32> to vector<512x32xf32>
    %6 = vector.extract_strided_slice %2 {offsets = [0, 64], sizes = [512, 32], strides = [1, 1]} : vector<512x128xf32> to vector<512x32xf32>
    %7 = vector.extract_strided_slice %2 {offsets = [0, 96], sizes = [512, 32], strides = [1, 1]} : vector<512x128xf32> to vector<512x32xf32>
    %c0_5 = arith.constant 0 : index
    %c0_6 = arith.constant 0 : index
    %8 = vector.load %arg4[%c0_5, %c0_6] : memref<512x96xf32, #tpu.memory_space<vmem>>, vector<512x32xf32>
    %c0_7 = arith.constant 0 : index
    %c32 = arith.constant 32 : index
    %9 = vector.load %arg4[%c0_7, %c32] : memref<512x96xf32, #tpu.memory_space<vmem>>, vector<512x32xf32>
    %c0_8 = arith.constant 0 : index
    %c64 = arith.constant 64 : index
    %10 = vector.load %arg4[%c0_8, %c64] : memref<512x96xf32, #tpu.memory_space<vmem>>, vector<512x32xf32>
    %11 = arith.mulf %3, %8 : vector<512x32xf32>
    %12 = arith.addf %4, %11 : vector<512x32xf32>
    %13 = arith.negf %12 : vector<512x32xf32>
    %14 = math.exp %13 : vector<512x32xf32>
    %cst_9 = arith.constant 1.000000e+00 : f32
    %15 = vector.broadcast %cst_9 : f32 to vector<512x32xf32>
    %16 = arith.addf %15, %14 : vector<512x32xf32>
    %17 = arith.divf %15, %16 : vector<512x32xf32>
    %18 = arith.mulf %3, %9 : vector<512x32xf32>
    %19 = arith.addf %5, %18 : vector<512x32xf32>
    %20 = arith.negf %19 : vector<512x32xf32>
    %21 = math.exp %20 : vector<512x32xf32>
    %cst_10 = arith.constant 1.000000e+00 : f32
    %22 = vector.broadcast %cst_10 : f32 to vector<512x32xf32>
    %23 = arith.addf %22, %21 : vector<512x32xf32>
    %24 = arith.divf %22, %23 : vector<512x32xf32>
    %25 = arith.mulf %24, %3 : vector<512x32xf32>
    %26 = math.tanh %6 : vector<512x32xf32>
    %27 = arith.mulf %17, %26 : vector<512x32xf32>
    %28 = arith.addf %25, %27 : vector<512x32xf32>
    %29 = arith.mulf %28, %10 : vector<512x32xf32>
    %30 = arith.addf %7, %29 : vector<512x32xf32>
    %31 = arith.negf %30 : vector<512x32xf32>
    %32 = math.exp %31 : vector<512x32xf32>
    %cst_11 = arith.constant 1.000000e+00 : f32
    %33 = vector.broadcast %cst_11 : f32 to vector<512x32xf32>
    %34 = arith.addf %33, %32 : vector<512x32xf32>
    %35 = arith.divf %33, %34 : vector<512x32xf32>
    %36 = math.tanh %28 : vector<512x32xf32>
    %37 = arith.mulf %35, %36 : vector<512x32xf32>
    %38 = tpu.concatenate %37, %28 in 1 : vector<512x32xf32>, vector<512x32xf32> -> vector<512x64xf32>
    %c0_12 = arith.constant 0 : index
    %c0_13 = arith.constant 0 : index
    %39 = vector.load %arg5[%c0_12, %c0_13] : memref<512x64xf32, #tpu.memory_space<vmem>>, vector<512x64xf32>
    tpu.vector_store %arg5[%c0_12, %c0_13], %38 {strides = array<i32>} : memref<512x64xf32, #tpu.memory_space<vmem>>, vector<512x64xf32>,
    return
  }
  func.func @transform_0(%arg0: i32) -> (i32, i32) {
    %c0_i32 = arith.constant 0 : i32
    %c0_i32_0 = arith.constant 0 : i32
    return %arg0, %c0_i32 : i32, i32
  }
  func.func @transform_1(%arg0: i32) -> (i32, i32) {
    %c0_i32 = arith.constant 0 : i32
    %c0_i32_0 = arith.constant 0 : i32
    %c0_i32_1 = arith.constant 0 : i32
    return %c0_i32, %c0_i32_0 : i32, i32
  }
  func.func @transform_2(%arg0: i32) -> (i32, i32) {
    %c0_i32 = arith.constant 0 : i32
    %c0_i32_0 = arith.constant 0 : i32
    return %arg0, %c0_i32 : i32, i32
  }
  func.func @transform_3(%arg0: i32) -> (i32, i32) {
    %c0_i32 = arith.constant 0 : i32
    %c0_i32_0 = arith.constant 0 : i32
    return %arg0, %c0_i32 : i32, i32
  }
  func.func @transform_4(%arg0: i32) -> (i32, i32) {
    %c0_i32 = arith.constant 0 : i32
    %c0_i32_0 = arith.constant 0 : i32
    return %arg0, %c0_i32 : i32, i32
  }
}

</mosaic_0001>

<llo_original>
// kernel: convlstm_cell.1
$region0: #{convlstm_cell.1}
  #allocation0 [shape = 'u32[]', space=smem, size = 0x4, offset = 0x4, fixed_abs, tag = 'smem constant byte address 0x4 - core index']
  #allocation1 [shape = 'u32[144,128]{1,0:T(1,128)}', space=vmem, size = 0x12000, scoped, tag = 'internal scratch']
  %s0 = inlined_call_operand.vmem [shape: bf16[512,384], index: 0, kind: input, shape index: {}]
  %s1 = inlined_call_operand.vmem [shape: bf16[384,128], index: 1, kind: input, shape index: {}]
  %s2 = inlined_call_operand.vmem [shape: f32[512,32], index: 2, kind: input, shape index: {}]
  %s3 = inlined_call_operand.vmem [shape: f32[512,96], index: 3, kind: input, shape index: {}]
  %s4 = inlined_call_operand.vmem [shape: f32[512,64], index: 4, kind: output, shape index: {}]
  %s5 = sld [smem:[#allocation0]]
  $region26: #{convlstm_cell.1} parent=0
    _
  %s7 = ssub.s32 1, %s5
  %s8 = scalar_select 0, %s7, %s5
  // Predicated region
  $region2: #{convlstm_cell.1} parent=0 // pred_check
    _
  $region3: #{convlstm_cell.1} parent=0 // pred_check_branch
    %10 = sbr.rel (0) target = $region5
  $region4: #{convlstm_cell.1} parent=0 // pred_region
    _
  $region5: #{convlstm_cell.1} parent=0 // pred_fallthru
    _
  // Predicated region
  $region6: #{convlstm_cell.1} parent=0 // pred_check
    _
  $region7: #{convlstm_cell.1} parent=0 // pred_check_branch
    %12 = sbr.rel (0) target = $region9
  $region8: #{convlstm_cell.1} parent=0 // pred_region
    _
  $region9: #{convlstm_cell.1} parent=0 // pred_fallthru
    _
  // Predicated region
  $region10: #{convlstm_cell.1} parent=0 // pred_check
    _
  $region11: #{convlstm_cell.1} parent=0 // pred_check_branch
    %14 = sbr.rel (0) target = $region13
  $region12: #{convlstm_cell.1} parent=0 // pred_region
    _
  $region13: #{convlstm_cell.1} parent=0 // pred_fallthru
    _
  // Predicated region
  $region14: #{convlstm_cell.1} parent=0 // pred_check
    _
  $region15: #{convlstm_cell.1} parent=0 // pred_check_branch
    %16 = sbr.rel (0) target = $region17
  $region16: #{convlstm_cell.1} parent=0 // pred_region
    _
  $region17: #{convlstm_cell.1} parent=0 // pred_fallthru
    _
  %v18 = vld [vmem:[%s0] sm:$0xff]
  %v19 = vld [vmem:[%s0 + $0x8] sm:$0xf]
  %v20 = vld [vmem:[%s0 + $0xc] sm:$0xff]
  %v21 = vld [vmem:[%s0 + $0x14] sm:$0xf]
  %v22 = vld [vmem:[%s0 + $0x18] sm:$0xff]
  %v23 = vld [vmem:[%s0 + $0x20] sm:$0xf]
  %v24 = vld [vmem:[%s0 + $0x24] sm:$0xff]
  %v25 = vld [vmem:[%s0 + $0x2c] sm:$0xf]
  %v26 = vld [vmem:[%s0 + $0x30] sm:$0xff]
  %v27 = vld [vmem:[%s0 + $0x38] sm:$0xf]
  %v28 = vld [vmem:[%s0 + $0x3c] sm:$0xff]
  %v29 = vld [vmem:[%s0 + $0x44] sm:$0xf]
  %v30 = vld [vmem:[%s0 + $0x48] sm:$0xff]
  %v31 = vld [vmem:[%s0 + $0x50] sm:$0xf]
  %v32 = vld [vmem:[%s0 + $0x54] sm:$0xff]
  %v33 = vld [vmem:[%s0 + $0x5c] sm:$0xf]
  %v34 = vld [vmem:[%s0 + $0x60] sm:$0xff]
  %v35 = vld [vmem:[%s0 + $0x68] sm:$0xf]
  %v36 = vld [vmem:[%s0 + $0x6c] sm:$0xff]
  %v37 = vld [vmem:[%s0 + $0x74] sm:$0xf]
  %v38 = vld [vmem:[%s0 + $0x78] sm:$0xff]
  %v39 = vld [vmem:[%s0 + $0x80] sm:$0xf]
  %v40 = vld [vmem:[%s0 + $0x84] sm:$0xff]
  %v41 = vld [vmem:[%s0 + $0x8c] sm:$0xf]
  %v42 = vld [vmem:[%s0 + $0x90] sm:$0xff]
  %v43 = vld [vmem:[%s0 + $0x98] sm:$0xf]
  %v44 = vld [vmem:[%s0 + $0x9c] sm:$0xff]
  %v45 = vld [vmem:[%s0 + $0xa4] sm:$0xf]
  %v46 = vld [vmem:[%s0 + $0xa8] sm:$0xff]
  %v47 = vld [vmem:[%s0 + $0xb0] sm:$0xf]
  %v48 = vld [vmem:[%s0 + $0xb4] sm:$0xff]
  %v49 = vld [vmem:[%s0 + $0xbc] sm:$0xf]
  %v50 = vld [vmem:[%s0 + $0xc0] sm:$0xff]
  %v51 = vld [vmem:[%s0 + $0xc8] sm:$0xf]
  %v52 = vld [vmem:[%s0 + $0xcc] sm:$0xff]
  %v53 = vld [vmem:[%s0 + $0xd4] sm:$0xf]
  %v54 = vld [vmem:[%s0 + $0xd8] sm:$0xff]
  %v55 = vld [vmem:[%s0 + $0xe0] sm:$0xf]
  %v56 = vld [vmem:[%s0 + $0xe4] sm:$0xff]
  %v57 = vld [vmem:[%s0 + $0xec] sm:$0xf]
  %v58 = vld [vmem:[%s0 + $0xf0] sm:$0xff]
  %v59 = vld [vmem:[%s0 + $0xf8] sm:$0xf]
  %v60 = vld [vmem:[%s0 + $0xfc] sm:$0xff]
  %v61 = vld [vmem:[%s0 + $0x104] sm:$0xf]
  %v62 = vld [vmem:[%s0 + $0x108] sm:$0xff]
  %v63 = vld [vmem:[%s0 + $0x110] sm:$0xf]
  %v64 = vld [vmem:[%s0 + $0x114] sm:$0xff]
  %v65 = vld [vmem:[%s0 + $0x11c] sm:$0xf]
  %v66 = vld [vmem:[%s0 + $0x120] sm:$0xff]
  %v67 = vld [vmem:[%s0 + $0x128] sm:$0xf]
  %v68 = vld [vmem:[%s0 + $0x12c] sm:$0xff]
  %v69 = vld [vmem:[%s0 + $0x134] sm:$0xf]
  %v70 = vld [vmem:[%s0 + $0x138] sm:$0xff]
  %v71 = vld [vmem:[%s0 + $0x140] sm:$0xf]
  %v72 = vld [vmem:[%s0 + $0x144] sm:$0xff]
  %v73 = vld [vmem:[%s0 + $0x14c] sm:$0xf]
  %v74 = vld [vmem:[%s0 + $0x150] sm:$0xff]
  %v75 = vld [vmem:[%s0 + $0x158] sm:$0xf]
  %v76 = vld [vmem:[%s0 + $0x15c] sm:$0xff]
  %v77 = vld [vmem:[%s0 + $0x164] sm:$0xf]
  %v78 = vld [vmem:[%s0 + $0x168] sm:$0xff]
  %v79 = vld [vmem:[%s0 + $0x170] sm:$0xf]
  %v80 = vld [vmem:[%s0 + $0x174] sm:$0xff]
  %v81 = vld [vmem:[%s0 + $0x17c] sm:$0xf]
  %v82 = vld [vmem:[%s0 + $0x180] sm:$0xff]
  %v83 = vld [vmem:[%s0 + $0x188] sm:$0xf]
  %v84 = vld [vmem:[%s0 + $0x18c] sm:$0xff]
  %v85 = vld [vmem:[%s0 + $0x194] sm:$0xf]
  %v86 = vld [vmem:[%s0 + $0x198] sm:$0xff]
  %v87 = vld [vmem:[%s0 + $0x1a0] sm:$0xf]
  %v88 = vld [vmem:[%s0 + $0x1a4] sm:$0xff]
  %v89 = vld [vmem:[%s0 + $0x1ac] sm:$0xf]
  %v90 = vld [vmem:[%s0 + $0x1b0] sm:$0xff]
  %v91 = vld [vmem:[%s0 + $0x1b8] sm:$0xf]
  %v92 = vld [vmem:[%s0 + $0x1bc] sm:$0xff]
  %v93 = vld [vmem:[%s0 + $0x1c4] sm:$0xf]
  %v94 = vld [vmem:[%s0 + $0x1c8] sm:$0xff]
  %v95 = vld [vmem:[%s0 + $0x1d0] sm:$0xf]
  %v96 = vld [vmem:[%s0 + $0x1d4] sm:$0xff]
  %v97 = vld [vmem:[%s0 + $0x1dc] sm:$0xf]
  %v98 = vld [vmem:[%s0 + $0x1e0] sm:$0xff]
  %v99 = vld [vmem:[%s0 + $0x1e8] sm:$0xf]
  %v100 = vld [vmem:[%s0 + $0x1ec] sm:$0xff]
  %v101 = vld [vmem:[%s0 + $0x1f4] sm:$0xf]
  %v102 = vld [vmem:[%s0 + $0x1f8] sm:$0xff]
  %v103 = vld [vmem:[%s0 + $0x200] sm:$0xf]
  %v104 = vld [vmem:[%s0 + $0x204] sm:$0xff]
  %v105 = vld [vmem:[%s0 + $0x20c] sm:$0xf]
  %v106 = vld [vmem:[%s0 + $0x210] sm:$0xff]
  %v107 = vld [vmem:[%s0 + $0x218] sm:$0xf]
  %v108 = vld [vmem:[%s0 + $0x21c] sm:$0xff]
  %v109 = vld [vmem:[%s0 + $0x224] sm:$0xf]
  %v110 = vld [vmem:[%s0 + $0x228] sm:$0xff]
  %v111 = vld [vmem:[%s0 + $0x230] sm:$0xf]
  %v112 = vld [vmem:[%s0 + $0x234] sm:$0xff]
  %v113 = vld [vmem:[%s0 + $0x23c] sm:$0xf]
  %v114 = vld [vmem:[%s0 + $0x240] sm:$0xff]
  %v115 = vld [vmem:[%s0 + $0x248] sm:$0xf]
  %v116 = vld [vmem:[%s0 + $0x24c] sm:$0xff]
  %v117 = vld [vmem:[%s0 + $0x254] sm:$0xf]
  %v118 = vld [vmem:[%s0 + $0x258] sm:$0xff]
  %v119 = vld [vmem:[%s0 + $0x260] sm:$0xf]
  %v120 = vld [vmem:[%s0 + $0x264] sm:$0xff]
  %v121 = vld [vmem:[%s0 + $0x26c] sm:$0xf]
  %v122 = vld [vmem:[%s0 + $0x270] sm:$0xff]
  %v123 = vld [vmem:[%s0 + $0x278] sm:$0xf]
  %v124 = vld [vmem:[%s0 + $0x27c] sm:$0xff]
  %v125 = vld [vmem:[%s0 + $0x284] sm:$0xf]
  %v126 = vld [vmem:[%s0 + $0x288] sm:$0xff]
  %v127 = vld [vmem:[%s0 + $0x290] sm:$0xf]
  %v128 = vld [vmem:[%s0 + $0x294] sm:$0xff]
  %v129 = vld [vmem:[%s0 + $0x29c] sm:$0xf]
  %v130 = vld [vmem:[%s0 + $0x2a0] sm:$0xff]
  %v131 = vld [vmem:[%s0 + $0x2a8] sm:$0xf]
  %v132 = vld [vmem:[%s0 + $0x2ac] sm:$0xff]
  %v133 = vld [vmem:[%s0 + $0x2b4] sm:$0xf]
  %v134 = vld [vmem:[%s0 + $0x2b8] sm:$0xff]
  %v135 = vld [vmem:[%s0 + $0x2c0] sm:$0xf]
  %v136 = vld [vmem:[%s0 + $0x2c4] sm:$0xff]
  %v137 = vld [vmem:[%s0 + $0x2cc] sm:$0xf]
  %v138 = vld [vmem:[%s0 + $0x2d0] sm:$0xff]
  %v139 = vld [vmem:[%s0 + $0x2d8] sm:$0xf]
  %v140 = vld [vmem:[%s0 + $0x2dc] sm:$0xff]
  %v141 = vld [vmem:[%s0 + $0x2e4] sm:$0xf]
  %v142 = vld [vmem:[%s0 + $0x2e8] sm:$0xff]
  %v143 = vld [vmem:[%s0 + $0x2f0] sm:$0xf]
  %v144 = vld [vmem:[%s0 + $0x2f4] sm:$0xff]
  %v145 = vld [vmem:[%s0 + $0x2fc] sm:$0xf]
  %v146 = vld [vmem:[%s1] sm:$0xf]
  %v147 = vld [vmem:[%s1 + $0x4] sm:$0xf]
  %v148 = vld [vmem:[%s1 + $0x8] sm:$0xf]
  %v149 = vld [vmem:[%s1 + $0xc] sm:$0xf]
  %v150 = vld [vmem:[%s1 + $0x10] sm:$0xf]
  %v151 = vld [vmem:[%s1 + $0x14] sm:$0xf]
  %v152 = vld [vmem:[%s1 + $0x18] sm:$0xf]
  %v153 = vld [vmem:[%s1 + $0x1c] sm:$0xf]
  %v154 = vld [vmem:[%s1 + $0x20] sm:$0xf]
  %v155 = vld [vmem:[%s1 + $0x24] sm:$0xf]
  %v156 = vld [vmem:[%s1 + $0x28] sm:$0xf]
  %v157 = vld [vmem:[%s1 + $0x2c] sm:$0xf]
  %v158 = vld [vmem:[%s1 + $0x30] sm:$0xf]
  %v159 = vld [vmem:[%s1 + $0x34] sm:$0xf]
  %v160 = vld [vmem:[%s1 + $0x38] sm:$0xf]
  %v161 = vld [vmem:[%s1 + $0x3c] sm:$0xf]
  %v162 = vld [vmem:[%s1 + $0x40] sm:$0xf]
  %v163 = vld [vmem:[%s1 + $0x44] sm:$0xf]
  %v164 = vld [vmem:[%s1 + $0x48] sm:$0xf]
  %v165 = vld [vmem:[%s1 + $0x4c] sm:$0xf]
  %v166 = vld [vmem:[%s1 + $0x50] sm:$0xf]
  %v167 = vld [vmem:[%s1 + $0x54] sm:$0xf]
  %v168 = vld [vmem:[%s1 + $0x58] sm:$0xf]
  %v169 = vld [vmem:[%s1 + $0x5c] sm:$0xf]
  %v170 = vld [vmem:[%s1 + $0x60] sm:$0xf]
  %v171 = vld [vmem:[%s1 + $0x64] sm:$0xf]
  %v172 = vld [vmem:[%s1 + $0x68] sm:$0xf]
  %v173 = vld [vmem:[%s1 + $0x6c] sm:$0xf]
  %v174 = vld [vmem:[%s1 + $0x70] sm:$0xf]
  %v175 = vld [vmem:[%s1 + $0x74] sm:$0xf]
  %v176 = vld [vmem:[%s1 + $0x78] sm:$0xf]
  %v177 = vld [vmem:[%s1 + $0x7c] sm:$0xf]
  %v178 = vld [vmem:[%s1 + $0x80] sm:$0xf]
  %v179 = vld [vmem:[%s1 + $0x84] sm:$0xf]
  %v180 = vld [vmem:[%s1 + $0x88] sm:$0xf]
  %v181 = vld [vmem:[%s1 + $0x8c] sm:$0xf]
  %v182 = vld [vmem:[%s1 + $0x90] sm:$0xf]
  %v183 = vld [vmem:[%s1 + $0x94] sm:$0xf]
  %v184 = vld [vmem:[%s1 + $0x98] sm:$0xf]
  %v185 = vld [vmem:[%s1 + $0x9c] sm:$0xf]
  %v186 = vld [vmem:[%s1 + $0xa0] sm:$0xf]
  %v187 = vld [vmem:[%s1 + $0xa4] sm:$0xf]
  %v188 = vld [vmem:[%s1 + $0xa8] sm:$0xf]
  %v189 = vld [vmem:[%s1 + $0xac] sm:$0xf]
  %v190 = vld [vmem:[%s1 + $0xb0] sm:$0xf]
  %v191 = vld [vmem:[%s1 + $0xb4] sm:$0xf]
  %v192 = vld [vmem:[%s1 + $0xb8] sm:$0xf]
  %v193 = vld [vmem:[%s1 + $0xbc] sm:$0xf]
  %v322 = vunpack.c.l.b16 %v18
  %v323 = vunpack.c.h.b16 %v18
  %v324 = vunpack.c.l.b16 %v19
  %v325 = vunpack.c.l.b16 %v20
  %v326 = vunpack.c.h.b16 %v20
  %v327 = vunpack.c.l.b16 %v21
  %v328 = vunpack.c.l.b16 %v22
  %v329 = vunpack.c.h.b16 %v22
  %v330 = vunpack.c.l.b16 %v23
  %v331 = vunpack.c.l.b16 %v24
  %v332 = vunpack.c.h.b16 %v24
  %v333 = vunpack.c.l.b16 %v25
  %v334 = vunpack.c.l.b16 %v26
  %v335 = vunpack.c.h.b16 %v26
  %v336 = vunpack.c.l.b16 %v27
  %v337 = vunpack.c.l.b16 %v28
  %v338 = vunpack.c.h.b16 %v28
  %v339 = vunpack.c.l.b16 %v29
  %v340 = vunpack.c.l.b16 %v30
  %v341 = vunpack.c.h.b16 %v30
  %v342 = vunpack.c.l.b16 %v31
  %v343 = vunpack.c.l.b16 %v32
  %v344 = vunpack.c.h.b16 %v32
  %v345 = vunpack.c.l.b16 %v33
  %v346 = vunpack.c.l.b16 %v34
  %v347 = vunpack.c.h.b16 %v34
  %v348 = vunpack.c.l.b16 %v35
  %v349 = vunpack.c.l.b16 %v36
  %v350 = vunpack.c.h.b16 %v36
  %v351 = vunpack.c.l.b16 %v37
  %v352 = vunpack.c.l.b16 %v38
  %v353 = vunpack.c.h.b16 %v38
  %v354 = vunpack.c.l.b16 %v39
  %v355 = vunpack.c.l.b16 %v40
  %v356 = vunpack.c.h.b16 %v40
  %v357 = vunpack.c.l.b16 %v41
  %v358 = vunpack.c.l.b16 %v42
  %v359 = vunpack.c.h.b16 %v42
  %v360 = vunpack.c.l.b16 %v43
  %v361 = vunpack.c.l.b16 %v44
  %v362 = vunpack.c.h.b16 %v44
  %v363 = vunpack.c.l.b16 %v45
  %v364 = vunpack.c.l.b16 %v46
  %v365 = vunpack.c.h.b16 %v46
  %v366 = vunpack.c.l.b16 %v47
  %v367 = vunpack.c.l.b16 %v48
  %v368 = vunpack.c.h.b16 %v48
  %v369 = vunpack.c.l.b16 %v49
  %v370 = vunpack.c.l.b16 %v50
  %v371 = vunpack.c.h.b16 %v50
  %v372 = vunpack.c.l.b16 %v51
  %v373 = vunpack.c.l.b16 %v52
  %v374 = vunpack.c.h.b16 %v52
  %v375 = vunpack.c.l.b16 %v53
  %v376 = vunpack.c.l.b16 %v54
  %v377 = vunpack.c.h.b16 %v54
  %v378 = vunpack.c.l.b16 %v55
  %v379 = vunpack.c.l.b16 %v56
  %v380 = vunpack.c.h.b16 %v56
  %v381 = vunpack.c.l.b16 %v57
  %v382 = vunpack.c.l.b16 %v58
  %v383 = vunpack.c.h.b16 %v58
  %v384 = vunpack.c.l.b16 %v59
  %v385 = vunpack.c.l.b16 %v60
  %v386 = vunpack.c.h.b16 %v60
  %v387 = vunpack.c.l.b16 %v61
  %v388 = vunpack.c.l.b16 %v62
  %v389 = vunpack.c.h.b16 %v62
  %v390 = vunpack.c.l.b16 %v63
  %v391 = vunpack.c.l.b16 %v64
  %v392 = vunpack.c.h.b16 %v64
  %v393 = vunpack.c.l.b16 %v65
  %v394 = vunpack.c.l.b16 %v66
  %v395 = vunpack.c.h.b16 %v66
  %v396 = vunpack.c.l.b16 %v67
  %v397 = vunpack.c.l.b16 %v68
  %v398 = vunpack.c.h.b16 %v68
  %v399 = vunpack.c.l.b16 %v69
  %v400 = vunpack.c.l.b16 %v70
  %v401 = vunpack.c.h.b16 %v70
  %v402 = vunpack.c.l.b16 %v71
  %v403 = vunpack.c.l.b16 %v72
  %v404 = vunpack.c.h.b16 %v72
  %v405 = vunpack.c.l.b16 %v73
  %v406 = vunpack.c.l.b16 %v74
  %v407 = vunpack.c.h.b16 %v74
  %v408 = vunpack.c.l.b16 %v75
  %v409 = vunpack.c.l.b16 %v76
  %v410 = vunpack.c.h.b16 %v76
  %v411 = vunpack.c.l.b16 %v77
  %v412 = vunpack.c.l.b16 %v78
  %v413 = vunpack.c.h.b16 %v78
  %v414 = vunpack.c.l.b16 %v79
  %v415 = vunpack.c.l.b16 %v80
  %v416 = vunpack.c.h.b16 %v80
  %v417 = vunpack.c.l.b16 %v81
  %v418 = vunpack.c.l.b16 %v82
  %v419 = vunpack.c.h.b16 %v82
  %v420 = vunpack.c.l.b16 %v83
  %v421 = vunpack.c.l.b16 %v84
  %v422 = vunpack.c.h.b16 %v84
  %v423 = vunpack.c.l.b16 %v85
  %v424 = vunpack.c.l.b16 %v86
  %v425 = vunpack.c.h.b16 %v86
  %v426 = vunpack.c.l.b16 %v87
  %v427 = vunpack.c.l.b16 %v88
  %v428 = vunpack.c.h.b16 %v88
  %v429 = vunpack.c.l.b16 %v89
  %v430 = vunpack.c.l.b16 %v90
  %v431 = vunpack.c.h.b16 %v90
  %v432 = vunpack.c.l.b16 %v91
  %v433 = vunpack.c.l.b16 %v92
  %v434 = vunpack.c.h.b16 %v92
  %v435 = vunpack.c.l.b16 %v93
  %v436 = vunpack.c.l.b16 %v94
  %v437 = vunpack.c.h.b16 %v94
  %v438 = vunpack.c.l.b16 %v95
  %v439 = vunpack.c.l.b16 %v96
  %v440 = vunpack.c.h.b16 %v96
  %v441 = vunpack.c.l.b16 %v97
  %v442 = vunpack.c.l.b16 %v98
  %v443 = vunpack.c.h.b16 %v98
  %v444 = vunpack.c.l.b16 %v99
  %v445 = vunpack.c.l.b16 %v100
  %v446 = vunpack.c.h.b16 %v100
  %v447 = vunpack.c.l.b16 %v101
  %v448 = vunpack.c.l.b16 %v102
  %v449 = vunpack.c.h.b16 %v102
  %v450 = vunpack.c.l.b16 %v103
  %v451 = vunpack.c.l.b16 %v104
  %v452 = vunpack.c.h.b16 %v104
  %v453 = vunpack.c.l.b16 %v105
  %v454 = vunpack.c.l.b16 %v106
  %v455 = vunpack.c.h.b16 %v106
  %v456 = vunpack.c.l.b16 %v107
  %v457 = vunpack.c.l.b16 %v108
  %v458 = vunpack.c.h.b16 %v108
  %v459 = vunpack.c.l.b16 %v109
  %v460 = vunpack.c.l.b16 %v110
  %v461 = vunpack.c.h.b16 %v110
  %v462 = vunpack.c.l.b16 %v111
  %v463 = vunpack.c.l.b16 %v112
  %v464 = vunpack.c.h.b16 %v112
  %v465 = vunpack.c.l.b16 %v113
  %v466 = vunpack.c.l.b16 %v114
  %v467 = vunpack.c.h.b16 %v114
  %v468 = vunpack.c.l.b16 %v115
  %v469 = vunpack.c.l.b16 %v116
  %v470 = vunpack.c.h.b16 %v116
  %v471 = vunpack.c.l.b16 %v117
  %v472 = vunpack.c.l.b16 %v118
  %v473 = vunpack.c.h.b16 %v118
  %v474 = vunpack.c.l.b16 %v119
  %v475 = vunpack.c.l.b16 %v120
  %v476 = vunpack.c.h.b16 %v120
  %v477 = vunpack.c.l.b16 %v121
  %v478 = vunpack.c.l.b16 %v122
  %v479 = vunpack.c.h.b16 %v122
  %v480 = vunpack.c.l.b16 %v123
  %v481 = vunpack.c.l.b16 %v124
  %v482 = vunpack.c.h.b16 %v124
  %v483 = vunpack.c.l.b16 %v125
  %v484 = vunpack.c.l.b16 %v126
  %v485 = vunpack.c.h.b16 %v126
  %v486 = vunpack.c.l.b16 %v127
  %v487 = vunpack.c.l.b16 %v128
  %v488 = vunpack.c.h.b16 %v128
  %v489 = vunpack.c.l.b16 %v129
  %v490 = vunpack.c.l.b16 %v130
  %v491 = vunpack.c.h.b16 %v130
  %v492 = vunpack.c.l.b16 %v131
  %v493 = vunpack.c.l.b16 %v132
  %v494 = vunpack.c.h.b16 %v132
  %v495 = vunpack.c.l.b16 %v133
  %v496 = vunpack.c.l.b16 %v134
  %v497 = vunpack.c.h.b16 %v134
  %v498 = vunpack.c.l.b16 %v135
  %v499 = vunpack.c.l.b16 %v136
  %v500 = vunpack.c.h.b16 %v136
  %v501 = vunpack.c.l.b16 %v137
  %v502 = vunpack.c.l.b16 %v138
  %v503 = vunpack.c.h.b16 %v138
  %v504 = vunpack.c.l.b16 %v139
  %v505 = vunpack.c.l.b16 %v140
  %v506 = vunpack.c.h.b16 %v140
  %v507 = vunpack.c.l.b16 %v141
  %v508 = vunpack.c.l.b16 %v142
  %v509 = vunpack.c.h.b16 %v142
  %v510 = vunpack.c.l.b16 %v143
  %v511 = vunpack.c.l.b16 %v144
  %v512 = vunpack.c.h.b16 %v144
  %v513 = vunpack.c.l.b16 %v145
  %v514 = vpack.c.b16 %v325, %v322
  %v515 = vpack.c.b16 %v326, %v323
  %v516 = vpack.c.b16 %v327, %v324
  %v517 = vpack.c.b16 %v331, %v328
  %v518 = vpack.c.b16 %v332, %v329
  %v519 = vpack.c.b16 %v333, %v330
  %v520 = vpack.c.b16 %v337, %v334
  %v521 = vpack.c.b16 %v338, %v335
  %v522 = vpack.c.b16 %v339, %v336
  %v523 = vpack.c.b16 %v343, %v340
  %v524 = vpack.c.b16 %v344, %v341
  %v525 = vpack.c.b16 %v345, %v342
  %v526 = vpack.c.b16 %v349, %v346
  %v527 = vpack.c.b16 %v350, %v347
  %v528 = vpack.c.b16 %v351, %v348
  %v529 = vpack.c.b16 %v355, %v352
  %v530 = vpack.c.b16 %v356, %v353
  %v531 = vpack.c.b16 %v357, %v354
  %v532 = vpack.c.b16 %v361, %v358
  %v533 = vpack.c.b16 %v362, %v359
  %v534 = vpack.c.b16 %v363, %v360
  %v535 = vpack.c.b16 %v367, %v364
  %v536 = vpack.c.b16 %v368, %v365
  %v537 = vpack.c.b16 %v369, %v366
  %v538 = vpack.c.b16 %v373, %v370
  %v539 = vpack.c.b16 %v374, %v371
  %v540 = vpack.c.b16 %v375, %v372
  %v541 = vpack.c.b16 %v379, %v376
  %v542 = vpack.c.b16 %v380, %v377
  %v543 = vpack.c.b16 %v381, %v378
  %v544 = vpack.c.b16 %v385, %v382
  %v545 = vpack.c.b16 %v386, %v383
  %v546 = vpack.c.b16 %v387, %v384
  %v547 = vpack.c.b16 %v391, %v388
  %v548 = vpack.c.b16 %v392, %v389
  %v549 = vpack.c.b16 %v393, %v390
  %v550 = vpack.c.b16 %v397, %v394
  %v551 = vpack.c.b16 %v398, %v395
  %v552 = vpack.c.b16 %v399, %v396
  %v553 = vpack.c.b16 %v403, %v400
  %v554 = vpack.c.b16 %v404, %v401
  %v555 = vpack.c.b16 %v405, %v402
  %v556 = vpack.c.b16 %v409, %v406
  %v557 = vpack.c.b16 %v410, %v407
  %v558 = vpack.c.b16 %v411, %v408
  %v559 = vpack.c.b16 %v415, %v412
  %v560 = vpack.c.b16 %v416, %v413
  %v561 = vpack.c.b16 %v417, %v414
  %v562 = vpack.c.b16 %v421, %v418
  %v563 = vpack.c.b16 %v422, %v419
  %v564 = vpack.c.b16 %v423, %v420
  %v565 = vpack.c.b16 %v427, %v424
  %v566 = vpack.c.b16 %v428, %v425
  %v567 = vpack.c.b16 %v429, %v426
  %v568 = vpack.c.b16 %v433, %v430
  %v569 = vpack.c.b16 %v434, %v431
  %v570 = vpack.c.b16 %v435, %v432
  %v571 = vpack.c.b16 %v439, %v436
  %v572 = vpack.c.b16 %v440, %v437
  %v573 = vpack.c.b16 %v441, %v438
  %v574 = vpack.c.b16 %v445, %v442
  %v575 = vpack.c.b16 %v446, %v443
  %v576 = vpack.c.b16 %v447, %v444
  %v577 = vpack.c.b16 %v451, %v448
  %v578 = vpack.c.b16 %v452, %v449
  %v579 = vpack.c.b16 %v453, %v450
  %v580 = vpack.c.b16 %v457, %v454
  %v581 = vpack.c.b16 %v458, %v455
  %v582 = vpack.c.b16 %v459, %v456
  %v583 = vpack.c.b16 %v463, %v460
  %v584 = vpack.c.b16 %v464, %v461
  %v585 = vpack.c.b16 %v465, %v462
  %v586 = vpack.c.b16 %v469, %v466
  %v587 = vpack.c.b16 %v470, %v467
  %v588 = vpack.c.b16 %v471, %v468
  %v589 = vpack.c.b16 %v475, %v472
  %v590 = vpack.c.b16 %v476, %v473
  %v591 = vpack.c.b16 %v477, %v474
  %v592 = vpack.c.b16 %v481, %v478
  %v593 = vpack.c.b16 %v482, %v479
  %v594 = vpack.c.b16 %v483, %v480
  %v595 = vpack.c.b16 %v487, %v484
  %v596 = vpack.c.b16 %v488, %v485
  %v597 = vpack.c.b16 %v489, %v486
  %v598 = vpack.c.b16 %v493, %v490
  %v599 = vpack.c.b16 %v494, %v491
  %v600 = vpack.c.b16 %v495, %v492
  %v601 = vpack.c.b16 %v499, %v496
  %v602 = vpack.c.b16 %v500, %v497
  %v603 = vpack.c.b16 %v501, %v498
  %v604 = vpack.c.b16 %v505, %v502
  %v605 = vpack.c.b16 %v506, %v503
  %v606 = vpack.c.b16 %v507, %v504
  %v607 = vpack.c.b16 %v511, %v508
  %v608 = vpack.c.b16 %v512, %v509
  %v609 = vpack.c.b16 %v513, %v510
  %v754 = vunpack.c.l.b16 %v146
  %v755 = vunpack.c.l.b16 %v147
  %v756 = vunpack.c.l.b16 %v148
  %v757 = vunpack.c.l.b16 %v149
  %v758 = vunpack.c.l.b16 %v150
  %v759 = vunpack.c.l.b16 %v151
  %v760 = vunpack.c.l.b16 %v152
  %v761 = vunpack.c.l.b16 %v153
  %v762 = vunpack.c.l.b16 %v154
  %v763 = vunpack.c.l.b16 %v155
  %v764 = vunpack.c.l.b16 %v156
  %v765 = vunpack.c.l.b16 %v157
  %v766 = vunpack.c.l.b16 %v158
  %v767 = vunpack.c.l.b16 %v159
  %v768 = vunpack.c.l.b16 %v160
  %v769 = vunpack.c.l.b16 %v161
  %v770 = vunpack.c.l.b16 %v162
  %v771 = vunpack.c.l.b16 %v163
  %v772 = vunpack.c.l.b16 %v164
  %v773 = vunpack.c.l.b16 %v165
  %v774 = vunpack.c.l.b16 %v166
  %v775 = vunpack.c.l.b16 %v167
  %v776 = vunpack.c.l.b16 %v168
  %v777 = vunpack.c.l.b16 %v169
  %v778 = vunpack.c.l.b16 %v170
  %v779 = vunpack.c.l.b16 %v171
  %v780 = vunpack.c.l.b16 %v172
  %v781 = vunpack.c.l.b16 %v173
  %v782 = vunpack.c.l.b16 %v174
  %v783 = vunpack.c.l.b16 %v175
  %v784 = vunpack.c.l.b16 %v176
  %v785 = vunpack.c.l.b16 %v177
  %v786 = vunpack.c.l.b16 %v178
  %v787 = vunpack.c.l.b16 %v179
  %v788 = vunpack.c.l.b16 %v180
  %v789 = vunpack.c.l.b16 %v181
  %v790 = vunpack.c.l.b16 %v182
  %v791 = vunpack.c.l.b16 %v183
  %v792 = vunpack.c.l.b16 %v184
  %v793 = vunpack.c.l.b16 %v185
  %v794 = vunpack.c.l.b16 %v186
  %v795 = vunpack.c.l.b16 %v187
  %v796 = vunpack.c.l.b16 %v188
  %v797 = vunpack.c.l.b16 %v189
  %v798 = vunpack.c.l.b16 %v190
  %v799 = vunpack.c.l.b16 %v191
  %v800 = vunpack.c.l.b16 %v192
  %v801 = vunpack.c.l.b16 %v193
  %v802 = vpack.c.b16 %v755, %v754
  %v803 = vpack.c.b16 %v757, %v756
  %v804 = vpack.c.b16 %v759, %v758
  %v805 = vpack.c.b16 %v761, %v760
  %v806 = vpack.c.b16 %v763, %v762
  %v807 = vpack.c.b16 %v765, %v764
  %v808 = vpack.c.b16 %v767, %v766
  %v809 = vpack.c.b16 %v769, %v768
  %v810 = vpack.c.b16 %v771, %v770
  %v811 = vpack.c.b16 %v773, %v772
  %v812 = vpack.c.b16 %v775, %v774
  %v813 = vpack.c.b16 %v777, %v776
  %v814 = vpack.c.b16 %v779, %v778
  %v815 = vpack.c.b16 %v781, %v780
  %v816 = vpack.c.b16 %v783, %v782
  %v817 = vpack.c.b16 %v785, %v784
  %v818 = vpack.c.b16 %v787, %v786
  %v819 = vpack.c.b16 %v789, %v788
  %v820 = vpack.c.b16 %v791, %v790
  %v821 = vpack.c.b16 %v793, %v792
  %v822 = vpack.c.b16 %v795, %v794
  %v823 = vpack.c.b16 %v797, %v796
  %v824 = vpack.c.b16 %v799, %v798
  %v825 = vpack.c.b16 %v801, %v800
  %850 = vmatprep.subr.bf16.mxu0 0
  %851 = vmatpush1.bf16.msra.mxu0 %v809
  %852 = vmatprep.subr.bf16.mxu0 0
  %853 = vmatpush1.bf16.msra.mxu0 %v808
  %854 = vmatprep.subr.bf16.mxu0 0
  %855 = vmatpush1.bf16.msra.mxu0 %v807
  %856 = vmatprep.subr.bf16.mxu0 0
  %857 = vmatpush1.bf16.msra.mxu0 %v806
  %858 = vmatprep.subr.bf16.mxu0 0
  %859 = vmatpush1.bf16.msra.mxu0 %v805
  %860 = vmatprep.subr.bf16.mxu0 0
  %861 = vmatpush1.bf16.msra.mxu0 %v804
  %862 = vmatprep.subr.bf16.mxu0 0
  %863 = vmatpush1.bf16.msra.mxu0 %v803
  %864 = vmatprep.subr.bf16.mxu0 0
  %865 = vmatpush1.bf16.msra.mxu0 %v802
  %866 = vmatprep.subr.bf16.mxu0 0
  %867 = vmatpush2.bf16.msra.mxu0 %v817
  %868 = vmatprep.subr.bf16.mxu0 0
  %869 = vmatpush2.bf16.msra.mxu0 %v816
  %870 = vmatprep.subr.bf16.mxu0 0
  %871 = vmatpush2.bf16.msra.mxu0 %v815
  %872 = vmatprep.subr.bf16.mxu0 0
  %873 = vmatpush2.bf16.msra.mxu0 %v814
  %874 = vmatprep.subr.bf16.mxu0 0
  %875 = vmatpush2.bf16.msra.mxu0 %v813
  %876 = vmatprep.subr.bf16.mxu0 0
  %877 = vmatpush2.bf16.msra.mxu0 %v812
  %878 = vmatprep.subr.bf16.mxu0 0
  %879 = vmatpush2.bf16.msra.mxu0 %v811
  %880 = vmatprep.subr.bf16.mxu0 0
  %881 = vmatpush2.bf16.msra.mxu0 %v810
  %882 = vmatprep.mubr.bf16.mxu0 %v515
  %883 = vmatmul.mubr.bf16.gmra.mxu0 %v514
  %v884 = vpop.f32.mrf.mxu0
  %v885 = vadd.f32 0.0, %v884
  %v886 = vpop.f32.mrf.mxu0
  %v887 = vpop.f32.mrf.mxu0
  %v888 = vadd.f32 0.0, %v887
  %v889 = vpop.f32.mrf.mxu0
  %890 = vmatprep.mubr.bf16.mxu0 %v518
  %891 = vmatmul.mubr.bf16.gmra.mxu0 %v517
  %v892 = vpop.f32.mrf.mxu0
  %v893 = vadd.f32 0.0, %v892
  %v894 = vpop.f32.mrf.mxu0
  %v895 = vpop.f32.mrf.mxu0
  %v896 = vadd.f32 0.0, %v895
  %v897 = vpop.f32.mrf.mxu0
  %898 = vmatprep.mubr.bf16.mxu0 %v521
  %899 = vmatmul.mubr.bf16.gmra.mxu0 %v520
  %v900 = vpop.f32.mrf.mxu0
  %v901 = vadd.f32 0.0, %v900
  %v902 = vpop.f32.mrf.mxu0
  %v903 = vpop.f32.mrf.mxu0
  %v904 = vadd.f32 0.0, %v903
  %v905 = vpop.f32.mrf.mxu0
  %906 = vmatprep.mubr.bf16.mxu0 %v524
  %907 = vmatmul.mubr.bf16.gmra.mxu0 %v523
  %v908 = vpop.f32.mrf.mxu0
  %v909 = vadd.f32 0.0, %v908
  %v910 = vpop.f32.mrf.mxu0
  %v911 = vpop.f32.mrf.mxu0
  %v912 = vadd.f32 0.0, %v911
  %v913 = vpop.f32.mrf.mxu0
  %914 = vmatprep.mubr.bf16.mxu0 %v527
  %915 = vmatmul.mubr.bf16.gmra.mxu0 %v526
  %v916 = vpop.f32.mrf.mxu0
  %v917 = vadd.f32 0.0, %v916
  %v918 = vpop.f32.mrf.mxu0
  %v919 = vpop.f32.mrf.mxu0
  %v920 = vadd.f32 0.0, %v919
  %v921 = vpop.f32.mrf.mxu0
  %922 = vmatprep.mubr.bf16.mxu0 %v530
  %923 = vmatmul.mubr.bf16.gmra.mxu0 %v529
  %v924 = vpop.f32.mrf.mxu0
  %v925 = vadd.f32 0.0, %v924
  %v926 = vpop.f32.mrf.mxu0
  %v927 = vpop.f32.mrf.mxu0
  %v928 = vadd.f32 0.0, %v927
  %v929 = vpop.f32.mrf.mxu0
  %930 = vmatprep.mubr.bf16.mxu0 %v533
  %931 = vmatmul.mubr.bf16.gmra.mxu0 %v532
  %v932 = vpop.f32.mrf.mxu0
  %v933 = vadd.f32 0.0, %v932
  %v934 = vpop.f32.mrf.mxu0
  %v935 = vpop.f32.mrf.mxu0
  %v936 = vadd.f32 0.0, %v935
  %v937 = vpop.f32.mrf.mxu0
  %938 = vmatprep.mubr.bf16.mxu0 %v536
  %939 = vmatmul.mubr.bf16.gmra.mxu0 %v535
  %v940 = vpop.f32.mrf.mxu0
  %v941 = vadd.f32 0.0, %v940
  %v942 = vpop.f32.mrf.mxu0
  %v943 = vpop.f32.mrf.mxu0
  %v944 = vadd.f32 0.0, %v943
  %v945 = vpop.f32.mrf.mxu0
  %946 = vmatprep.mubr.bf16.mxu0 %v539
  %947 = vmatmul.mubr.bf16.gmra.mxu0 %v538
  %v948 = vpop.f32.mrf.mxu0
  %v949 = vadd.f32 0.0, %v948
  %v950 = vpop.f32.mrf.mxu0
  %v951 = vpop.f32.mrf.mxu0
  %v952 = vadd.f32 0.0, %v951
  %v953 = vpop.f32.mrf.mxu0
  %954 = vmatprep.mubr.bf16.mxu0 %v542
  %955 = vmatmul.mubr.bf16.gmra.mxu0 %v541
  %v956 = vpop.f32.mrf.mxu0
  %v957 = vadd.f32 0.0, %v956
  %v958 = vpop.f32.mrf.mxu0
  %v959 = vpop.f32.mrf.mxu0
  %v960 = vadd.f32 0.0, %v959
  %v961 = vpop.f32.mrf.mxu0
  %962 = vmatprep.mubr.bf16.mxu0 %v545
  %963 = vmatmul.mubr.bf16.gmra.mxu0 %v544
  %v964 = vpop.f32.mrf.mxu0
  %v965 = vadd.f32 0.0, %v964
  %v966 = vpop.f32.mrf.mxu0
  %v967 = vpop.f32.mrf.mxu0
  %v968 = vadd.f32 0.0, %v967
  %v969 = vpop.f32.mrf.mxu0
  %970 = vmatprep.mubr.bf16.mxu0 %v548
  %971 = vmatmul.mubr.bf16.gmra.mxu0 %v547
  %v972 = vpop.f32.mrf.mxu0
  %v973 = vadd.f32 0.0, %v972
  %v974 = vpop.f32.mrf.mxu0
  %v975 = vpop.f32.mrf.mxu0
  %v976 = vadd.f32 0.0, %v975
  %v977 = vpop.f32.mrf.mxu0
  %978 = vmatprep.mubr.bf16.mxu0 %v551
  %979 = vmatmul.mubr.bf16.gmra.mxu0 %v550
  %v980 = vpop.f32.mrf.mxu0
  %v981 = vadd.f32 0.0, %v980
  %v982 = vpop.f32.mrf.mxu0
  %v983 = vpop.f32.mrf.mxu0
  %v984 = vadd.f32 0.0, %v983
  %v985 = vpop.f32.mrf.mxu0
  %986 = vmatprep.mubr.bf16.mxu0 %v554
  %987 = vmatmul.mubr.bf16.gmra.mxu0 %v553
  %v988 = vpop.f32.mrf.mxu0
  %v989 = vadd.f32 0.0, %v988
  %v990 = vpop.f32.mrf.mxu0
  %v991 = vpop.f32.mrf.mxu0
  %v992 = vadd.f32 0.0, %v991
  %v993 = vpop.f32.mrf.mxu0
  %994 = vmatprep.mubr.bf16.mxu0 %v557
  %995 = vmatmul.mubr.bf16.gmra.mxu0 %v556
  %v996 = vpop.f32.mrf.mxu0
  %v997 = vadd.f32 0.0, %v996
  %v998 = vpop.f32.mrf.mxu0
  %v999 = vpop.f32.mrf.mxu0
  %v1000 = vadd.f32 0.0, %v999
  %v1001 = vpop.f32.mrf.mxu0
  %1002 = vmatprep.mubr.bf16.mxu0 %v560
  %1003 = vmatmul.mubr.bf16.gmra.mxu0 %v559
  %v1004 = vpop.f32.mrf.mxu0
  %v1005 = vadd.f32 0.0, %v1004
  %v1006 = vpop.f32.mrf.mxu0
  %v1007 = vpop.f32.mrf.mxu0
  %v1008 = vadd.f32 0.0, %v1007
  %v1009 = vpop.f32.mrf.mxu0
  %1010 = vmatprep.mubr.bf16.mxu0 %v563
  %1011 = vmatmul.mubr.bf16.gmra.mxu0 %v562
  %v1012 = vpop.f32.mrf.mxu0
  %v1013 = vadd.f32 0.0, %v1012
  %v1014 = vpop.f32.mrf.mxu0
  %v1015 = vpop.f32.mrf.mxu0
  %v1016 = vadd.f32 0.0, %v1015
  %v1017 = vpop.f32.mrf.mxu0
  %1018 = vmatprep.mubr.bf16.mxu0 %v566
  %1019 = vmatmul.mubr.bf16.gmra.mxu0 %v565
  %v1020 = vpop.f32.mrf.mxu0
  %v1021 = vadd.f32 0.0, %v1020
  %v1022 = vpop.f32.mrf.mxu0
  %v1023 = vpop.f32.mrf.mxu0
  %v1024 = vadd.f32 0.0, %v1023
  %v1025 = vpop.f32.mrf.mxu0
  %1026 = vmatprep.mubr.bf16.mxu0 %v569
  %1027 = vmatmul.mubr.bf16.gmra.mxu0 %v568
  %v1028 = vpop.f32.mrf.mxu0
  %v1029 = vadd.f32 0.0, %v1028
  %v1030 = vpop.f32.mrf.mxu0
  %v1031 = vpop.f32.mrf.mxu0
  %v1032 = vadd.f32 0.0, %v1031
  %v1033 = vpop.f32.mrf.mxu0
  %1034 = vmatprep.mubr.bf16.mxu0 %v572
  %1035 = vmatmul.mubr.bf16.gmra.mxu0 %v571
  %v1036 = vpop.f32.mrf.mxu0
  %v1037 = vadd.f32 0.0, %v1036
  %v1038 = vpop.f32.mrf.mxu0
  %v1039 = vpop.f32.mrf.mxu0
  %v1040 = vadd.f32 0.0, %v1039
  %v1041 = vpop.f32.mrf.mxu0
  %1042 = vmatprep.mubr.bf16.mxu0 %v575
  %1043 = vmatmul.mubr.bf16.gmra.mxu0 %v574
  %v1044 = vpop.f32.mrf.mxu0
  %v1045 = vadd.f32 0.0, %v1044
  %v1046 = vpop.f32.mrf.mxu0
  %v1047 = vpop.f32.mrf.mxu0
  %v1048 = vadd.f32 0.0, %v1047
  %v1049 = vpop.f32.mrf.mxu0
  %1050 = vmatprep.mubr.bf16.mxu0 %v578
  %1051 = vmatmul.mubr.bf16.gmra.mxu0 %v577
  %v1052 = vpop.f32.mrf.mxu0
  %v1053 = vadd.f32 0.0, %v1052
  %v1054 = vpop.f32.mrf.mxu0
  %v1055 = vpop.f32.mrf.mxu0
  %v1056 = vadd.f32 0.0, %v1055
  %v1057 = vpop.f32.mrf.mxu0
  %1058 = vmatprep.mubr.bf16.mxu0 %v581
  %1059 = vmatmul.mubr.bf16.gmra.mxu0 %v580
  %v1060 = vpop.f32.mrf.mxu0
  %v1061 = vadd.f32 0.0, %v1060
  %v1062 = vpop.f32.mrf.mxu0
  %v1063 = vpop.f32.mrf.mxu0
  %v1064 = vadd.f32 0.0, %v1063
  %v1065 = vpop.f32.mrf.mxu0
  %1066 = vmatprep.mubr.bf16.mxu0 %v584
  %1067 = vmatmul.mubr.bf16.gmra.mxu0 %v583
  %v1068 = vpop.f32.mrf.mxu0
  %v1069 = vadd.f32 0.0, %v1068
  %v1070 = vpop.f32.mrf.mxu0
  %v1071 = vpop.f32.mrf.mxu0
  %v1072 = vadd.f32 0.0, %v1071
  %v1073 = vpop.f32.mrf.mxu0
  %1074 = vmatprep.mubr.bf16.mxu0 %v587
  %1075 = vmatmul.mubr.bf16.gmra.mxu0 %v586
  %v1076 = vpop.f32.mrf.mxu0
  %v1077 = vadd.f32 0.0, %v1076
  %v1078 = vpop.f32.mrf.mxu0
  %v1079 = vpop.f32.mrf.mxu0
  %v1080 = vadd.f32 0.0, %v1079
  %v1081 = vpop.f32.mrf.mxu0
  %1082 = vmatprep.mubr.bf16.mxu0 %v590
  %1083 = vmatmul.mubr.bf16.gmra.mxu0 %v589
  %v1084 = vpop.f32.mrf.mxu0
  %v1085 = vadd.f32 0.0, %v1084
  %v1086 = vpop.f32.mrf.mxu0
  %v1087 = vpop.f32.mrf.mxu0
  %v1088 = vadd.f32 0.0, %v1087
  %v1089 = vpop.f32.mrf.mxu0
  %1090 = vmatprep.mubr.bf16.mxu0 %v593
  %1091 = vmatmul.mubr.bf16.gmra.mxu0 %v592
  %v1092 = vpop.f32.mrf.mxu0
  %v1093 = vadd.f32 0.0, %v1092
  %v1094 = vpop.f32.mrf.mxu0
  %v1095 = vpop.f32.mrf.mxu0
  %v1096 = vadd.f32 0.0, %v1095
  %v1097 = vpop.f32.mrf.mxu0
  %1098 = vmatprep.mubr.bf16.mxu0 %v596
  %1099 = vmatmul.mubr.bf16.gmra.mxu0 %v595
  %v1100 = vpop.f32.mrf.mxu0
  %v1101 = vadd.f32 0.0, %v1100
  %v1102 = vpop.f32.mrf.mxu0
  %v1103 = vpop.f32.mrf.mxu0
  %v1104 = vadd.f32 0.0, %v1103
  %v1105 = vpop.f32.mrf.mxu0
  %1106 = vmatprep.mubr.bf16.mxu0 %v599
  %1107 = vmatmul.mubr.bf16.gmra.mxu0 %v598
  %v1108 = vpop.f32.mrf.mxu0
  %v1109 = vadd.f32 0.0, %v1108
  %v1110 = vpop.f32.mrf.mxu0
  %v1111 = vpop.f32.mrf.mxu0
  %v1112 = vadd.f32 0.0, %v1111
  %v1113 = vpop.f32.mrf.mxu0
  %1114 = vmatprep.mubr.bf16.mxu0 %v602
  %1115 = vmatmul.mubr.bf16.gmra.mxu0 %v601
  %v1116 = vpop.f32.mrf.mxu0
  %v1117 = vadd.f32 0.0, %v1116
  %v1118 = vpop.f32.mrf.mxu0
  %v1119 = vpop.f32.mrf.mxu0
  %v1120 = vadd.f32 0.0, %v1119
  %v1121 = vpop.f32.mrf.mxu0
  %1122 = vmatprep.mubr.bf16.mxu0 %v605
  %1123 = vmatmul.mubr.bf16.gmra.mxu0 %v604
  %v1124 = vpop.f32.mrf.mxu0
  %v1125 = vadd.f32 0.0, %v1124
  %v1126 = vpop.f32.mrf.mxu0
  %v1127 = vpop.f32.mrf.mxu0
  %v1128 = vadd.f32 0.0, %v1127
  %v1129 = vpop.f32.mrf.mxu0
  %1130 = vmatprep.mubr.bf16.mxu0 %v608
  %1131 = vmatmul.mubr.bf16.gmra.mxu0 %v607
  %v1132 = vpop.f32.mrf.mxu0
  %v1133 = vadd.f32 0.0, %v1132
  %v1134 = vpop.f32.mrf.mxu0
  %v1135 = vpop.f32.mrf.mxu0
  %v1136 = vadd.f32 0.0, %v1135
  %v1137 = vpop.f32.mrf.mxu0
  %1138 = vdwg.mxu0
  %1139 = vmatprep.subr.bf16.mxu0 0
  %1140 = vmatpush1.bf16.msra.mxu0 %v825
  %1141 = vmatprep.subr.bf16.mxu0 0
  %1142 = vmatpush1.bf16.msra.mxu0 %v824
  %1143 = vmatprep.subr.bf16.mxu0 0
  %1144 = vmatpush1.bf16.msra.mxu0 %v823
  %1145 = vmatprep.subr.bf16.mxu0 0
  %1146 = vmatpush1.bf16.msra.mxu0 %v822
  %1147 = vmatprep.subr.bf16.mxu0 0
  %1148 = vmatpush1.bf16.msra.mxu0 %v821
  %1149 = vmatprep.subr.bf16.mxu0 0
  %1150 = vmatpush1.bf16.msra.mxu0 %v820
  %1151 = vmatprep.subr.bf16.mxu0 0
  %1152 = vmatpush1.bf16.msra.mxu0 %v819
  %1153 = vmatprep.subr.bf16.mxu0 0
  %1154 = vmatpush1.bf16.msra.mxu0 %v818
  %1155 = vmatprep.subr.bf16.mxu0 0
  %1156 = vmatpush2.bf16.msra.mxu0 0
  %1157 = vmatprep.subr.bf16.mxu0 0
  %1158 = vmatpush2.bf16.msra.mxu0 0
  %1159 = vmatprep.subr.bf16.mxu0 0
  %1160 = vmatpush2.bf16.msra.mxu0 0
  %1161 = vmatprep.subr.bf16.mxu0 0
  %1162 = vmatpush2.bf16.msra.mxu0 0
  %1163 = vmatprep.subr.bf16.mxu0 0
  %1164 = vmatpush2.bf16.msra.mxu0 0
  %1165 = vmatprep.subr.bf16.mxu0 0
  %1166 = vmatpush2.bf16.msra.mxu0 0
  %1167 = vmatprep.subr.bf16.mxu0 0
  %1168 = vmatpush2.bf16.msra.mxu0 0
  %1169 = vmatprep.subr.bf16.mxu0 0
  %1170 = vmatpush2.bf16.msra.mxu0 0
  %1171 = vmatprep.mubr.bf16.mxu0 0
  %1172 = vmatmul.mubr.bf16.gmra.mxu0 %v516
  %v1173 = vpop.f32.mrf.mxu0
  %v1174 = vadd.f32 %v885, %v1173
  %v1175 = vpop.f32.mrf.mxu0
  %v1176 = vpop.f32.mrf.mxu0
  %v1177 = vadd.f32 %v888, %v1176
  %v1178 = vpop.f32.mrf.mxu0
  %1179 = vmatprep.mubr.bf16.mxu0 0
  %1180 = vmatmul.mubr.bf16.gmra.mxu0 %v519
  %v1181 = vpop.f32.mrf.mxu0
  %v1182 = vadd.f32 %v893, %v1181
  %v1183 = vpop.f32.mrf.mxu0
  %v1184 = vpop.f32.mrf.mxu0
  %v1185 = vadd.f32 %v896, %v1184
  %v1186 = vpop.f32.mrf.mxu0
  %1187 = vmatprep.mubr.bf16.mxu0 0
  %1188 = vmatmul.mubr.bf16.gmra.mxu0 %v522
  %v1189 = vpop.f32.mrf.mxu0
  %v1190 = vadd.f32 %v901, %v1189
  %v1191 = vpop.f32.mrf.mxu0
  %v1192 = vpop.f32.mrf.mxu0
  %v1193 = vadd.f32 %v904, %v1192
  %v1194 = vpop.f32.mrf.mxu0
  %1195 = vmatprep.mubr.bf16.mxu0 0
  %1196 = vmatmul.mubr.bf16.gmra.mxu0 %v525
  %v1197 = vpop.f32.mrf.mxu0
  %v1198 = vadd.f32 %v909, %v1197
  %v1199 = vpop.f32.mrf.mxu0
  %v1200 = vpop.f32.mrf.mxu0
  %v1201 = vadd.f32 %v912, %v1200
  %v1202 = vpop.f32.mrf.mxu0
  %1203 = vmatprep.mubr.bf16.mxu0 0
  %1204 = vmatmul.mubr.bf16.gmra.mxu0 %v528
  %v1205 = vpop.f32.mrf.mxu0
  %v1206 = vadd.f32 %v917, %v1205
  %v1207 = vpop.f32.mrf.mxu0
  %v1208 = vpop.f32.mrf.mxu0
  %v1209 = vadd.f32 %v920, %v1208
  %v1210 = vpop.f32.mrf.mxu0
  %1211 = vmatprep.mubr.bf16.mxu0 0
  %1212 = vmatmul.mubr.bf16.gmra.mxu0 %v531
  %v1213 = vpop.f32.mrf.mxu0
  %v1214 = vadd.f32 %v925, %v1213
  %v1215 = vpop.f32.mrf.mxu0
  %v1216 = vpop.f32.mrf.mxu0
  %v1217 = vadd.f32 %v928, %v1216
  %v1218 = vpop.f32.mrf.mxu0
  %1219 = vmatprep.mubr.bf16.mxu0 0
  %1220 = vmatmul.mubr.bf16.gmra.mxu0 %v534
  %v1221 = vpop.f32.mrf.mxu0
  %v1222 = vadd.f32 %v933, %v1221
  %v1223 = vpop.f32.mrf.mxu0
  %v1224 = vpop.f32.mrf.mxu0
  %v1225 = vadd.f32 %v936, %v1224
  %v1226 = vpop.f32.mrf.mxu0
  %1227 = vmatprep.mubr.bf16.mxu0 0
  %1228 = vmatmul.mubr.bf16.gmra.mxu0 %v537
  %v1229 = vpop.f32.mrf.mxu0
  %v1230 = vadd.f32 %v941, %v1229
  %v1231 = vpop.f32.mrf.mxu0
  %v1232 = vpop.f32.mrf.mxu0
  %v1233 = vadd.f32 %v944, %v1232
  %v1234 = vpop.f32.mrf.mxu0
  %1235 = vmatprep.mubr.bf16.mxu0 0
  %1236 = vmatmul.mubr.bf16.gmra.mxu0 %v540
  %v1237 = vpop.f32.mrf.mxu0
  %v1238 = vadd.f32 %v949, %v1237
  %v1239 = vpop.f32.mrf.mxu0
  %v1240 = vpop.f32.mrf.mxu0
  %v1241 = vadd.f32 %v952, %v1240
  %v1242 = vpop.f32.mrf.mxu0
  %1243 = vmatprep.mubr.bf16.mxu0 0
  %1244 = vmatmul.mubr.bf16.gmra.mxu0 %v543
  %v1245 = vpop.f32.mrf.mxu0
  %v1246 = vadd.f32 %v957, %v1245
  %v1247 = vpop.f32.mrf.mxu0
  %v1248 = vpop.f32.mrf.mxu0
  %v1249 = vadd.f32 %v960, %v1248
  %v1250 = vpop.f32.mrf.mxu0
  %1251 = vmatprep.mubr.bf16.mxu0 0
  %1252 = vmatmul.mubr.bf16.gmra.mxu0 %v546
  %v1253 = vpop.f32.mrf.mxu0
  %v1254 = vadd.f32 %v965, %v1253
  %v1255 = vpop.f32.mrf.mxu0
  %v1256 = vpop.f32.mrf.mxu0
  %v1257 = vadd.f32 %v968, %v1256
  %v1258 = vpop.f32.mrf.mxu0
  %1259 = vmatprep.mubr.bf16.mxu0 0
  %1260 = vmatmul.mubr.bf16.gmra.mxu0 %v549
  %v1261 = vpop.f32.mrf.mxu0
  %v1262 = vadd.f32 %v973, %v1261
  %v1263 = vpop.f32.mrf.mxu0
  %v1264 = vpop.f32.mrf.mxu0
  %v1265 = vadd.f32 %v976, %v1264
  %v1266 = vpop.f32.mrf.mxu0
  %1267 = vmatprep.mubr.bf16.mxu0 0
  %1268 = vmatmul.mubr.bf16.gmra.mxu0 %v552
  %v1269 = vpop.f32.mrf.mxu0
  %v1270 = vadd.f32 %v981, %v1269
  %v1271 = vpop.f32.mrf.mxu0
  %v1272 = vpop.f32.mrf.mxu0
  %v1273 = vadd.f32 %v984, %v1272
  %v1274 = vpop.f32.mrf.mxu0
  %1275 = vmatprep.mubr.bf16.mxu0 0
  %1276 = vmatmul.mubr.bf16.gmra.mxu0 %v555
  %v1277 = vpop.f32.mrf.mxu0
  %v1278 = vadd.f32 %v989, %v1277
  %v1279 = vpop.f32.mrf.mxu0
  %v1280 = vpop.f32.mrf.mxu0
  %v1281 = vadd.f32 %v992, %v1280
  %v1282 = vpop.f32.mrf.mxu0
  %1283 = vmatprep.mubr.bf16.mxu0 0
  %1284 = vmatmul.mubr.bf16.gmra.mxu0 %v558
  %v1285 = vpop.f32.mrf.mxu0
  %v1286 = vadd.f32 %v997, %v1285
  %v1287 = vpop.f32.mrf.mxu0
  %v1288 = vpop.f32.mrf.mxu0
  %v1289 = vadd.f32 %v1000, %v1288
  %v1290 = vpop.f32.mrf.mxu0
  %1291 = vmatprep.mubr.bf16.mxu0 0
  %1292 = vmatmul.mubr.bf16.gmra.mxu0 %v561
  %v1293 = vpop.f32.mrf.mxu0
  %v1294 = vadd.f32 %v1005, %v1293
  %v1295 = vpop.f32.mrf.mxu0
  %v1296 = vpop.f32.mrf.mxu0
  %v1297 = vadd.f32 %v1008, %v1296
  %v1298 = vpop.f32.mrf.mxu0
  %1299 = vmatprep.mubr.bf16.mxu0 0
  %1300 = vmatmul.mubr.bf16.gmra.mxu0 %v564
  %v1301 = vpop.f32.mrf.mxu0
  %v1302 = vadd.f32 %v1013, %v1301
  %v1303 = vpop.f32.mrf.mxu0
  %v1304 = vpop.f32.mrf.mxu0
  %v1305 = vadd.f32 %v1016, %v1304
  %v1306 = vpop.f32.mrf.mxu0
  %1307 = vmatprep.mubr.bf16.mxu0 0
  %1308 = vmatmul.mubr.bf16.gmra.mxu0 %v567
  %v1309 = vpop.f32.mrf.mxu0
  %v1310 = vadd.f32 %v1021, %v1309
  %v1311 = vpop.f32.mrf.mxu0
  %v1312 = vpop.f32.mrf.mxu0
  %v1313 = vadd.f32 %v1024, %v1312
  %v1314 = vpop.f32.mrf.mxu0
  %1315 = vmatprep.mubr.bf16.mxu0 0
  %1316 = vmatmul.mubr.bf16.gmra.mxu0 %v570
  %v1317 = vpop.f32.mrf.mxu0
  %v1318 = vadd.f32 %v1029, %v1317
  %v1319 = vpop.f32.mrf.mxu0
  %v1320 = vpop.f32.mrf.mxu0
  %v1321 = vadd.f32 %v1032, %v1320
  %v1322 = vpop.f32.mrf.mxu0
  %1323 = vmatprep.mubr.bf16.mxu0 0
  %1324 = vmatmul.mubr.bf16.gmra.mxu0 %v573
  %v1325 = vpop.f32.mrf.mxu0
  %v1326 = vadd.f32 %v1037, %v1325
  %v1327 = vpop.f32.mrf.mxu0
  %v1328 = vpop.f32.mrf.mxu0
  %v1329 = vadd.f32 %v1040, %v1328
  %v1330 = vpop.f32.mrf.mxu0
  %1331 = vmatprep.mubr.bf16.mxu0 0
  %1332 = vmatmul.mubr.bf16.gmra.mxu0 %v576
  %v1333 = vpop.f32.mrf.mxu0
  %v1334 = vadd.f32 %v1045, %v1333
  %v1335 = vpop.f32.mrf.mxu0
  %v1336 = vpop.f32.mrf.mxu0
  %v1337 = vadd.f32 %v1048, %v1336
  %v1338 = vpop.f32.mrf.mxu0
  %1339 = vmatprep.mubr.bf16.mxu0 0
  %1340 = vmatmul.mubr.bf16.gmra.mxu0 %v579
  %v1341 = vpop.f32.mrf.mxu0
  %v1342 = vadd.f32 %v1053, %v1341
  %v1343 = vpop.f32.mrf.mxu0
  %v1344 = vpop.f32.mrf.mxu0
  %v1345 = vadd.f32 %v1056, %v1344
  %v1346 = vpop.f32.mrf.mxu0
  %1347 = vmatprep.mubr.bf16.mxu0 0
  %1348 = vmatmul.mubr.bf16.gmra.mxu0 %v582
  %v1349 = vpop.f32.mrf.mxu0
  %v1350 = vadd.f32 %v1061, %v1349
  %v1351 = vpop.f32.mrf.mxu0
  %v1352 = vpop.f32.mrf.mxu0
  %v1353 = vadd.f32 %v1064, %v1352
  %v1354 = vpop.f32.mrf.mxu0
  %1355 = vmatprep.mubr.bf16.mxu0 0
  %1356 = vmatmul.mubr.bf16.gmra.mxu0 %v585
  %v1357 = vpop.f32.mrf.mxu0
  %v1358 = vadd.f32 %v1069, %v1357
  %v1359 = vpop.f32.mrf.mxu0
  %v1360 = vpop.f32.mrf.mxu0
  %v1361 = vadd.f32 %v1072, %v1360
  %v1362 = vpop.f32.mrf.mxu0
  %1363 = vmatprep.mubr.bf16.mxu0 0
  %1364 = vmatmul.mubr.bf16.gmra.mxu0 %v588
  %v1365 = vpop.f32.mrf.mxu0
  %v1366 = vadd.f32 %v1077, %v1365
  %v1367 = vpop.f32.mrf.mxu0
  %v1368 = vpop.f32.mrf.mxu0
  %v1369 = vadd.f32 %v1080, %v1368
  %v1370 = vpop.f32.mrf.mxu0
  %1371 = vmatprep.mubr.bf16.mxu0 0
  %1372 = vmatmul.mubr.bf16.gmra.mxu0 %v591
  %v1373 = vpop.f32.mrf.mxu0
  %v1374 = vadd.f32 %v1085, %v1373
  %v1375 = vpop.f32.mrf.mxu0
  %v1376 = vpop.f32.mrf.mxu0
  %v1377 = vadd.f32 %v1088, %v1376
  %v1378 = vpop.f32.mrf.mxu0
  %1379 = vmatprep.mubr.bf16.mxu0 0
  %1380 = vmatmul.mubr.bf16.gmra.mxu0 %v594
  %v1381 = vpop.f32.mrf.mxu0
  %v1382 = vadd.f32 %v1093, %v1381
  %v1383 = vpop.f32.mrf.mxu0
  %v1384 = vpop.f32.mrf.mxu0
  %v1385 = vadd.f32 %v1096, %v1384
  %v1386 = vpop.f32.mrf.mxu0
  %1387 = vmatprep.mubr.bf16.mxu0 0
  %1388 = vmatmul.mubr.bf16.gmra.mxu0 %v597
  %v1389 = vpop.f32.mrf.mxu0
  %v1390 = vadd.f32 %v1101, %v1389
  %v1391 = vpop.f32.mrf.mxu0
  %v1392 = vpop.f32.mrf.mxu0
  %v1393 = vadd.f32 %v1104, %v1392
  %v1394 = vpop.f32.mrf.mxu0
  %1395 = vmatprep.mubr.bf16.mxu0 0
  %1396 = vmatmul.mubr.bf16.gmra.mxu0 %v600
  %v1397 = vpop.f32.mrf.mxu0
  %v1398 = vadd.f32 %v1109, %v1397
  %v1399 = vpop.f32.mrf.mxu0
  %v1400 = vpop.f32.mrf.mxu0
  %v1401 = vadd.f32 %v1112, %v1400
  %v1402 = vpop.f32.mrf.mxu0
  %1403 = vmatprep.mubr.bf16.mxu0 0
  %1404 = vmatmul.mubr.bf16.gmra.mxu0 %v603
  %v1405 = vpop.f32.mrf.mxu0
  %v1406 = vadd.f32 %v1117, %v1405
  %v1407 = vpop.f32.mrf.mxu0
  %v1408 = vpop.f32.mrf.mxu0
  %v1409 = vadd.f32 %v1120, %v1408
  %v1410 = vpop.f32.mrf.mxu0
  %1411 = vmatprep.mubr.bf16.mxu0 0
  %1412 = vmatmul.mubr.bf16.gmra.mxu0 %v606
  %v1413 = vpop.f32.mrf.mxu0
  %v1414 = vadd.f32 %v1125, %v1413
  %v1415 = vpop.f32.mrf.mxu0
  %v1416 = vpop.f32.mrf.mxu0
  %v1417 = vadd.f32 %v1128, %v1416
  %v1418 = vpop.f32.mrf.mxu0
  %1419 = vmatprep.mubr.bf16.mxu0 0
  %1420 = vmatmul.mubr.bf16.gmra.mxu0 %v609
  %v1421 = vpop.f32.mrf.mxu0
  %v1422 = vadd.f32 %v1133, %v1421
  %v1423 = vpop.f32.mrf.mxu0
  %v1424 = vpop.f32.mrf.mxu0
  %v1425 = vadd.f32 %v1136, %v1424
  %v1426 = vpop.f32.mrf.mxu0
  %1427 = vdwg.mxu0
  %v1428 = vld [vmem:[%s2] sm:$0xff]
  %v1429 = vld [vmem:[%s2 + $0x8] sm:$0xff]
  %v1430 = vld [vmem:[%s2 + $0x10] sm:$0xff]
  %v1431 = vld [vmem:[%s2 + $0x18] sm:$0xff]
  %v1432 = vld [vmem:[%s2 + $0x20] sm:$0xff]
  %v1433 = vld [vmem:[%s2 + $0x28] sm:$0xff]
  %v1434 = vld [vmem:[%s2 + $0x30] sm:$0xff]
  %v1435 = vld [vmem:[%s2 + $0x38] sm:$0xff]
  %v1436 = vld [vmem:[%s2 + $0x40] sm:$0xff]
  %v1437 = vld [vmem:[%s2 + $0x48] sm:$0xff]
  %v1438 = vld [vmem:[%s2 + $0x50] sm:$0xff]
  %v1439 = vld [vmem:[%s2 + $0x58] sm:$0xff]
  %v1440 = vld [vmem:[%s2 + $0x60] sm:$0xff]
  %v1441 = vld [vmem:[%s2 + $0x68] sm:$0xff]
  %v1442 = vld [vmem:[%s2 + $0x70] sm:$0xff]
  %v1443 = vld [vmem:[%s2 + $0x78] sm:$0xff]
  %v1444 = vld [vmem:[%s2 + $0x80] sm:$0xff]
  %v1445 = vld [vmem:[%s2 + $0x88] sm:$0xff]
  %v1446 = vld [vmem:[%s2 + $0x90] sm:$0xff]
  %v1447 = vld [vmem:[%s2 + $0x98] sm:$0xff]
  %v1448 = vld [vmem:[%s2 + $0xa0] sm:$0xff]
  %v1449 = vld [vmem:[%s2 + $0xa8] sm:$0xff]
  %v1450 = vld [vmem:[%s2 + $0xb0] sm:$0xff]
  %v1451 = vld [vmem:[%s2 + $0xb8] sm:$0xff]
  %v1452 = vld [vmem:[%s2 + $0xc0] sm:$0xff]
  %v1453 = vld [vmem:[%s2 + $0xc8] sm:$0xff]
  %v1454 = vld [vmem:[%s2 + $0xd0] sm:$0xff]
  %v1455 = vld [vmem:[%s2 + $0xd8] sm:$0xff]
  %v1456 = vld [vmem:[%s2 + $0xe0] sm:$0xff]
  %v1457 = vld [vmem:[%s2 + $0xe8] sm:$0xff]
  %v1458 = vld [vmem:[%s2 + $0xf0] sm:$0xff]
  %v1459 = vld [vmem:[%s2 + $0xf8] sm:$0xff]
  %v1460 = vld [vmem:[%s2 + $0x100] sm:$0xff]
  %v1461 = vld [vmem:[%s2 + $0x108] sm:$0xff]
  %v1462 = vld [vmem:[%s2 + $0x110] sm:$0xff]
  %v1463 = vld [vmem:[%s2 + $0x118] sm:$0xff]
  %v1464 = vld [vmem:[%s2 + $0x120] sm:$0xff]
  %v1465 = vld [vmem:[%s2 + $0x128] sm:$0xff]
  %v1466 = vld [vmem:[%s2 + $0x130] sm:$0xff]
  %v1467 = vld [vmem:[%s2 + $0x138] sm:$0xff]
  %v1468 = vld [vmem:[%s2 + $0x140] sm:$0xff]
  %v1469 = vld [vmem:[%s2 + $0x148] sm:$0xff]
  %v1470 = vld [vmem:[%s2 + $0x150] sm:$0xff]
  %v1471 = vld [vmem:[%s2 + $0x158] sm:$0xff]
  %v1472 = vld [vmem:[%s2 + $0x160] sm:$0xff]
  %v1473 = vld [vmem:[%s2 + $0x168] sm:$0xff]
  %v1474 = vld [vmem:[%s2 + $0x170] sm:$0xff]
  %v1475 = vld [vmem:[%s2 + $0x178] sm:$0xff]
  %v1476 = vld [vmem:[%s2 + $0x180] sm:$0xff]
  %v1477 = vld [vmem:[%s2 + $0x188] sm:$0xff]
  %v1478 = vld [vmem:[%s2 + $0x190] sm:$0xff]
  %v1479 = vld [vmem:[%s2 + $0x198] sm:$0xff]
  %v1480 = vld [vmem:[%s2 + $0x1a0] sm:$0xff]
  %v1481 = vld [vmem:[%s2 + $0x1a8] sm:$0xff]
  %v1482 = vld [vmem:[%s2 + $0x1b0] sm:$0xff]
  %v1483 = vld [vmem:[%s2 + $0x1b8] sm:$0xff]
  %v1484 = vld [vmem:[%s2 + $0x1c0] sm:$0xff]
  %v1485 = vld [vmem:[%s2 + $0x1c8] sm:$0xff]
  %v1486 = vld [vmem:[%s2 + $0x1d0] sm:$0xff]
  %v1487 = vld [vmem:[%s2 + $0x1d8] sm:$0xff]
  %v1488 = vld [vmem:[%s2 + $0x1e0] sm:$0xff]
  %v1489 = vld [vmem:[%s2 + $0x1e8] sm:$0xff]
  %v1490 = vld [vmem:[%s2 + $0x1f0] sm:$0xff]
  %v1491 = vld [vmem:[%s2 + $0x1f8] sm:$0xff]
  %v1492 = vld [vmem:[%s3] sm:$0xff]
  %v1493 = vld [vmem:[%s3 + $0x8] sm:$0xff]
  %v1494 = vld [vmem:[%s3 + $0x10] sm:$0xff]
  %v1495 = vld [vmem:[%s3 + $0x18] sm:$0xff]
  %v1496 = vld [vmem:[%s3 + $0x20] sm:$0xff]
  %v1497 = vld [vmem:[%s3 + $0x28] sm:$0xff]
  %v1498 = vld [vmem:[%s3 + $0x30] sm:$0xff]
  %v1499 = vld [vmem:[%s3 + $0x38] sm:$0xff]
  %v1500 = vld [vmem:[%s3 + $0x40] sm:$0xff]
  %v1501 = vld [vmem:[%s3 + $0x48] sm:$0xff]
  %v1502 = vld [vmem:[%s3 + $0x50] sm:$0xff]
  %v1503 = vld [vmem:[%s3 + $0x58] sm:$0xff]
  %v1504 = vld [vmem:[%s3 + $0x60] sm:$0xff]
  %v1505 = vld [vmem:[%s3 + $0x68] sm:$0xff]
  %v1506 = vld [vmem:[%s3 + $0x70] sm:$0xff]
  %v1507 = vld [vmem:[%s3 + $0x78] sm:$0xff]
  %v1508 = vld [vmem:[%s3 + $0x80] sm:$0xff]
  %v1509 = vld [vmem:[%s3 + $0x88] sm:$0xff]
  %v1510 = vld [vmem:[%s3 + $0x90] sm:$0xff]
  %v1511 = vld [vmem:[%s3 + $0x98] sm:$0xff]
  %v1512 = vld [vmem:[%s3 + $0xa0] sm:$0xff]
  %v1513 = vld [vmem:[%s3 + $0xa8] sm:$0xff]
  %v1514 = vld [vmem:[%s3 + $0xb0] sm:$0xff]
  %v1515 = vld [vmem:[%s3 + $0xb8] sm:$0xff]
  %v1516 = vld [vmem:[%s3 + $0xc0] sm:$0xff]
  %v1517 = vld [vmem:[%s3 + $0xc8] sm:$0xff]
  %v1518 = vld [vmem:[%s3 + $0xd0] sm:$0xff]
  %v1519 = vld [vmem:[%s3 + $0xd8] sm:$0xff]
  %v1520 = vld [vmem:[%s3 + $0xe0] sm:$0xff]
  %v1521 = vld [vmem:[%s3 + $0xe8] sm:$0xff]
  %v1522 = vld [vmem:[%s3 + $0xf0] sm:$0xff]
  %v1523 = vld [vmem:[%s3 + $0xf8] sm:$0xff]
  %v1524 = vld [vmem:[%s3 + $0x100] sm:$0xff]
  %v1525 = vld [vmem:[%s3 + $0x108] sm:$0xff]
  %v1526 = vld [vmem:[%s3 + $0x110] sm:$0xff]
  %v1527 = vld [vmem:[%s3 + $0x118] sm:$0xff]
  %v1528 = vld [vmem:[%s3 + $0x120] sm:$0xff]
  %v1529 = vld [vmem:[%s3 + $0x128] sm:$0xff]
  %v1530 = vld [vmem:[%s3 + $0x130] sm:$0xff]
  %v1531 = vld [vmem:[%s3 + $0x138] sm:$0xff]
  %v1532 = vld [vmem:[%s3 + $0x140] sm:$0xff]
  %v1533 = vld [vmem:[%s3 + $0x148] sm:$0xff]
  %v1534 = vld [vmem:[%s3 + $0x150] sm:$0xff]
  %v1535 = vld [vmem:[%s3 + $0x158] sm:$0xff]
  %v1536 = vld [vmem:[%s3 + $0x160] sm:$0xff]
  %v1537 = vld [vmem:[%s3 + $0x168] sm:$0xff]
  %v1538 = vld [vmem:[%s3 + $0x170] sm:$0xff]
  %v1539 = vld [vmem:[%s3 + $0x178] sm:$0xff]
  %v1540 = vld [vmem:[%s3 + $0x180] sm:$0xff]
  %v1541 = vld [vmem:[%s3 + $0x188] sm:$0xff]
  %v1542 = vld [vmem:[%s3 + $0x190] sm:$0xff]
  %v1543 = vld [vmem:[%s3 + $0x198] sm:$0xff]
  %v1544 = vld [vmem:[%s3 + $0x1a0] sm:$0xff]
  %v1545 = vld [vmem:[%s3 + $0x1a8] sm:$0xff]
  %v1546 = vld [vmem:[%s3 + $0x1b0] sm:$0xff]
  %v1547 = vld [vmem:[%s3 + $0x1b8] sm:$0xff]
  %v1548 = vld [vmem:[%s3 + $0x1c0] sm:$0xff]
  %v1549 = vld [vmem:[%s3 + $0x1c8] sm:$0xff]
  %v1550 = vld [vmem:[%s3 + $0x1d0] sm:$0xff]
  %v1551 = vld [vmem:[%s3 + $0x1d8] sm:$0xff]
  %v1552 = vld [vmem:[%s3 + $0x1e0] sm:$0xff]
  %v1553 = vld [vmem:[%s3 + $0x1e8] sm:$0xff]
  %v1554 = vld [vmem:[%s3 + $0x1f0] sm:$0xff]
  %v1555 = vld [vmem:[%s3 + $0x1f8] sm:$0xff]
  %v1556 = vmul.f32 %v1428, %v1492
  %v1557 = vmul.f32 %v1429, %v1493
  %v1558 = vmul.f32 %v1430, %v1494
  %v1559 = vmul.f32 %v1431, %v1495
  %v1560 = vmul.f32 %v1432, %v1496
  %v1561 = vmul.f32 %v1433, %v1497
  %v1562 = vmul.f32 %v1434, %v1498
  %v1563 = vmul.f32 %v1435, %v1499
  %v1564 = vmul.f32 %v1436, %v1500
  %v1565 = vmul.f32 %v1437, %v1501
  %v1566 = vmul.f32 %v1438, %v1502
  %v1567 = vmul.f32 %v1439, %v1503
  %v1568 = vmul.f32 %v1440, %v1504
  %v1569 = vmul.f32 %v1441, %v1505
  %v1570 = vmul.f32 %v1442, %v1506
  %v1571 = vmul.f32 %v1443, %v1507
  %v1572 = vmul.f32 %v1444, %v1508
  %v1573 = vmul.f32 %v1445, %v1509
  %v1574 = vmul.f32 %v1446, %v1510
  %v1575 = vmul.f32 %v1447, %v1511
  %v1576 = vmul.f32 %v1448, %v1512
  %v1577 = vmul.f32 %v1449, %v1513
  %v1578 = vmul.f32 %v1450, %v1514
  %v1579 = vmul.f32 %v1451, %v1515
  %v1580 = vmul.f32 %v1452, %v1516
  %v1581 = vmul.f32 %v1453, %v1517
  %v1582 = vmul.f32 %v1454, %v1518
  %v1583 = vmul.f32 %v1455, %v1519
  %v1584 = vmul.f32 %v1456, %v1520
  %v1585 = vmul.f32 %v1457, %v1521
  %v1586 = vmul.f32 %v1458, %v1522
  %v1587 = vmul.f32 %v1459, %v1523
  %v1588 = vmul.f32 %v1460, %v1524
  %v1589 = vmul.f32 %v1461, %v1525
  %v1590 = vmul.f32 %v1462, %v1526
  %v1591 = vmul.f32 %v1463, %v1527
  %v1592 = vmul.f32 %v1464, %v1528
  %v1593 = vmul.f32 %v1465, %v1529
  %v1594 = vmul.f32 %v1466, %v1530
  %v1595 = vmul.f32 %v1467, %v1531
  %v1596 = vmul.f32 %v1468, %v1532
  %v1597 = vmul.f32 %v1469, %v1533
  %v1598 = vmul.f32 %v1470, %v1534
  %v1599 = vmul.f32 %v1471, %v1535
  %v1600 = vmul.f32 %v1472, %v1536
  %v1601 = vmul.f32 %v1473, %v1537
  %v1602 = vmul.f32 %v1474, %v1538
  %v1603 = vmul.f32 %v1475, %v1539
  %v1604 = vmul.f32 %v1476, %v1540
  %v1605 = vmul.f32 %v1477, %v1541
  %v1606 = vmul.f32 %v1478, %v1542
  %v1607 = vmul.f32 %v1479, %v1543
  %v1608 = vmul.f32 %v1480, %v1544
  %v1609 = vmul.f32 %v1481, %v1545
  %v1610 = vmul.f32 %v1482, %v1546
  %v1611 = vmul.f32 %v1483, %v1547
  %v1612 = vmul.f32 %v1484, %v1548
  %v1613 = vmul.f32 %v1485, %v1549
  %v1614 = vmul.f32 %v1486, %v1550
  %v1615 = vmul.f32 %v1487, %v1551
  %v1616 = vmul.f32 %v1488, %v1552
  %v1617 = vmul.f32 %v1489, %v1553
  %v1618 = vmul.f32 %v1490, %v1554
  %v1619 = vmul.f32 %v1491, %v1555
  %v1620 = vadd.f32 %v1174, %v1556
  %v1621 = vadd.f32 %v1177, %v1557
  %v1622 = vadd.f32 %v1182, %v1558
  %v1623 = vadd.f32 %v1185, %v1559
  %v1624 = vadd.f32 %v1190, %v1560
  %v1625 = vadd.f32 %v1193, %v1561
  %v1626 = vadd.f32 %v1198, %v1562
  %v1627 = vadd.f32 %v1201, %v1563
  %v1628 = vadd.f32 %v1206, %v1564
  %v1629 = vadd.f32 %v1209, %v1565
  %v1630 = vadd.f32 %v1214, %v1566
  %v1631 = vadd.f32 %v1217, %v1567
  %v1632 = vadd.f32 %v1222, %v1568
  %v1633 = vadd.f32 %v1225, %v1569
  %v1634 = vadd.f32 %v1230, %v1570
  %v1635 = vadd.f32 %v1233, %v1571
  %v1636 = vadd.f32 %v1238, %v1572
  %v1637 = vadd.f32 %v1241, %v1573
  %v1638 = vadd.f32 %v1246, %v1574
  %v1639 = vadd.f32 %v1249, %v1575
  %v1640 = vadd.f32 %v1254, %v1576
  %v1641 = vadd.f32 %v1257, %v1577
  %v1642 = vadd.f32 %v1262, %v1578
  %v1643 = vadd.f32 %v1265, %v1579
  %v1644 = vadd.f32 %v1270, %v1580
  %v1645 = vadd.f32 %v1273, %v1581
  %v1646 = vadd.f32 %v1278, %v1582
  %v1647 = vadd.f32 %v1281, %v1583
  %v1648 = vadd.f32 %v1286, %v1584
  %v1649 = vadd.f32 %v1289, %v1585
  %v1650 = vadd.f32 %v1294, %v1586
  %v1651 = vadd.f32 %v1297, %v1587
  %v1652 = vadd.f32 %v1302, %v1588
  %v1653 = vadd.f32 %v1305, %v1589
  %v1654 = vadd.f32 %v1310, %v1590
  %v1655 = vadd.f32 %v1313, %v1591
  %v1656 = vadd.f32 %v1318, %v1592
  %v1657 = vadd.f32 %v1321, %v1593
  %v1658 = vadd.f32 %v1326, %v1594
  %v1659 = vadd.f32 %v1329, %v1595
  %v1660 = vadd.f32 %v1334, %v1596
  %v1661 = vadd.f32 %v1337, %v1597
  %v1662 = vadd.f32 %v1342, %v1598
  %v1663 = vadd.f32 %v1345, %v1599
  %v1664 = vadd.f32 %v1350, %v1600
  %v1665 = vadd.f32 %v1353, %v1601
  %v1666 = vadd.f32 %v1358, %v1602
  %v1667 = vadd.f32 %v1361, %v1603
  %v1668 = vadd.f32 %v1366, %v1604
  %v1669 = vadd.f32 %v1369, %v1605
  %v1670 = vadd.f32 %v1374, %v1606
  %v1671 = vadd.f32 %v1377, %v1607
  %v1672 = vadd.f32 %v1382, %v1608
  %v1673 = vadd.f32 %v1385, %v1609
  %v1674 = vadd.f32 %v1390, %v1610
  %v1675 = vadd.f32 %v1393, %v1611
  %v1676 = vadd.f32 %v1398, %v1612
  %v1677 = vadd.f32 %v1401, %v1613
  %v1678 = vadd.f32 %v1406, %v1614
  %v1679 = vadd.f32 %v1409, %v1615
  %v1680 = vadd.f32 %v1414, %v1616
  %v1681 = vadd.f32 %v1417, %v1617
  %v1682 = vadd.f32 %v1422, %v1618
  %v1683 = vadd.f32 %v1425, %v1619
  %v1684 = vxor.u32 %v1620, 2147483648
  %v1685 = vxor.u32 %v1621, 2147483648
  %v1686 = vxor.u32 %v1622, 2147483648
  %v1687 = vxor.u32 %v1623, 2147483648
  %v1688 = vxor.u32 %v1624, 2147483648
  %v1689 = vxor.u32 %v1625, 2147483648
  %v1690 = vxor.u32 %v1626, 2147483648
  %v1691 = vxor.u32 %v1627, 2147483648
  %v1692 = vxor.u32 %v1628, 2147483648
  %v1693 = vxor.u32 %v1629, 2147483648
  %v1694 = vxor.u32 %v1630, 2147483648
  %v1695 = vxor.u32 %v1631, 2147483648
  %v1696 = vxor.u32 %v1632, 2147483648
  %v1697 = vxor.u32 %v1633, 2147483648
  %v1698 = vxor.u32 %v1634, 2147483648
  %v1699 = vxor.u32 %v1635, 2147483648
  %v1700 = vxor.u32 %v1636, 2147483648
  %v1701 = vxor.u32 %v1637, 2147483648
  %v1702 = vxor.u32 %v1638, 2147483648
  %v1703 = vxor.u32 %v1639, 2147483648
  %v1704 = vxor.u32 %v1640, 2147483648
  %v1705 = vxor.u32 %v1641, 2147483648
  %v1706 = vxor.u32 %v1642, 2147483648
  %v1707 = vxor.u32 %v1643, 2147483648
  %v1708 = vxor.u32 %v1644, 2147483648
  %v1709 = vxor.u32 %v1645, 2147483648
  %v1710 = vxor.u32 %v1646, 2147483648
  %v1711 = vxor.u32 %v1647, 2147483648
  %v1712 = vxor.u32 %v1648, 2147483648
  %v1713 = vxor.u32 %v1649, 2147483648
  %v1714 = vxor.u32 %v1650, 2147483648
  %v1715 = vxor.u32 %v1651, 2147483648
  %v1716 = vxor.u32 %v1652, 2147483648
  %v1717 = vxor.u32 %v1653, 2147483648
  %v1718 = vxor.u32 %v1654, 2147483648
  %v1719 = vxor.u32 %v1655, 2147483648
  %v1720 = vxor.u32 %v1656, 2147483648
  %v1721 = vxor.u32 %v1657, 2147483648
  %v1722 = vxor.u32 %v1658, 2147483648
  %v1723 = vxor.u32 %v1659, 2147483648
  %v1724 = vxor.u32 %v1660, 2147483648
  %v1725 = vxor.u32 %v1661, 2147483648
  %v1726 = vxor.u32 %v1662, 2147483648
  %v1727 = vxor.u32 %v1663, 2147483648
  %v1728 = vxor.u32 %v1664, 2147483648
  %v1729 = vxor.u32 %v1665, 2147483648
  %v1730 = vxor.u32 %v1666, 2147483648
  %v1731 = vxor.u32 %v1667, 2147483648
  %v1732 = vxor.u32 %v1668, 2147483648
  %v1733 = vxor.u32 %v1669, 2147483648
  %v1734 = vxor.u32 %v1670, 2147483648
  %v1735 = vxor.u32 %v1671, 2147483648
  %v1736 = vxor.u32 %v1672, 2147483648
  %v1737 = vxor.u32 %v1673, 2147483648
  %v1738 = vxor.u32 %v1674, 2147483648
  %v1739 = vxor.u32 %v1675, 2147483648
  %v1740 = vxor.u32 %v1676, 2147483648
  %v1741 = vxor.u32 %v1677, 2147483648
  %v1742 = vxor.u32 %v1678, 2147483648
  %v1743 = vxor.u32 %v1679, 2147483648
  %v1744 = vxor.u32 %v1680, 2147483648
  %v1745 = vxor.u32 %v1681, 2147483648
  %v1746 = vxor.u32 %v1682, 2147483648
  %v1747 = vxor.u32 %v1683, 2147483648
  %v1748 = vmul.f32 %v1684, 1.442695
  %v1749 = vpow.pop %v1748
  %v1750 = vmul.f32 %v1685, 1.442695
  %v1751 = vpow.pop %v1750
  %v1752 = vmul.f32 %v1686, 1.442695
  %v1753 = vpow.pop %v1752
  %v1754 = vmul.f32 %v1687, 1.442695
  %v1755 = vpow.pop %v1754
  %v1756 = vmul.f32 %v1688, 1.442695
  %v1757 = vpow.pop %v1756
  %v1758 = vmul.f32 %v1689, 1.442695
  %v1759 = vpow.pop %v1758
  %v1760 = vmul.f32 %v1690, 1.442695
  %v1761 = vpow.pop %v1760
  %v1762 = vmul.f32 %v1691, 1.442695
  %v1763 = vpow.pop %v1762
  %v1764 = vmul.f32 %v1692, 1.442695
  %v1765 = vpow.pop %v1764
  %v1766 = vmul.f32 %v1693, 1.442695
  %v1767 = vpow.pop %v1766
  %v1768 = vmul.f32 %v1694, 1.442695
  %v1769 = vpow.pop %v1768
  %v1770 = vmul.f32 %v1695, 1.442695
  %v1771 = vpow.pop %v1770
  %v1772 = vmul.f32 %v1696, 1.442695
  %v1773 = vpow.pop %v1772
  %v1774 = vmul.f32 %v1697, 1.442695
  %v1775 = vpow.pop %v1774
  %v1776 = vmul.f32 %v1698, 1.442695
  %v1777 = vpow.pop %v1776
  %v1778 = vmul.f32 %v1699, 1.442695
  %v1779 = vpow.pop %v1778
  %v1780 = vmul.f32 %v1700, 1.442695
  %v1781 = vpow.pop %v1780
  %v1782 = vmul.f32 %v1701, 1.442695
  %v1783 = vpow.pop %v1782
  %v1784 = vmul.f32 %v1702, 1.442695
  %v1785 = vpow.pop %v1784
  %v1786 = vmul.f32 %v1703, 1.442695
  %v1787 = vpow.pop %v1786
  %v1788 = vmul.f32 %v1704, 1.442695
  %v1789 = vpow.pop %v1788
  %v1790 = vmul.f32 %v1705, 1.442695
  %v1791 = vpow.pop %v1790
  %v1792 = vmul.f32 %v1706, 1.442695
  %v1793 = vpow.pop %v1792
  %v1794 = vmul.f32 %v1707, 1.442695
  %v1795 = vpow.pop %v1794
  %v1796 = vmul.f32 %v1708, 1.442695
  %v1797 = vpow.pop %v1796
  %v1798 = vmul.f32 %v1709, 1.442695
  %v1799 = vpow.pop %v1798
  %v1800 = vmul.f32 %v1710, 1.442695
  %v1801 = vpow.pop %v1800
  %v1802 = vmul.f32 %v1711, 1.442695
  %v1803 = vpow.pop %v1802
  %v1804 = vmul.f32 %v1712, 1.442695
  %v1805 = vpow.pop %v1804
  %v1806 = vmul.f32 %v1713, 1.442695
  %v1807 = vpow.pop %v1806
  %v1808 = vmul.f32 %v1714, 1.442695
  %v1809 = vpow.pop %v1808
  %v1810 = vmul.f32 %v1715, 1.442695
  %v1811 = vpow.pop %v1810
  %v1812 = vmul.f32 %v1716, 1.442695
  %v1813 = vpow.pop %v1812
  %v1814 = vmul.f32 %v1717, 1.442695
  %v1815 = vpow.pop %v1814
  %v1816 = vmul.f32 %v1718, 1.442695
  %v1817 = vpow.pop %v1816
  %v1818 = vmul.f32 %v1719, 1.442695
  %v1819 = vpow.pop %v1818
  %v1820 = vmul.f32 %v1720, 1.442695
  %v1821 = vpow.pop %v1820
  %v1822 = vmul.f32 %v1721, 1.442695
  %v1823 = vpow.pop %v1822
  %v1824 = vmul.f32 %v1722, 1.442695
  %v1825 = vpow.pop %v1824
  %v1826 = vmul.f32 %v1723, 1.442695
  %v1827 = vpow.pop %v1826
  %v1828 = vmul.f32 %v1724, 1.442695
  %v1829 = vpow.pop %v1828
  %v1830 = vmul.f32 %v1725, 1.442695
  %v1831 = vpow.pop %v1830
  %v1832 = vmul.f32 %v1726, 1.442695
  %v1833 = vpow.pop %v1832
  %v1834 = vmul.f32 %v1727, 1.442695
  %v1835 = vpow.pop %v1834
  %v1836 = vmul.f32 %v1728, 1.442695
  %v1837 = vpow.pop %v1836
  %v1838 = vmul.f32 %v1729, 1.442695
  %v1839 = vpow.pop %v1838
  %v1840 = vmul.f32 %v1730, 1.442695
  %v1841 = vpow.pop %v1840
  %v1842 = vmul.f32 %v1731, 1.442695
  %v1843 = vpow.pop %v1842
  %v1844 = vmul.f32 %v1732, 1.442695
  %v1845 = vpow.pop %v1844
  %v1846 = vmul.f32 %v1733, 1.442695
  %v1847 = vpow.pop %v1846
  %v1848 = vmul.f32 %v1734, 1.442695
  %v1849 = vpow.pop %v1848
  %v1850 = vmul.f32 %v1735, 1.442695
  %v1851 = vpow.pop %v1850
  %v1852 = vmul.f32 %v1736, 1.442695
  %v1853 = vpow.pop %v1852
  %v1854 = vmul.f32 %v1737, 1.442695
  %v1855 = vpow.pop %v1854
  %v1856 = vmul.f32 %v1738, 1.442695
  %v1857 = vpow.pop %v1856
  %v1858 = vmul.f32 %v1739, 1.442695
  %v1859 = vpow.pop %v1858
  %v1860 = vmul.f32 %v1740, 1.442695
  %v1861 = vpow.pop %v1860
  %v1862 = vmul.f32 %v1741, 1.442695
  %v1863 = vpow.pop %v1862
  %v1864 = vmul.f32 %v1742, 1.442695
  %v1865 = vpow.pop %v1864
  %v1866 = vmul.f32 %v1743, 1.442695
  %v1867 = vpow.pop %v1866
  %v1868 = vmul.f32 %v1744, 1.442695
  %v1869 = vpow.pop %v1868
  %v1870 = vmul.f32 %v1745, 1.442695
  %v1871 = vpow.pop %v1870
  %v1872 = vmul.f32 %v1746, 1.442695
  %v1873 = vpow.pop %v1872
  %v1874 = vmul.f32 %v1747, 1.442695
  %v1875 = vpow.pop %v1874
  %v1876 = vadd.f32 %v1749, 1.0
  %v1877 = vadd.f32 %v1751, 1.0
  %v1878 = vadd.f32 %v1753, 1.0
  %v1879 = vadd.f32 %v1755, 1.0
  %v1880 = vadd.f32 %v1757, 1.0
  %v1881 = vadd.f32 %v1759, 1.0
  %v1882 = vadd.f32 %v1761, 1.0
  %v1883 = vadd.f32 %v1763, 1.0
  %v1884 = vadd.f32 %v1765, 1.0
  %v1885 = vadd.f32 %v1767, 1.0
  %v1886 = vadd.f32 %v1769, 1.0
  %v1887 = vadd.f32 %v1771, 1.0
  %v1888 = vadd.f32 %v1773, 1.0
  %v1889 = vadd.f32 %v1775, 1.0
  %v1890 = vadd.f32 %v1777, 1.0
  %v1891 = vadd.f32 %v1779, 1.0
  %v1892 = vadd.f32 %v1781, 1.0
  %v1893 = vadd.f32 %v1783, 1.0
  %v1894 = vadd.f32 %v1785, 1.0
  %v1895 = vadd.f32 %v1787, 1.0
  %v1896 = vadd.f32 %v1789, 1.0
  %v1897 = vadd.f32 %v1791, 1.0
  %v1898 = vadd.f32 %v1793, 1.0
  %v1899 = vadd.f32 %v1795, 1.0
  %v1900 = vadd.f32 %v1797, 1.0
  %v1901 = vadd.f32 %v1799, 1.0
  %v1902 = vadd.f32 %v1801, 1.0
  %v1903 = vadd.f32 %v1803, 1.0
  %v1904 = vadd.f32 %v1805, 1.0
  %v1905 = vadd.f32 %v1807, 1.0
  %v1906 = vadd.f32 %v1809, 1.0
  %v1907 = vadd.f32 %v1811, 1.0
  %v1908 = vadd.f32 %v1813, 1.0
  %v1909 = vadd.f32 %v1815, 1.0
  %v1910 = vadd.f32 %v1817, 1.0
  %v1911 = vadd.f32 %v1819, 1.0
  %v1912 = vadd.f32 %v1821, 1.0
  %v1913 = vadd.f32 %v1823, 1.0
  %v1914 = vadd.f32 %v1825, 1.0
  %v1915 = vadd.f32 %v1827, 1.0
  %v1916 = vadd.f32 %v1829, 1.0
  %v1917 = vadd.f32 %v1831, 1.0
  %v1918 = vadd.f32 %v1833, 1.0
  %v1919 = vadd.f32 %v1835, 1.0
  %v1920 = vadd.f32 %v1837, 1.0
  %v1921 = vadd.f32 %v1839, 1.0
  %v1922 = vadd.f32 %v1841, 1.0
  %v1923 = vadd.f32 %v1843, 1.0
  %v1924 = vadd.f32 %v1845, 1.0
  %v1925 = vadd.f32 %v1847, 1.0
  %v1926 = vadd.f32 %v1849, 1.0
  %v1927 = vadd.f32 %v1851, 1.0
  %v1928 = vadd.f32 %v1853, 1.0
  %v1929 = vadd.f32 %v1855, 1.0
  %v1930 = vadd.f32 %v1857, 1.0
  %v1931 = vadd.f32 %v1859, 1.0
  %v1932 = vadd.f32 %v1861, 1.0
  %v1933 = vadd.f32 %v1863, 1.0
  %v1934 = vadd.f32 %v1865, 1.0
  %v1935 = vadd.f32 %v1867, 1.0
  %v1936 = vadd.f32 %v1869, 1.0
  %v1937 = vadd.f32 %v1871, 1.0
  %v1938 = vadd.f32 %v1873, 1.0
  %v1939 = vadd.f32 %v1875, 1.0
  %v1940 = vrcp.pop %v1876
  %v1941 = vmul.f32 1.0, %v1940
  %v1942 = vrcp.pop %v1877
  %v1943 = vmul.f32 1.0, %v1942
  %v1944 = vrcp.pop %v1878
  %v1945 = vmul.f32 1.0, %v1944
  %v1946 = vrcp.pop %v1879
  %v1947 = vmul.f32 1.0, %v1946
  %v1948 = vrcp.pop %v1880
  %v1949 = vmul.f32 1.0, %v1948
  %v1950 = vrcp.pop %v1881
  %v1951 = vmul.f32 1.0, %v1950
  %v1952 = vrcp.pop %v1882
  %v1953 = vmul.f32 1.0, %v1952
  %v1954 = vrcp.pop %v1883
  %v1955 = vmul.f32 1.0, %v1954
  %v1956 = vrcp.pop %v1884
  %v1957 = vmul.f32 1.0, %v1956
  %v1958 = vrcp.pop %v1885
  %v1959 = vmul.f32 1.0, %v1958
  %v1960 = vrcp.pop %v1886
  %v1961 = vmul.f32 1.0, %v1960
  %v1962 = vrcp.pop %v1887
  %v1963 = vmul.f32 1.0, %v1962
  %v1964 = vrcp.pop %v1888
  %v1965 = vmul.f32 1.0, %v1964
  %v1966 = vrcp.pop %v1889
  %v1967 = vmul.f32 1.0, %v1966
  %v1968 = vrcp.pop %v1890
  %v1969 = vmul.f32 1.0, %v1968
  %v1970 = vrcp.pop %v1891
  %v1971 = vmul.f32 1.0, %v1970
  %v1972 = vrcp.pop %v1892
  %v1973 = vmul.f32 1.0, %v1972
  %v1974 = vrcp.pop %v1893
  %v1975 = vmul.f32 1.0, %v1974
  %v1976 = vrcp.pop %v1894
  %v1977 = vmul.f32 1.0, %v1976
  %v1978 = vrcp.pop %v1895
  %v1979 = vmul.f32 1.0, %v1978
  %v1980 = vrcp.pop %v1896
  %v1981 = vmul.f32 1.0, %v1980
  %v1982 = vrcp.pop %v1897
  %v1983 = vmul.f32 1.0, %v1982
  %v1984 = vrcp.pop %v1898
  %v1985 = vmul.f32 1.0, %v1984
  %v1986 = vrcp.pop %v1899
  %v1987 = vmul.f32 1.0, %v1986
  %v1988 = vrcp.pop %v1900
  %v1989 = vmul.f32 1.0, %v1988
  %v1990 = vrcp.pop %v1901
  %v1991 = vmul.f32 1.0, %v1990
  %v1992 = vrcp.pop %v1902
  %v1993 = vmul.f32 1.0, %v1992
  %v1994 = vrcp.pop %v1903
  %v1995 = vmul.f32 1.0, %v1994
  %v1996 = vrcp.pop %v1904
  %v1997 = vmul.f32 1.0, %v1996
  %v1998 = vrcp.pop %v1905
  %v1999 = vmul.f32 1.0, %v1998
  %v2000 = vrcp.pop %v1906
  %v2001 = vmul.f32 1.0, %v2000
  %v2002 = vrcp.pop %v1907
  %v2003 = vmul.f32 1.0, %v2002
  %v2004 = vrcp.pop %v1908
  %v2005 = vmul.f32 1.0, %v2004
  %v2006 = vrcp.pop %v1909
  %v2007 = vmul.f32 1.0, %v2006
  %v2008 = vrcp.pop %v1910
  %v2009 = vmul.f32 1.0, %v2008
  %v2010 = vrcp.pop %v1911
  %v2011 = vmul.f32 1.0, %v2010
  %v2012 = vrcp.pop %v1912
  %v2013 = vmul.f32 1.0, %v2012
  %v2014 = vrcp.pop %v1913
  %v2015 = vmul.f32 1.0, %v2014
  %v2016 = vrcp.pop %v1914
  %v2017 = vmul.f32 1.0, %v2016
  %v2018 = vrcp.pop %v1915
  %v2019 = vmul.f32 1.0, %v2018
  %v2020 = vrcp.pop %v1916
  %v2021 = vmul.f32 1.0, %v2020
  %v2022 = vrcp.pop %v1917
  %v2023 = vmul.f32 1.0, %v2022
  %v2024 = vrcp.pop %v1918
  %v2025 = vmul.f32 1.0, %v2024
  %v2026 = vrcp.pop %v1919
  %v2027 = vmul.f32 1.0, %v2026
  %v2028 = vrcp.pop %v1920
  %v2029 = vmul.f32 1.0, %v2028
  %v2030 = vrcp.pop %v1921
  %v2031 = vmul.f32 1.0, %v2030
  %v2032 = vrcp.pop %v1922
  %v2033 = vmul.f32 1.0, %v2032
  %v2034 = vrcp.pop %v1923
  %v2035 = vmul.f32 1.0, %v2034
  %v2036 = vrcp.pop %v1924
  %v2037 = vmul.f32 1.0, %v2036
  %v2038 = vrcp.pop %v1925
  %v2039 = vmul.f32 1.0, %v2038
  %v2040 = vrcp.pop %v1926
  %v2041 = vmul.f32 1.0, %v2040
  %v2042 = vrcp.pop %v1927
  %v2043 = vmul.f32 1.0, %v2042
  %v2044 = vrcp.pop %v1928
  %v2045 = vmul.f32 1.0, %v2044
  %v2046 = vrcp.pop %v1929
  %v2047 = vmul.f32 1.0, %v2046
  %v2048 = vrcp.pop %v1930
  %v2049 = vmul.f32 1.0, %v2048
  %v2050 = vrcp.pop %v1931
  %v2051 = vmul.f32 1.0, %v2050
  %v2052 = vrcp.pop %v1932
  %v2053 = vmul.f32 1.0, %v2052
  %v2054 = vrcp.pop %v1933
  %v2055 = vmul.f32 1.0, %v2054
  %v2056 = vrcp.pop %v1934
  %v2057 = vmul.f32 1.0, %v2056
  %v2058 = vrcp.pop %v1935
  %v2059 = vmul.f32 1.0, %v2058
  %v2060 = vrcp.pop %v1936
  %v2061 = vmul.f32 1.0, %v2060
  %v2062 = vrcp.pop %v1937
  %v2063 = vmul.f32 1.0, %v2062
  %v2064 = vrcp.pop %v1938
  %v2065 = vmul.f32 1.0, %v2064
  %v2066 = vrcp.pop %v1939
  %v2067 = vmul.f32 1.0, %v2066
  %2132 = vrot.lane.b32.xlu0 %v1492, 96
  %v2133 = vpop.permute.xlu0 %2132
  %2134 = vrot.lane.b32.xlu0 %v1493, 96
  %v2135 = vpop.permute.xlu0 %2134
  %2136 = vrot.lane.b32.xlu0 %v1494, 96
  %v2137 = vpop.permute.xlu0 %2136
  %2138 = vrot.lane.b32.xlu0 %v1495, 96
  %v2139 = vpop.permute.xlu0 %2138
  %2140 = vrot.lane.b32.xlu0 %v1496, 96
  %v2141 = vpop.permute.xlu0 %2140
  %2142 = vrot.lane.b32.xlu0 %v1497, 96
  %v2143 = vpop.permute.xlu0 %2142
  %2144 = vrot.lane.b32.xlu0 %v1498, 96
  %v2145 = vpop.permute.xlu0 %2144
  %2146 = vrot.lane.b32.xlu0 %v1499, 96
  %v2147 = vpop.permute.xlu0 %2146
  %2148 = vrot.lane.b32.xlu0 %v1500, 96
  %v2149 = vpop.permute.xlu0 %2148
  %2150 = vrot.lane.b32.xlu0 %v1501, 96
  %v2151 = vpop.permute.xlu0 %2150
  %2152 = vrot.lane.b32.xlu0 %v1502, 96
  %v2153 = vpop.permute.xlu0 %2152
  %2154 = vrot.lane.b32.xlu0 %v1503, 96
  %v2155 = vpop.permute.xlu0 %2154
  %2156 = vrot.lane.b32.xlu0 %v1504, 96
  %v2157 = vpop.permute.xlu0 %2156
  %2158 = vrot.lane.b32.xlu0 %v1505, 96
  %v2159 = vpop.permute.xlu0 %2158
  %2160 = vrot.lane.b32.xlu0 %v1506, 96
  %v2161 = vpop.permute.xlu0 %2160
  %2162 = vrot.lane.b32.xlu0 %v1507, 96
  %v2163 = vpop.permute.xlu0 %2162
  %2164 = vrot.lane.b32.xlu0 %v1508, 96
  %v2165 = vpop.permute.xlu0 %2164
  %2166 = vrot.lane.b32.xlu0 %v1509, 96
  %v2167 = vpop.permute.xlu0 %2166
  %2168 = vrot.lane.b32.xlu0 %v1510, 96
  %v2169 = vpop.permute.xlu0 %2168
  %2170 = vrot.lane.b32.xlu0 %v1511, 96
  %v2171 = vpop.permute.xlu0 %2170
  %2172 = vrot.lane.b32.xlu0 %v1512, 96
  %v2173 = vpop.permute.xlu0 %2172
  %2174 = vrot.lane.b32.xlu0 %v1513, 96
  %v2175 = vpop.permute.xlu0 %2174
  %2176 = vrot.lane.b32.xlu0 %v1514, 96
  %v2177 = vpop.permute.xlu0 %2176
  %2178 = vrot.lane.b32.xlu0 %v1515, 96
  %v2179 = vpop.permute.xlu0 %2178
  %2180 = vrot.lane.b32.xlu0 %v1516, 96
  %v2181 = vpop.permute.xlu0 %2180
  %2182 = vrot.lane.b32.xlu0 %v1517, 96
  %v2183 = vpop.permute.xlu0 %2182
  %2184 = vrot.lane.b32.xlu0 %v1518, 96
  %v2185 = vpop.permute.xlu0 %2184
  %2186 = vrot.lane.b32.xlu0 %v1519, 96
  %v2187 = vpop.permute.xlu0 %2186
  %2188 = vrot.lane.b32.xlu0 %v1520, 96
  %v2189 = vpop.permute.xlu0 %2188
  %2190 = vrot.lane.b32.xlu0 %v1521, 96
  %v2191 = vpop.permute.xlu0 %2190
  %2192 = vrot.lane.b32.xlu0 %v1522, 96
  %v2193 = vpop.permute.xlu0 %2192
  %2194 = vrot.lane.b32.xlu0 %v1523, 96
  %v2195 = vpop.permute.xlu0 %2194
  %2196 = vrot.lane.b32.xlu0 %v1524, 96
  %v2197 = vpop.permute.xlu0 %2196
  %2198 = vrot.lane.b32.xlu0 %v1525, 96
  %v2199 = vpop.permute.xlu0 %2198
  %2200 = vrot.lane.b32.xlu0 %v1526, 96
  %v2201 = vpop.permute.xlu0 %2200
  %2202 = vrot.lane.b32.xlu0 %v1527, 96
  %v2203 = vpop.permute.xlu0 %2202
  %2204 = vrot.lane.b32.xlu0 %v1528, 96
  %v2205 = vpop.permute.xlu0 %2204
  %2206 = vrot.lane.b32.xlu0 %v1529, 96
  %v2207 = vpop.permute.xlu0 %2206
  %2208 = vrot.lane.b32.xlu0 %v1530, 96
  %v2209 = vpop.permute.xlu0 %2208
  %2210 = vrot.lane.b32.xlu0 %v1531, 96
  %v2211 = vpop.permute.xlu0 %2210
  %2212 = vrot.lane.b32.xlu0 %v1532, 96
  %v2213 = vpop.permute.xlu0 %2212
  %2214 = vrot.lane.b32.xlu0 %v1533, 96
  %v2215 = vpop.permute.xlu0 %2214
  %2216 = vrot.lane.b32.xlu0 %v1534, 96
  %v2217 = vpop.permute.xlu0 %2216
  %2218 = vrot.lane.b32.xlu0 %v1535, 96
  %v2219 = vpop.permute.xlu0 %2218
  %2220 = vrot.lane.b32.xlu0 %v1536, 96
  %v2221 = vpop.permute.xlu0 %2220
  %2222 = vrot.lane.b32.xlu0 %v1537, 96
  %v2223 = vpop.permute.xlu0 %2222
  %2224 = vrot.lane.b32.xlu0 %v1538, 96
  %v2225 = vpop.permute.xlu0 %2224
  %2226 = vrot.lane.b32.xlu0 %v1539, 96
  %v2227 = vpop.permute.xlu0 %2226
  %2228 = vrot.lane.b32.xlu0 %v1540, 96
  %v2229 = vpop.permute.xlu0 %2228
  %2230 = vrot.lane.b32.xlu0 %v1541, 96
  %v2231 = vpop.permute.xlu0 %2230
  %2232 = vrot.lane.b32.xlu0 %v1542, 96
  %v2233 = vpop.permute.xlu0 %2232
  %2234 = vrot.lane.b32.xlu0 %v1543, 96
  %v2235 = vpop.permute.xlu0 %2234
  %2236 = vrot.lane.b32.xlu0 %v1544, 96
  %v2237 = vpop.permute.xlu0 %2236
  %2238 = vrot.lane.b32.xlu0 %v1545, 96
  %v2239 = vpop.permute.xlu0 %2238
  %2240 = vrot.lane.b32.xlu0 %v1546, 96
  %v2241 = vpop.permute.xlu0 %2240
  %2242 = vrot.lane.b32.xlu0 %v1547, 96
  %v2243 = vpop.permute.xlu0 %2242
  %2244 = vrot.lane.b32.xlu0 %v1548, 96
  %v2245 = vpop.permute.xlu0 %2244
  %2246 = vrot.lane.b32.xlu0 %v1549, 96
  %v2247 = vpop.permute.xlu0 %2246
  %2248 = vrot.lane.b32.xlu0 %v1550, 96
  %v2249 = vpop.permute.xlu0 %2248
  %2250 = vrot.lane.b32.xlu0 %v1551, 96
  %v2251 = vpop.permute.xlu0 %2250
  %2252 = vrot.lane.b32.xlu0 %v1552, 96
  %v2253 = vpop.permute.xlu0 %2252
  %2254 = vrot.lane.b32.xlu0 %v1553, 96
  %v2255 = vpop.permute.xlu0 %2254
  %2256 = vrot.lane.b32.xlu0 %v1554, 96
  %v2257 = vpop.permute.xlu0 %2256
  %2258 = vrot.lane.b32.xlu0 %v1555, 96
  %v2259 = vpop.permute.xlu0 %2258
  %v2324 = vmul.f32 %v1428, %v2133
  %v2325 = vmul.f32 %v1429, %v2135
  %v2326 = vmul.f32 %v1430, %v2137
  %v2327 = vmul.f32 %v1431, %v2139
  %v2328 = vmul.f32 %v1432, %v2141
  %v2329 = vmul.f32 %v1433, %v2143
  %v2330 = vmul.f32 %v1434, %v2145
  %v2331 = vmul.f32 %v1435, %v2147
  %v2332 = vmul.f32 %v1436, %v2149
  %v2333 = vmul.f32 %v1437, %v2151
  %v2334 = vmul.f32 %v1438, %v2153
  %v2335 = vmul.f32 %v1439, %v2155
  %v2336 = vmul.f32 %v1440, %v2157
  %v2337 = vmul.f32 %v1441, %v2159
  %v2338 = vmul.f32 %v1442, %v2161
  %v2339 = vmul.f32 %v1443, %v2163
  %v2340 = vmul.f32 %v1444, %v2165
  %v2341 = vmul.f32 %v1445, %v2167
  %v2342 = vmul.f32 %v1446, %v2169
  %v2343 = vmul.f32 %v1447, %v2171
  %v2344 = vmul.f32 %v1448, %v2173
  %v2345 = vmul.f32 %v1449, %v2175
  %v2346 = vmul.f32 %v1450, %v2177
  %v2347 = vmul.f32 %v1451, %v2179
  %v2348 = vmul.f32 %v1452, %v2181
  %v2349 = vmul.f32 %v1453, %v2183
  %v2350 = vmul.f32 %v1454, %v2185
  %v2351 = vmul.f32 %v1455, %v2187
  %v2352 = vmul.f32 %v1456, %v2189
  %v2353 = vmul.f32 %v1457, %v2191
  %v2354 = vmul.f32 %v1458, %v2193
  %v2355 = vmul.f32 %v1459, %v2195
  %v2356 = vmul.f32 %v1460, %v2197
  %v2357 = vmul.f32 %v1461, %v2199
  %v2358 = vmul.f32 %v1462, %v2201
  %v2359 = vmul.f32 %v1463, %v2203
  %v2360 = vmul.f32 %v1464, %v2205
  %v2361 = vmul.f32 %v1465, %v2207
  %v2362 = vmul.f32 %v1466, %v2209
  %v2363 = vmul.f32 %v1467, %v2211
  %v2364 = vmul.f32 %v1468, %v2213
  %v2365 = vmul.f32 %v1469, %v2215
  %v2366 = vmul.f32 %v1470, %v2217
  %v2367 = vmul.f32 %v1471, %v2219
  %v2368 = vmul.f32 %v1472, %v2221
  %v2369 = vmul.f32 %v1473, %v2223
  %v2370 = vmul.f32 %v1474, %v2225
  %v2371 = vmul.f32 %v1475, %v2227
  %v2372 = vmul.f32 %v1476, %v2229
  %v2373 = vmul.f32 %v1477, %v2231
  %v2374 = vmul.f32 %v1478, %v2233
  %v2375 = vmul.f32 %v1479, %v2235
  %v2376 = vmul.f32 %v1480, %v2237
  %v2377 = vmul.f32 %v1481, %v2239
  %v2378 = vmul.f32 %v1482, %v2241
  %v2379 = vmul.f32 %v1483, %v2243
  %v2380 = vmul.f32 %v1484, %v2245
  %v2381 = vmul.f32 %v1485, %v2247
  %v2382 = vmul.f32 %v1486, %v2249
  %v2383 = vmul.f32 %v1487, %v2251
  %v2384 = vmul.f32 %v1488, %v2253
  %v2385 = vmul.f32 %v1489, %v2255
  %v2386 = vmul.f32 %v1490, %v2257
  %v2387 = vmul.f32 %v1491, %v2259
  %2452 = vrot.lane.b32.xlu0 %v2324, 32
  %v2453 = vpop.permute.xlu0 %2452
  %2454 = vrot.lane.b32.xlu0 %v2325, 32
  %v2455 = vpop.permute.xlu0 %2454
  %2456 = vrot.lane.b32.xlu0 %v2326, 32
  %v2457 = vpop.permute.xlu0 %2456
  %2458 = vrot.lane.b32.xlu0 %v2327, 32
  %v2459 = vpop.permute.xlu0 %2458
  %2460 = vrot.lane.b32.xlu0 %v2328, 32
  %v2461 = vpop.permute.xlu0 %2460
  %2462 = vrot.lane.b32.xlu0 %v2329, 32
  %v2463 = vpop.permute.xlu0 %2462
  %2464 = vrot.lane.b32.xlu0 %v2330, 32
  %v2465 = vpop.permute.xlu0 %2464
  %2466 = vrot.lane.b32.xlu0 %v2331, 32
  %v2467 = vpop.permute.xlu0 %2466
  %2468 = vrot.lane.b32.xlu0 %v2332, 32
  %v2469 = vpop.permute.xlu0 %2468
  %2470 = vrot.lane.b32.xlu0 %v2333, 32
  %v2471 = vpop.permute.xlu0 %2470
  %2472 = vrot.lane.b32.xlu0 %v2334, 32
  %v2473 = vpop.permute.xlu0 %2472
  %2474 = vrot.lane.b32.xlu0 %v2335, 32
  %v2475 = vpop.permute.xlu0 %2474
  %2476 = vrot.lane.b32.xlu0 %v2336, 32
  %v2477 = vpop.permute.xlu0 %2476
  %2478 = vrot.lane.b32.xlu0 %v2337, 32
  %v2479 = vpop.permute.xlu0 %2478
  %2480 = vrot.lane.b32.xlu0 %v2338, 32
  %v2481 = vpop.permute.xlu0 %2480
  %2482 = vrot.lane.b32.xlu0 %v2339, 32
  %v2483 = vpop.permute.xlu0 %2482
  %2484 = vrot.lane.b32.xlu0 %v2340, 32
  %v2485 = vpop.permute.xlu0 %2484
  %2486 = vrot.lane.b32.xlu0 %v2341, 32
  %v2487 = vpop.permute.xlu0 %2486
  %2488 = vrot.lane.b32.xlu0 %v2342, 32
  %v2489 = vpop.permute.xlu0 %2488
  %2490 = vrot.lane.b32.xlu0 %v2343, 32
  %v2491 = vpop.permute.xlu0 %2490
  %2492 = vrot.lane.b32.xlu0 %v2344, 32
  %v2493 = vpop.permute.xlu0 %2492
  %2494 = vrot.lane.b32.xlu0 %v2345, 32
  %v2495 = vpop.permute.xlu0 %2494
  %2496 = vrot.lane.b32.xlu0 %v2346, 32
  %v2497 = vpop.permute.xlu0 %2496
  %2498 = vrot.lane.b32.xlu0 %v2347, 32
  %v2499 = vpop.permute.xlu0 %2498
  %2500 = vrot.lane.b32.xlu0 %v2348, 32
  %v2501 = vpop.permute.xlu0 %2500
  %2502 = vrot.lane.b32.xlu0 %v2349, 32
  %v2503 = vpop.permute.xlu0 %2502
  %2504 = vrot.lane.b32.xlu0 %v2350, 32
  %v2505 = vpop.permute.xlu0 %2504
  %2506 = vrot.lane.b32.xlu0 %v2351, 32
  %v2507 = vpop.permute.xlu0 %2506
  %2508 = vrot.lane.b32.xlu0 %v2352, 32
  %v2509 = vpop.permute.xlu0 %2508
  %2510 = vrot.lane.b32.xlu0 %v2353, 32
  %v2511 = vpop.permute.xlu0 %2510
  %2512 = vrot.lane.b32.xlu0 %v2354, 32
  %v2513 = vpop.permute.xlu0 %2512
  %2514 = vrot.lane.b32.xlu0 %v2355, 32
  %v2515 = vpop.permute.xlu0 %2514
  %2516 = vrot.lane.b32.xlu0 %v2356, 32
  %v2517 = vpop.permute.xlu0 %2516
  %2518 = vrot.lane.b32.xlu0 %v2357, 32
  %v2519 = vpop.permute.xlu0 %2518
  %2520 = vrot.lane.b32.xlu0 %v2358, 32
  %v2521 = vpop.permute.xlu0 %2520
  %2522 = vrot.lane.b32.xlu0 %v2359, 32
  %v2523 = vpop.permute.xlu0 %2522
  %2524 = vrot.lane.b32.xlu0 %v2360, 32
  %v2525 = vpop.permute.xlu0 %2524
  %2526 = vrot.lane.b32.xlu0 %v2361, 32
  %v2527 = vpop.permute.xlu0 %2526
  %2528 = vrot.lane.b32.xlu0 %v2362, 32
  %v2529 = vpop.permute.xlu0 %2528
  %2530 = vrot.lane.b32.xlu0 %v2363, 32
  %v2531 = vpop.permute.xlu0 %2530
  %2532 = vrot.lane.b32.xlu0 %v2364, 32
  %v2533 = vpop.permute.xlu0 %2532
  %2534 = vrot.lane.b32.xlu0 %v2365, 32
  %v2535 = vpop.permute.xlu0 %2534
  %2536 = vrot.lane.b32.xlu0 %v2366, 32
  %v2537 = vpop.permute.xlu0 %2536
  %2538 = vrot.lane.b32.xlu0 %v2367, 32
  %v2539 = vpop.permute.xlu0 %2538
  %2540 = vrot.lane.b32.xlu0 %v2368, 32
  %v2541 = vpop.permute.xlu0 %2540
  %2542 = vrot.lane.b32.xlu0 %v2369, 32
  %v2543 = vpop.permute.xlu0 %2542
  %2544 = vrot.lane.b32.xlu0 %v2370, 32
  %v2545 = vpop.permute.xlu0 %2544
  %2546 = vrot.lane.b32.xlu0 %v2371, 32
  %v2547 = vpop.permute.xlu0 %2546
  %2548 = vrot.lane.b32.xlu0 %v2372, 32
  %v2549 = vpop.permute.xlu0 %2548
  %2550 = vrot.lane.b32.xlu0 %v2373, 32
  %v2551 = vpop.permute.xlu0 %2550
  %2552 = vrot.lane.b32.xlu0 %v2374, 32
  %v2553 = vpop.permute.xlu0 %2552
  %2554 = vrot.lane.b32.xlu0 %v2375, 32
  %v2555 = vpop.permute.xlu0 %2554
  %2556 = vrot.lane.b32.xlu0 %v2376, 32
  %v2557 = vpop.permute.xlu0 %2556
  %2558 = vrot.lane.b32.xlu0 %v2377, 32
  %v2559 = vpop.permute.xlu0 %2558
  %2560 = vrot.lane.b32.xlu0 %v2378, 32
  %v2561 = vpop.permute.xlu0 %2560
  %2562 = vrot.lane.b32.xlu0 %v2379, 32
  %v2563 = vpop.permute.xlu0 %2562
  %2564 = vrot.lane.b32.xlu0 %v2380, 32
  %v2565 = vpop.permute.xlu0 %2564
  %2566 = vrot.lane.b32.xlu0 %v2381, 32
  %v2567 = vpop.permute.xlu0 %2566
  %2568 = vrot.lane.b32.xlu0 %v2382, 32
  %v2569 = vpop.permute.xlu0 %2568
  %2570 = vrot.lane.b32.xlu0 %v2383, 32
  %v2571 = vpop.permute.xlu0 %2570
  %2572 = vrot.lane.b32.xlu0 %v2384, 32
  %v2573 = vpop.permute.xlu0 %2572
  %2574 = vrot.lane.b32.xlu0 %v2385, 32
  %v2575 = vpop.permute.xlu0 %2574
  %2576 = vrot.lane.b32.xlu0 %v2386, 32
  %v2577 = vpop.permute.xlu0 %2576
  %2578 = vrot.lane.b32.xlu0 %v2387, 32
  %v2579 = vpop.permute.xlu0 %2578
  %v2644 = vadd.f32 %v1174, %v2453
  %v2645 = vadd.f32 %v1177, %v2455
  %v2646 = vadd.f32 %v1182, %v2457
  %v2647 = vadd.f32 %v1185, %v2459
  %v2648 = vadd.f32 %v1190, %v2461
  %v2649 = vadd.f32 %v1193, %v2463
  %v2650 = vadd.f32 %v1198, %v2465
  %v2651 = vadd.f32 %v1201, %v2467
  %v2652 = vadd.f32 %v1206, %v2469
  %v2653 = vadd.f32 %v1209, %v2471
  %v2654 = vadd.f32 %v1214, %v2473
  %v2655 = vadd.f32 %v1217, %v2475
  %v2656 = vadd.f32 %v1222, %v2477
  %v2657 = vadd.f32 %v1225, %v2479
  %v2658 = vadd.f32 %v1230, %v2481
  %v2659 = vadd.f32 %v1233, %v2483
  %v2660 = vadd.f32 %v1238, %v2485
  %v2661 = vadd.f32 %v1241, %v2487
  %v2662 = vadd.f32 %v1246, %v2489
  %v2663 = vadd.f32 %v1249, %v2491
  %v2664 = vadd.f32 %v1254, %v2493
  %v2665 = vadd.f32 %v1257, %v2495
  %v2666 = vadd.f32 %v1262, %v2497
  %v2667 = vadd.f32 %v1265, %v2499
  %v2668 = vadd.f32 %v1270, %v2501
  %v2669 = vadd.f32 %v1273, %v2503
  %v2670 = vadd.f32 %v1278, %v2505
  %v2671 = vadd.f32 %v1281, %v2507
  %v2672 = vadd.f32 %v1286, %v2509
  %v2673 = vadd.f32 %v1289, %v2511
  %v2674 = vadd.f32 %v1294, %v2513
  %v2675 = vadd.f32 %v1297, %v2515
  %v2676 = vadd.f32 %v1302, %v2517
  %v2677 = vadd.f32 %v1305, %v2519
  %v2678 = vadd.f32 %v1310, %v2521
  %v2679 = vadd.f32 %v1313, %v2523
  %v2680 = vadd.f32 %v1318, %v2525
  %v2681 = vadd.f32 %v1321, %v2527
  %v2682 = vadd.f32 %v1326, %v2529
  %v2683 = vadd.f32 %v1329, %v2531
  %v2684 = vadd.f32 %v1334, %v2533
  %v2685 = vadd.f32 %v1337, %v2535
  %v2686 = vadd.f32 %v1342, %v2537
  %v2687 = vadd.f32 %v1345, %v2539
  %v2688 = vadd.f32 %v1350, %v2541
  %v2689 = vadd.f32 %v1353, %v2543
  %v2690 = vadd.f32 %v1358, %v2545
  %v2691 = vadd.f32 %v1361, %v2547
  %v2692 = vadd.f32 %v1366, %v2549
  %v2693 = vadd.f32 %v1369, %v2551
  %v2694 = vadd.f32 %v1374, %v2553
  %v2695 = vadd.f32 %v1377, %v2555
  %v2696 = vadd.f32 %v1382, %v2557
  %v2697 = vadd.f32 %v1385, %v2559
  %v2698 = vadd.f32 %v1390, %v2561
  %v2699 = vadd.f32 %v1393, %v2563
  %v2700 = vadd.f32 %v1398, %v2565
  %v2701 = vadd.f32 %v1401, %v2567
  %v2702 = vadd.f32 %v1406, %v2569
  %v2703 = vadd.f32 %v1409, %v2571
  %v2704 = vadd.f32 %v1414, %v2573
  %v2705 = vadd.f32 %v1417, %v2575
  %v2706 = vadd.f32 %v1422, %v2577
  %v2707 = vadd.f32 %v1425, %v2579
  %v2708 = vxor.u32 %v2644, 2147483648
  %v2709 = vxor.u32 %v2645, 2147483648
  %v2710 = vxor.u32 %v2646, 2147483648
  %v2711 = vxor.u32 %v2647, 2147483648
  %v2712 = vxor.u32 %v2648, 2147483648
  %v2713 = vxor.u32 %v2649, 2147483648
  %v2714 = vxor.u32 %v2650, 2147483648
  %v2715 = vxor.u32 %v2651, 2147483648
  %v2716 = vxor.u32 %v2652, 2147483648
  %v2717 = vxor.u32 %v2653, 2147483648
  %v2718 = vxor.u32 %v2654, 2147483648
  %v2719 = vxor.u32 %v2655, 2147483648
  %v2720 = vxor.u32 %v2656, 2147483648
  %v2721 = vxor.u32 %v2657, 2147483648
  %v2722 = vxor.u32 %v2658, 2147483648
  %v2723 = vxor.u32 %v2659, 2147483648
  %v2724 = vxor.u32 %v2660, 2147483648
  %v2725 = vxor.u32 %v2661, 2147483648
  %v2726 = vxor.u32 %v2662, 2147483648
  %v2727 = vxor.u32 %v2663, 2147483648
  %v2728 = vxor.u32 %v2664, 2147483648
  %v2729 = vxor.u32 %v2665, 2147483648
  %v2730 = vxor.u32 %v2666, 2147483648
  %v2731 = vxor.u32 %v2667, 2147483648
  %v2732 = vxor.u32 %v2668, 2147483648
  %v2733 = vxor.u32 %v2669, 2147483648
  %v2734 = vxor.u32 %v2670, 2147483648
  %v2735 = vxor.u32 %v2671, 2147483648
  %v2736 = vxor.u32 %v2672, 2147483648
  %v2737 = vxor.u32 %v2673, 2147483648
  %v2738 = vxor.u32 %v2674, 2147483648
  %v2739 = vxor.u32 %v2675, 2147483648
  %v2740 = vxor.u32 %v2676, 2147483648
  %v2741 = vxor.u32 %v2677, 2147483648
  %v2742 = vxor.u32 %v2678, 2147483648
  %v2743 = vxor.u32 %v2679, 2147483648
  %v2744 = vxor.u32 %v2680, 2147483648
  %v2745 = vxor.u32 %v2681, 2147483648
  %v2746 = vxor.u32 %v2682, 2147483648
  %v2747 = vxor.u32 %v2683, 2147483648
  %v2748 = vxor.u32 %v2684, 2147483648
  %v2749 = vxor.u32 %v2685, 2147483648
  %v2750 = vxor.u32 %v2686, 2147483648
  %v2751 = vxor.u32 %v2687, 2147483648
  %v2752 = vxor.u32 %v2688, 2147483648
  %v2753 = vxor.u32 %v2689, 2147483648
  %v2754 = vxor.u32 %v2690, 2147483648
  %v2755 = vxor.u32 %v2691, 2147483648
  %v2756 = vxor.u32 %v2692, 2147483648
  %v2757 = vxor.u32 %v2693, 2147483648
  %v2758 = vxor.u32 %v2694, 2147483648
  %v2759 = vxor.u32 %v2695, 2147483648
  %v2760 = vxor.u32 %v2696, 2147483648
  %v2761 = vxor.u32 %v2697, 2147483648
  %v2762 = vxor.u32 %v2698, 2147483648
  %v2763 = vxor.u32 %v2699, 2147483648
  %v2764 = vxor.u32 %v2700, 2147483648
  %v2765 = vxor.u32 %v2701, 2147483648
  %v2766 = vxor.u32 %v2702, 2147483648
  %v2767 = vxor.u32 %v2703, 2147483648
  %v2768 = vxor.u32 %v2704, 2147483648
  %v2769 = vxor.u32 %v2705, 2147483648
  %v2770 = vxor.u32 %v2706, 2147483648
  %v2771 = vxor.u32 %v2707, 2147483648
  %v2772 = vmul.f32 %v2708, 1.442695
  %v2773 = vpow.pop %v2772
  %v2774 = vmul.f32 %v2709, 1.442695
  %v2775 = vpow.pop %v2774
  %v2776 = vmul.f32 %v2710, 1.442695
  %v2777 = vpow.pop %v2776
  %v2778 = vmul.f32 %v2711, 1.442695
  %v2779 = vpow.pop %v2778
  %v2780 = vmul.f32 %v2712, 1.442695
  %v2781 = vpow.pop %v2780
  %v2782 = vmul.f32 %v2713, 1.442695
  %v2783 = vpow.pop %v2782
  %v2784 = vmul.f32 %v2714, 1.442695
  %v2785 = vpow.pop %v2784
  %v2786 = vmul.f32 %v2715, 1.442695
  %v2787 = vpow.pop %v2786
  %v2788 = vmul.f32 %v2716, 1.442695
  %v2789 = vpow.pop %v2788
  %v2790 = vmul.f32 %v2717, 1.442695
  %v2791 = vpow.pop %v2790
  %v2792 = vmul.f32 %v2718, 1.442695
  %v2793 = vpow.pop %v2792
  %v2794 = vmul.f32 %v2719, 1.442695
  %v2795 = vpow.pop %v2794
  %v2796 = vmul.f32 %v2720, 1.442695
  %v2797 = vpow.pop %v2796
  %v2798 = vmul.f32 %v2721, 1.442695
  %v2799 = vpow.pop %v2798
  %v2800 = vmul.f32 %v2722, 1.442695
  %v2801 = vpow.pop %v2800
  %v2802 = vmul.f32 %v2723, 1.442695
  %v2803 = vpow.pop %v2802
  %v2804 = vmul.f32 %v2724, 1.442695
  %v2805 = vpow.pop %v2804
  %v2806 = vmul.f32 %v2725, 1.442695
  %v2807 = vpow.pop %v2806
  %v2808 = vmul.f32 %v2726, 1.442695
  %v2809 = vpow.pop %v2808
  %v2810 = vmul.f32 %v2727, 1.442695
  %v2811 = vpow.pop %v2810
  %v2812 = vmul.f32 %v2728, 1.442695
  %v2813 = vpow.pop %v2812
  %v2814 = vmul.f32 %v2729, 1.442695
  %v2815 = vpow.pop %v2814
  %v2816 = vmul.f32 %v2730, 1.442695
  %v2817 = vpow.pop %v2816
  %v2818 = vmul.f32 %v2731, 1.442695
  %v2819 = vpow.pop %v2818
  %v2820 = vmul.f32 %v2732, 1.442695
  %v2821 = vpow.pop %v2820
  %v2822 = vmul.f32 %v2733, 1.442695
  %v2823 = vpow.pop %v2822
  %v2824 = vmul.f32 %v2734, 1.442695
  %v2825 = vpow.pop %v2824
  %v2826 = vmul.f32 %v2735, 1.442695
  %v2827 = vpow.pop %v2826
  %v2828 = vmul.f32 %v2736, 1.442695
  %v2829 = vpow.pop %v2828
  %v2830 = vmul.f32 %v2737, 1.442695
  %v2831 = vpow.pop %v2830
  %v2832 = vmul.f32 %v2738, 1.442695
  %v2833 = vpow.pop %v2832
  %v2834 = vmul.f32 %v2739, 1.442695
  %v2835 = vpow.pop %v2834
  %v2836 = vmul.f32 %v2740, 1.442695
  %v2837 = vpow.pop %v2836
  %v2838 = vmul.f32 %v2741, 1.442695
  %v2839 = vpow.pop %v2838
  %v2840 = vmul.f32 %v2742, 1.442695
  %v2841 = vpow.pop %v2840
  %v2842 = vmul.f32 %v2743, 1.442695
  %v2843 = vpow.pop %v2842
  %v2844 = vmul.f32 %v2744, 1.442695
  %v2845 = vpow.pop %v2844
  %v2846 = vmul.f32 %v2745, 1.442695
  %v2847 = vpow.pop %v2846
  %v2848 = vmul.f32 %v2746, 1.442695
  %v2849 = vpow.pop %v2848
  %v2850 = vmul.f32 %v2747, 1.442695
  %v2851 = vpow.pop %v2850
  %v2852 = vmul.f32 %v2748, 1.442695
  %v2853 = vpow.pop %v2852
  %v2854 = vmul.f32 %v2749, 1.442695
  %v2855 = vpow.pop %v2854
  %v2856 = vmul.f32 %v2750, 1.442695
  %v2857 = vpow.pop %v2856
  %v2858 = vmul.f32 %v2751, 1.442695
  %v2859 = vpow.pop %v2858
  %v2860 = vmul.f32 %v2752, 1.442695
  %v2861 = vpow.pop %v2860
  %v2862 = vmul.f32 %v2753, 1.442695
  %v2863 = vpow.pop %v2862
  %v2864 = vmul.f32 %v2754, 1.442695
  %v2865 = vpow.pop %v2864
  %v2866 = vmul.f32 %v2755, 1.442695
  %v2867 = vpow.pop %v2866
  %v2868 = vmul.f32 %v2756, 1.442695
  %v2869 = vpow.pop %v2868
  %v2870 = vmul.f32 %v2757, 1.442695
  %v2871 = vpow.pop %v2870
  %v2872 = vmul.f32 %v2758, 1.442695
  %v2873 = vpow.pop %v2872
  %v2874 = vmul.f32 %v2759, 1.442695
  %v2875 = vpow.pop %v2874
  %v2876 = vmul.f32 %v2760, 1.442695
  %v2877 = vpow.pop %v2876
  %v2878 = vmul.f32 %v2761, 1.442695
  %v2879 = vpow.pop %v2878
  %v2880 = vmul.f32 %v2762, 1.442695
  %v2881 = vpow.pop %v2880
  %v2882 = vmul.f32 %v2763, 1.442695
  %v2883 = vpow.pop %v2882
  %v2884 = vmul.f32 %v2764, 1.442695
  %v2885 = vpow.pop %v2884
  %v2886 = vmul.f32 %v2765, 1.442695
  %v2887 = vpow.pop %v2886
  %v2888 = vmul.f32 %v2766, 1.442695
  %v2889 = vpow.pop %v2888
  %v2890 = vmul.f32 %v2767, 1.442695
  %v2891 = vpow.pop %v2890
  %v2892 = vmul.f32 %v2768, 1.442695
  %v2893 = vpow.pop %v2892
  %v2894 = vmul.f32 %v2769, 1.442695
  %v2895 = vpow.pop %v2894
  %v2896 = vmul.f32 %v2770, 1.442695
  %v2897 = vpow.pop %v2896
  %v2898 = vmul.f32 %v2771, 1.442695
  %v2899 = vpow.pop %v2898
  %v2900 = vadd.f32 %v2773, 1.0
  %v2901 = vadd.f32 %v2775, 1.0
  %v2902 = vadd.f32 %v2777, 1.0
  %v2903 = vadd.f32 %v2779, 1.0
  %v2904 = vadd.f32 %v2781, 1.0
  %v2905 = vadd.f32 %v2783, 1.0
  %v2906 = vadd.f32 %v2785, 1.0
  %v2907 = vadd.f32 %v2787, 1.0
  %v2908 = vadd.f32 %v2789, 1.0
  %v2909 = vadd.f32 %v2791, 1.0
  %v2910 = vadd.f32 %v2793, 1.0
  %v2911 = vadd.f32 %v2795, 1.0
  %v2912 = vadd.f32 %v2797, 1.0
  %v2913 = vadd.f32 %v2799, 1.0
  %v2914 = vadd.f32 %v2801, 1.0
  %v2915 = vadd.f32 %v2803, 1.0
  %v2916 = vadd.f32 %v2805, 1.0
  %v2917 = vadd.f32 %v2807, 1.0
  %v2918 = vadd.f32 %v2809, 1.0
  %v2919 = vadd.f32 %v2811, 1.0
  %v2920 = vadd.f32 %v2813, 1.0
  %v2921 = vadd.f32 %v2815, 1.0
  %v2922 = vadd.f32 %v2817, 1.0
  %v2923 = vadd.f32 %v2819, 1.0
  %v2924 = vadd.f32 %v2821, 1.0
  %v2925 = vadd.f32 %v2823, 1.0
  %v2926 = vadd.f32 %v2825, 1.0
  %v2927 = vadd.f32 %v2827, 1.0
  %v2928 = vadd.f32 %v2829, 1.0
  %v2929 = vadd.f32 %v2831, 1.0
  %v2930 = vadd.f32 %v2833, 1.0
  %v2931 = vadd.f32 %v2835, 1.0
  %v2932 = vadd.f32 %v2837, 1.0
  %v2933 = vadd.f32 %v2839, 1.0
  %v2934 = vadd.f32 %v2841, 1.0
  %v2935 = vadd.f32 %v2843, 1.0
  %v2936 = vadd.f32 %v2845, 1.0
  %v2937 = vadd.f32 %v2847, 1.0
  %v2938 = vadd.f32 %v2849, 1.0
  %v2939 = vadd.f32 %v2851, 1.0
  %v2940 = vadd.f32 %v2853, 1.0
  %v2941 = vadd.f32 %v2855, 1.0
  %v2942 = vadd.f32 %v2857, 1.0
  %v2943 = vadd.f32 %v2859, 1.0
  %v2944 = vadd.f32 %v2861, 1.0
  %v2945 = vadd.f32 %v2863, 1.0
  %v2946 = vadd.f32 %v2865, 1.0
  %v2947 = vadd.f32 %v2867, 1.0
  %v2948 = vadd.f32 %v2869, 1.0
  %v2949 = vadd.f32 %v2871, 1.0
  %v2950 = vadd.f32 %v2873, 1.0
  %v2951 = vadd.f32 %v2875, 1.0
  %v2952 = vadd.f32 %v2877, 1.0
  %v2953 = vadd.f32 %v2879, 1.0
  %v2954 = vadd.f32 %v2881, 1.0
  %v2955 = vadd.f32 %v2883, 1.0
  %v2956 = vadd.f32 %v2885, 1.0
  %v2957 = vadd.f32 %v2887, 1.0
  %v2958 = vadd.f32 %v2889, 1.0
  %v2959 = vadd.f32 %v2891, 1.0
  %v2960 = vadd.f32 %v2893, 1.0
  %v2961 = vadd.f32 %v2895, 1.0
  %v2962 = vadd.f32 %v2897, 1.0
  %v2963 = vadd.f32 %v2899, 1.0
  %v2964 = vrcp.pop %v2900
  %v2965 = vmul.f32 1.0, %v2964
  %v2966 = vrcp.pop %v2901
  %v2967 = vmul.f32 1.0, %v2966
  %v2968 = vrcp.pop %v2902
  %v2969 = vmul.f32 1.0, %v2968
  %v2970 = vrcp.pop %v2903
  %v2971 = vmul.f32 1.0, %v2970
  %v2972 = vrcp.pop %v2904
  %v2973 = vmul.f32 1.0, %v2972
  %v2974 = vrcp.pop %v2905
  %v2975 = vmul.f32 1.0, %v2974
  %v2976 = vrcp.pop %v2906
  %v2977 = vmul.f32 1.0, %v2976
  %v2978 = vrcp.pop %v2907
  %v2979 = vmul.f32 1.0, %v2978
  %v2980 = vrcp.pop %v2908
  %v2981 = vmul.f32 1.0, %v2980
  %v2982 = vrcp.pop %v2909
  %v2983 = vmul.f32 1.0, %v2982
  %v2984 = vrcp.pop %v2910
  %v2985 = vmul.f32 1.0, %v2984
  %v2986 = vrcp.pop %v2911
  %v2987 = vmul.f32 1.0, %v2986
  %v2988 = vrcp.pop %v2912
  %v2989 = vmul.f32 1.0, %v2988
  %v2990 = vrcp.pop %v2913
  %v2991 = vmul.f32 1.0, %v2990
  %v2992 = vrcp.pop %v2914
  %v2993 = vmul.f32 1.0, %v2992
  %v2994 = vrcp.pop %v2915
  %v2995 = vmul.f32 1.0, %v2994
  %v2996 = vrcp.pop %v2916
  %v2997 = vmul.f32 1.0, %v2996
  %v2998 = vrcp.pop %v2917
  %v2999 = vmul.f32 1.0, %v2998
  %v3000 = vrcp.pop %v2918
  %v3001 = vmul.f32 1.0, %v3000
  %v3002 = vrcp.pop %v2919
  %v3003 = vmul.f32 1.0, %v3002
  %v3004 = vrcp.pop %v2920
  %v3005 = vmul.f32 1.0, %v3004
  %v3006 = vrcp.pop %v2921
  %v3007 = vmul.f32 1.0, %v3006
  %v3008 = vrcp.pop %v2922
  %v3009 = vmul.f32 1.0, %v3008
  %v3010 = vrcp.pop %v2923
  %v3011 = vmul.f32 1.0, %v3010
  %v3012 = vrcp.pop %v2924
  %v3013 = vmul.f32 1.0, %v3012
  %v3014 = vrcp.pop %v2925
  %v3015 = vmul.f32 1.0, %v3014
  %v3016 = vrcp.pop %v2926
  %v3017 = vmul.f32 1.0, %v3016
  %v3018 = vrcp.pop %v2927
  %v3019 = vmul.f32 1.0, %v3018
  %v3020 = vrcp.pop %v2928
  %v3021 = vmul.f32 1.0, %v3020
  %v3022 = vrcp.pop %v2929
  %v3023 = vmul.f32 1.0, %v3022
  %v3024 = vrcp.pop %v2930
  %v3025 = vmul.f32 1.0, %v3024
  %v3026 = vrcp.pop %v2931
  %v3027 = vmul.f32 1.0, %v3026
  %v3028 = vrcp.pop %v2932
  %v3029 = vmul.f32 1.0, %v3028
  %v3030 = vrcp.pop %v2933
  %v3031 = vmul.f32 1.0, %v3030
  %v3032 = vrcp.pop %v2934
  %v3033 = vmul.f32 1.0, %v3032
  %v3034 = vrcp.pop %v2935
  %v3035 = vmul.f32 1.0, %v3034
  %v3036 = vrcp.pop %v2936
  %v3037 = vmul.f32 1.0, %v3036
  %v3038 = vrcp.pop %v2937
  %v3039 = vmul.f32 1.0, %v3038
  %v3040 = vrcp.pop %v2938
  %v3041 = vmul.f32 1.0, %v3040
  %v3042 = vrcp.pop %v2939
  %v3043 = vmul.f32 1.0, %v3042
  %v3044 = vrcp.pop %v2940
  %v3045 = vmul.f32 1.0, %v3044
  %v3046 = vrcp.pop %v2941
  %v3047 = vmul.f32 1.0, %v3046
  %v3048 = vrcp.pop %v2942
  %v3049 = vmul.f32 1.0, %v3048
  %v3050 = vrcp.pop %v2943
  %v3051 = vmul.f32 1.0, %v3050
  %v3052 = vrcp.pop %v2944
  %v3053 = vmul.f32 1.0, %v3052
  %v3054 = vrcp.pop %v2945
  %v3055 = vmul.f32 1.0, %v3054
  %v3056 = vrcp.pop %v2946
  %v3057 = vmul.f32 1.0, %v3056
  %v3058 = vrcp.pop %v2947
  %v3059 = vmul.f32 1.0, %v3058
  %v3060 = vrcp.pop %v2948
  %v3061 = vmul.f32 1.0, %v3060
  %v3062 = vrcp.pop %v2949
  %v3063 = vmul.f32 1.0, %v3062
  %v3064 = vrcp.pop %v2950
  %v3065 = vmul.f32 1.0, %v3064
  %v3066 = vrcp.pop %v2951
  %v3067 = vmul.f32 1.0, %v3066
  %v3068 = vrcp.pop %v2952
  %v3069 = vmul.f32 1.0, %v3068
  %v3070 = vrcp.pop %v2953
  %v3071 = vmul.f32 1.0, %v3070
  %v3072 = vrcp.pop %v2954
  %v3073 = vmul.f32 1.0, %v3072
  %v3074 = vrcp.pop %v2955
  %v3075 = vmul.f32 1.0, %v3074
  %v3076 = vrcp.pop %v2956
  %v3077 = vmul.f32 1.0, %v3076
  %v3078 = vrcp.pop %v2957
  %v3079 = vmul.f32 1.0, %v3078
  %v3080 = vrcp.pop %v2958
  %v3081 = vmul.f32 1.0, %v3080
  %v3082 = vrcp.pop %v2959
  %v3083 = vmul.f32 1.0, %v3082
  %v3084 = vrcp.pop %v2960
  %v3085 = vmul.f32 1.0, %v3084
  %v3086 = vrcp.pop %v2961
  %v3087 = vmul.f32 1.0, %v3086
  %v3088 = vrcp.pop %v2962
  %v3089 = vmul.f32 1.0, %v3088
  %v3090 = vrcp.pop %v2963
  %v3091 = vmul.f32 1.0, %v3090
  %3156 = vrot.lane.b32.xlu0 %v1428, 32
  %v3157 = vpop.permute.xlu0 %3156
  %3158 = vrot.lane.b32.xlu0 %v1429, 32
  %v3159 = vpop.permute.xlu0 %3158
  %3160 = vrot.lane.b32.xlu0 %v1430, 32
  %v3161 = vpop.permute.xlu0 %3160
  %3162 = vrot.lane.b32.xlu0 %v1431, 32
  %v3163 = vpop.permute.xlu0 %3162
  %3164 = vrot.lane.b32.xlu0 %v1432, 32
  %v3165 = vpop.permute.xlu0 %3164
  %3166 = vrot.lane.b32.xlu0 %v1433, 32
  %v3167 = vpop.permute.xlu0 %3166
  %3168 = vrot.lane.b32.xlu0 %v1434, 32
  %v3169 = vpop.permute.xlu0 %3168
  %3170 = vrot.lane.b32.xlu0 %v1435, 32
  %v3171 = vpop.permute.xlu0 %3170
  %3172 = vrot.lane.b32.xlu0 %v1436, 32
  %v3173 = vpop.permute.xlu0 %3172
  %3174 = vrot.lane.b32.xlu0 %v1437, 32
  %v3175 = vpop.permute.xlu0 %3174
  %3176 = vrot.lane.b32.xlu0 %v1438, 32
  %v3177 = vpop.permute.xlu0 %3176
  %3178 = vrot.lane.b32.xlu0 %v1439, 32
  %v3179 = vpop.permute.xlu0 %3178
  %3180 = vrot.lane.b32.xlu0 %v1440, 32
  %v3181 = vpop.permute.xlu0 %3180
  %3182 = vrot.lane.b32.xlu0 %v1441, 32
  %v3183 = vpop.permute.xlu0 %3182
  %3184 = vrot.lane.b32.xlu0 %v1442, 32
  %v3185 = vpop.permute.xlu0 %3184
  %3186 = vrot.lane.b32.xlu0 %v1443, 32
  %v3187 = vpop.permute.xlu0 %3186
  %3188 = vrot.lane.b32.xlu0 %v1444, 32
  %v3189 = vpop.permute.xlu0 %3188
  %3190 = vrot.lane.b32.xlu0 %v1445, 32
  %v3191 = vpop.permute.xlu0 %3190
  %3192 = vrot.lane.b32.xlu0 %v1446, 32
  %v3193 = vpop.permute.xlu0 %3192
  %3194 = vrot.lane.b32.xlu0 %v1447, 32
  %v3195 = vpop.permute.xlu0 %3194
  %3196 = vrot.lane.b32.xlu0 %v1448, 32
  %v3197 = vpop.permute.xlu0 %3196
  %3198 = vrot.lane.b32.xlu0 %v1449, 32
  %v3199 = vpop.permute.xlu0 %3198
  %3200 = vrot.lane.b32.xlu0 %v1450, 32
  %v3201 = vpop.permute.xlu0 %3200
  %3202 = vrot.lane.b32.xlu0 %v1451, 32
  %v3203 = vpop.permute.xlu0 %3202
  %3204 = vrot.lane.b32.xlu0 %v1452, 32
  %v3205 = vpop.permute.xlu0 %3204
  %3206 = vrot.lane.b32.xlu0 %v1453, 32
  %v3207 = vpop.permute.xlu0 %3206
  %3208 = vrot.lane.b32.xlu0 %v1454, 32
  %v3209 = vpop.permute.xlu0 %3208
  %3210 = vrot.lane.b32.xlu0 %v1455, 32
  %v3211 = vpop.permute.xlu0 %3210
  %3212 = vrot.lane.b32.xlu0 %v1456, 32
  %v3213 = vpop.permute.xlu0 %3212
  %3214 = vrot.lane.b32.xlu0 %v1457, 32
  %v3215 = vpop.permute.xlu0 %3214
  %3216 = vrot.lane.b32.xlu0 %v1458, 32
  %v3217 = vpop.permute.xlu0 %3216
  %3218 = vrot.lane.b32.xlu0 %v1459, 32
  %v3219 = vpop.permute.xlu0 %3218
  %3220 = vrot.lane.b32.xlu0 %v1460, 32
  %v3221 = vpop.permute.xlu0 %3220
  %3222 = vrot.lane.b32.xlu0 %v1461, 32
  %v3223 = vpop.permute.xlu0 %3222
  %3224 = vrot.lane.b32.xlu0 %v1462, 32
  %v3225 = vpop.permute.xlu0 %3224
  %3226 = vrot.lane.b32.xlu0 %v1463, 32
  %v3227 = vpop.permute.xlu0 %3226
  %3228 = vrot.lane.b32.xlu0 %v1464, 32
  %v3229 = vpop.permute.xlu0 %3228
  %3230 = vrot.lane.b32.xlu0 %v1465, 32
  %v3231 = vpop.permute.xlu0 %3230
  %3232 = vrot.lane.b32.xlu0 %v1466, 32
  %v3233 = vpop.permute.xlu0 %3232
  %3234 = vrot.lane.b32.xlu0 %v1467, 32
  %v3235 = vpop.permute.xlu0 %3234
  %3236 = vrot.lane.b32.xlu0 %v1468, 32
  %v3237 = vpop.permute.xlu0 %3236
  %3238 = vrot.lane.b32.xlu0 %v1469, 32
  %v3239 = vpop.permute.xlu0 %3238
  %3240 = vrot.lane.b32.xlu0 %v1470, 32
  %v3241 = vpop.permute.xlu0 %3240
  %3242 = vrot.lane.b32.xlu0 %v1471, 32
  %v3243 = vpop.permute.xlu0 %3242
  %3244 = vrot.lane.b32.xlu0 %v1472, 32
  %v3245 = vpop.permute.xlu0 %3244
  %3246 = vrot.lane.b32.xlu0 %v1473, 32
  %v3247 = vpop.permute.xlu0 %3246
  %3248 = vrot.lane.b32.xlu0 %v1474, 32
  %v3249 = vpop.permute.xlu0 %3248
  %3250 = vrot.lane.b32.xlu0 %v1475, 32
  %v3251 = vpop.permute.xlu0 %3250
  %3252 = vrot.lane.b32.xlu0 %v1476, 32
  %v3253 = vpop.permute.xlu0 %3252
  %3254 = vrot.lane.b32.xlu0 %v1477, 32
  %v3255 = vpop.permute.xlu0 %3254
  %3256 = vrot.lane.b32.xlu0 %v1478, 32
  %v3257 = vpop.permute.xlu0 %3256
  %3258 = vrot.lane.b32.xlu0 %v1479, 32
  %v3259 = vpop.permute.xlu0 %3258
  %3260 = vrot.lane.b32.xlu0 %v1480, 32
  %v3261 = vpop.permute.xlu0 %3260
  %3262 = vrot.lane.b32.xlu0 %v1481, 32
  %v3263 = vpop.permute.xlu0 %3262
  %3264 = vrot.lane.b32.xlu0 %v1482, 32
  %v3265 = vpop.permute.xlu0 %3264
  %3266 = vrot.lane.b32.xlu0 %v1483, 32
  %v3267 = vpop.permute.xlu0 %3266
  %3268 = vrot.lane.b32.xlu0 %v1484, 32
  %v3269 = vpop.permute.xlu0 %3268
  %3270 = vrot.lane.b32.xlu0 %v1485, 32
  %v3271 = vpop.permute.xlu0 %3270
  %3272 = vrot.lane.b32.xlu0 %v1486, 32
  %v3273 = vpop.permute.xlu0 %3272
  %3274 = vrot.lane.b32.xlu0 %v1487, 32
  %v3275 = vpop.permute.xlu0 %3274
  %3276 = vrot.lane.b32.xlu0 %v1488, 32
  %v3277 = vpop.permute.xlu0 %3276
  %3278 = vrot.lane.b32.xlu0 %v1489, 32
  %v3279 = vpop.permute.xlu0 %3278
  %3280 = vrot.lane.b32.xlu0 %v1490, 32
  %v3281 = vpop.permute.xlu0 %3280
  %3282 = vrot.lane.b32.xlu0 %v1491, 32
  %v3283 = vpop.permute.xlu0 %3282
  %v3348 = vmul.f32 %v2965, %v3157
  %v3349 = vmul.f32 %v2967, %v3159
  %v3350 = vmul.f32 %v2969, %v3161
  %v3351 = vmul.f32 %v2971, %v3163
  %v3352 = vmul.f32 %v2973, %v3165
  %v3353 = vmul.f32 %v2975, %v3167
  %v3354 = vmul.f32 %v2977, %v3169
  %v3355 = vmul.f32 %v2979, %v3171
  %v3356 = vmul.f32 %v2981, %v3173
  %v3357 = vmul.f32 %v2983, %v3175
  %v3358 = vmul.f32 %v2985, %v3177
  %v3359 = vmul.f32 %v2987, %v3179
  %v3360 = vmul.f32 %v2989, %v3181
  %v3361 = vmul.f32 %v2991, %v3183
  %v3362 = vmul.f32 %v2993, %v3185
  %v3363 = vmul.f32 %v2995, %v3187
  %v3364 = vmul.f32 %v2997, %v3189
  %v3365 = vmul.f32 %v2999, %v3191
  %v3366 = vmul.f32 %v3001, %v3193
  %v3367 = vmul.f32 %v3003, %v3195
  %v3368 = vmul.f32 %v3005, %v3197
  %v3369 = vmul.f32 %v3007, %v3199
  %v3370 = vmul.f32 %v3009, %v3201
  %v3371 = vmul.f32 %v3011, %v3203
  %v3372 = vmul.f32 %v3013, %v3205
  %v3373 = vmul.f32 %v3015, %v3207
  %v3374 = vmul.f32 %v3017, %v3209
  %v3375 = vmul.f32 %v3019, %v3211
  %v3376 = vmul.f32 %v3021, %v3213
  %v3377 = vmul.f32 %v3023, %v3215
  %v3378 = vmul.f32 %v3025, %v3217
  %v3379 = vmul.f32 %v3027, %v3219
  %v3380 = vmul.f32 %v3029, %v3221
  %v3381 = vmul.f32 %v3031, %v3223
  %v3382 = vmul.f32 %v3033, %v3225
  %v3383 = vmul.f32 %v3035, %v3227
  %v3384 = vmul.f32 %v3037, %v3229
  %v3385 = vmul.f32 %v3039, %v3231
  %v3386 = vmul.f32 %v3041, %v3233
  %v3387 = vmul.f32 %v3043, %v3235
  %v3388 = vmul.f32 %v3045, %v3237
  %v3389 = vmul.f32 %v3047, %v3239
  %v3390 = vmul.f32 %v3049, %v3241
  %v3391 = vmul.f32 %v3051, %v3243
  %v3392 = vmul.f32 %v3053, %v3245
  %v3393 = vmul.f32 %v3055, %v3247
  %v3394 = vmul.f32 %v3057, %v3249
  %v3395 = vmul.f32 %v3059, %v3251
  %v3396 = vmul.f32 %v3061, %v3253
  %v3397 = vmul.f32 %v3063, %v3255
  %v3398 = vmul.f32 %v3065, %v3257
  %v3399 = vmul.f32 %v3067, %v3259
  %v3400 = vmul.f32 %v3069, %v3261
  %v3401 = vmul.f32 %v3071, %v3263
  %v3402 = vmul.f32 %v3073, %v3265
  %v3403 = vmul.f32 %v3075, %v3267
  %v3404 = vmul.f32 %v3077, %v3269
  %v3405 = vmul.f32 %v3079, %v3271
  %v3406 = vmul.f32 %v3081, %v3273
  %v3407 = vmul.f32 %v3083, %v3275
  %v3408 = vmul.f32 %v3085, %v3277
  %v3409 = vmul.f32 %v3087, %v3279
  %v3410 = vmul.f32 %v3089, %v3281
  %v3411 = vmul.f32 %v3091, %v3283
  %v3412 = vtanh.pop %v1174
  %v3413 = vtanh.pop %v1177
  %v3414 = vtanh.pop %v1182
  %v3415 = vtanh.pop %v1185
  %v3416 = vtanh.pop %v1190
  %v3417 = vtanh.pop %v1193
  %v3418 = vtanh.pop %v1198
  %v3419 = vtanh.pop %v1201
  %v3420 = vtanh.pop %v1206
  %v3421 = vtanh.pop %v1209
  %v3422 = vtanh.pop %v1214
  %v3423 = vtanh.pop %v1217
  %v3424 = vtanh.pop %v1222
  %v3425 = vtanh.pop %v1225
  %v3426 = vtanh.pop %v1230
  %v3427 = vtanh.pop %v1233
  %v3428 = vtanh.pop %v1238
  %v3429 = vtanh.pop %v1241
  %v3430 = vtanh.pop %v1246
  %v3431 = vtanh.pop %v1249
  %v3432 = vtanh.pop %v1254
  %v3433 = vtanh.pop %v1257
  %v3434 = vtanh.pop %v1262
  %v3435 = vtanh.pop %v1265
  %v3436 = vtanh.pop %v1270
  %v3437 = vtanh.pop %v1273
  %v3438 = vtanh.pop %v1278
  %v3439 = vtanh.pop %v1281
  %v3440 = vtanh.pop %v1286
  %v3441 = vtanh.pop %v1289
  %v3442 = vtanh.pop %v1294
  %v3443 = vtanh.pop %v1297
  %v3444 = vtanh.pop %v1302
  %v3445 = vtanh.pop %v1305
  %v3446 = vtanh.pop %v1310
  %v3447 = vtanh.pop %v1313
  %v3448 = vtanh.pop %v1318
  %v3449 = vtanh.pop %v1321
  %v3450 = vtanh.pop %v1326
  %v3451 = vtanh.pop %v1329
  %v3452 = vtanh.pop %v1334
  %v3453 = vtanh.pop %v1337
  %v3454 = vtanh.pop %v1342
  %v3455 = vtanh.pop %v1345
  %v3456 = vtanh.pop %v1350
  %v3457 = vtanh.pop %v1353
  %v3458 = vtanh.pop %v1358
  %v3459 = vtanh.pop %v1361
  %v3460 = vtanh.pop %v1366
  %v3461 = vtanh.pop %v1369
  %v3462 = vtanh.pop %v1374
  %v3463 = vtanh.pop %v1377
  %v3464 = vtanh.pop %v1382
  %v3465 = vtanh.pop %v1385
  %v3466 = vtanh.pop %v1390
  %v3467 = vtanh.pop %v1393
  %v3468 = vtanh.pop %v1398
  %v3469 = vtanh.pop %v1401
  %v3470 = vtanh.pop %v1406
  %v3471 = vtanh.pop %v1409
  %v3472 = vtanh.pop %v1414
  %v3473 = vtanh.pop %v1417
  %v3474 = vtanh.pop %v1422
  %v3475 = vtanh.pop %v1425
  %3540 = vrot.lane.b32.xlu0 %v3412, 64
  %v3541 = vpop.permute.xlu0 %3540
  %3542 = vrot.lane.b32.xlu0 %v3413, 64
  %v3543 = vpop.permute.xlu0 %3542
  %3544 = vrot.lane.b32.xlu0 %v3414, 64
  %v3545 = vpop.permute.xlu0 %3544
  %3546 = vrot.lane.b32.xlu0 %v3415, 64
  %v3547 = vpop.permute.xlu0 %3546
  %3548 = vrot.lane.b32.xlu0 %v3416, 64
  %v3549 = vpop.permute.xlu0 %3548
  %3550 = vrot.lane.b32.xlu0 %v3417, 64
  %v3551 = vpop.permute.xlu0 %3550
  %3552 = vrot.lane.b32.xlu0 %v3418, 64
  %v3553 = vpop.permute.xlu0 %3552
  %3554 = vrot.lane.b32.xlu0 %v3419, 64
  %v3555 = vpop.permute.xlu0 %3554
  %3556 = vrot.lane.b32.xlu0 %v3420, 64
  %v3557 = vpop.permute.xlu0 %3556
  %3558 = vrot.lane.b32.xlu0 %v3421, 64
  %v3559 = vpop.permute.xlu0 %3558
  %3560 = vrot.lane.b32.xlu0 %v3422, 64
  %v3561 = vpop.permute.xlu0 %3560
  %3562 = vrot.lane.b32.xlu0 %v3423, 64
  %v3563 = vpop.permute.xlu0 %3562
  %3564 = vrot.lane.b32.xlu0 %v3424, 64
  %v3565 = vpop.permute.xlu0 %3564
  %3566 = vrot.lane.b32.xlu0 %v3425, 64
  %v3567 = vpop.permute.xlu0 %3566
  %3568 = vrot.lane.b32.xlu0 %v3426, 64
  %v3569 = vpop.permute.xlu0 %3568
  %3570 = vrot.lane.b32.xlu0 %v3427, 64
  %v3571 = vpop.permute.xlu0 %3570
  %3572 = vrot.lane.b32.xlu0 %v3428, 64
  %v3573 = vpop.permute.xlu0 %3572
  %3574 = vrot.lane.b32.xlu0 %v3429, 64
  %v3575 = vpop.permute.xlu0 %3574
  %3576 = vrot.lane.b32.xlu0 %v3430, 64
  %v3577 = vpop.permute.xlu0 %3576
  %3578 = vrot.lane.b32.xlu0 %v3431, 64
  %v3579 = vpop.permute.xlu0 %3578
  %3580 = vrot.lane.b32.xlu0 %v3432, 64
  %v3581 = vpop.permute.xlu0 %3580
  %3582 = vrot.lane.b32.xlu0 %v3433, 64
  %v3583 = vpop.permute.xlu0 %3582
  %3584 = vrot.lane.b32.xlu0 %v3434, 64
  %v3585 = vpop.permute.xlu0 %3584
  %3586 = vrot.lane.b32.xlu0 %v3435, 64
  %v3587 = vpop.permute.xlu0 %3586
  %3588 = vrot.lane.b32.xlu0 %v3436, 64
  %v3589 = vpop.permute.xlu0 %3588
  %3590 = vrot.lane.b32.xlu0 %v3437, 64
  %v3591 = vpop.permute.xlu0 %3590
  %3592 = vrot.lane.b32.xlu0 %v3438, 64
  %v3593 = vpop.permute.xlu0 %3592
  %3594 = vrot.lane.b32.xlu0 %v3439, 64
  %v3595 = vpop.permute.xlu0 %3594
  %3596 = vrot.lane.b32.xlu0 %v3440, 64
  %v3597 = vpop.permute.xlu0 %3596
  %3598 = vrot.lane.b32.xlu0 %v3441, 64
  %v3599 = vpop.permute.xlu0 %3598
  %3600 = vrot.lane.b32.xlu0 %v3442, 64
  %v3601 = vpop.permute.xlu0 %3600
  %3602 = vrot.lane.b32.xlu0 %v3443, 64
  %v3603 = vpop.permute.xlu0 %3602
  %3604 = vrot.lane.b32.xlu0 %v3444, 64
  %v3605 = vpop.permute.xlu0 %3604
  %3606 = vrot.lane.b32.xlu0 %v3445, 64
  %v3607 = vpop.permute.xlu0 %3606
  %3608 = vrot.lane.b32.xlu0 %v3446, 64
  %v3609 = vpop.permute.xlu0 %3608
  %3610 = vrot.lane.b32.xlu0 %v3447, 64
  %v3611 = vpop.permute.xlu0 %3610
  %3612 = vrot.lane.b32.xlu0 %v3448, 64
  %v3613 = vpop.permute.xlu0 %3612
  %3614 = vrot.lane.b32.xlu0 %v3449, 64
  %v3615 = vpop.permute.xlu0 %3614
  %3616 = vrot.lane.b32.xlu0 %v3450, 64
  %v3617 = vpop.permute.xlu0 %3616
  %3618 = vrot.lane.b32.xlu0 %v3451, 64
  %v3619 = vpop.permute.xlu0 %3618
  %3620 = vrot.lane.b32.xlu0 %v3452, 64
  %v3621 = vpop.permute.xlu0 %3620
  %3622 = vrot.lane.b32.xlu0 %v3453, 64
  %v3623 = vpop.permute.xlu0 %3622
  %3624 = vrot.lane.b32.xlu0 %v3454, 64
  %v3625 = vpop.permute.xlu0 %3624
  %3626 = vrot.lane.b32.xlu0 %v3455, 64
  %v3627 = vpop.permute.xlu0 %3626
  %3628 = vrot.lane.b32.xlu0 %v3456, 64
  %v3629 = vpop.permute.xlu0 %3628
  %3630 = vrot.lane.b32.xlu0 %v3457, 64
  %v3631 = vpop.permute.xlu0 %3630
  %3632 = vrot.lane.b32.xlu0 %v3458, 64
  %v3633 = vpop.permute.xlu0 %3632
  %3634 = vrot.lane.b32.xlu0 %v3459, 64
  %v3635 = vpop.permute.xlu0 %3634
  %3636 = vrot.lane.b32.xlu0 %v3460, 64
  %v3637 = vpop.permute.xlu0 %3636
  %3638 = vrot.lane.b32.xlu0 %v3461, 64
  %v3639 = vpop.permute.xlu0 %3638
  %3640 = vrot.lane.b32.xlu0 %v3462, 64
  %v3641 = vpop.permute.xlu0 %3640
  %3642 = vrot.lane.b32.xlu0 %v3463, 64
  %v3643 = vpop.permute.xlu0 %3642
  %3644 = vrot.lane.b32.xlu0 %v3464, 64
  %v3645 = vpop.permute.xlu0 %3644
  %3646 = vrot.lane.b32.xlu0 %v3465, 64
  %v3647 = vpop.permute.xlu0 %3646
  %3648 = vrot.lane.b32.xlu0 %v3466, 64
  %v3649 = vpop.permute.xlu0 %3648
  %3650 = vrot.lane.b32.xlu0 %v3467, 64
  %v3651 = vpop.permute.xlu0 %3650
  %3652 = vrot.lane.b32.xlu0 %v3468, 64
  %v3653 = vpop.permute.xlu0 %3652
  %3654 = vrot.lane.b32.xlu0 %v3469, 64
  %v3655 = vpop.permute.xlu0 %3654
  %3656 = vrot.lane.b32.xlu0 %v3470, 64
  %v3657 = vpop.permute.xlu0 %3656
  %3658 = vrot.lane.b32.xlu0 %v3471, 64
  %v3659 = vpop.permute.xlu0 %3658
  %3660 = vrot.lane.b32.xlu0 %v3472, 64
  %v3661 = vpop.permute.xlu0 %3660
  %3662 = vrot.lane.b32.xlu0 %v3473, 64
  %v3663 = vpop.permute.xlu0 %3662
  %3664 = vrot.lane.b32.xlu0 %v3474, 64
  %v3665 = vpop.permute.xlu0 %3664
  %3666 = vrot.lane.b32.xlu0 %v3475, 64
  %v3667 = vpop.permute.xlu0 %3666
  %v3732 = vmul.f32 %v1941, %v3541
  %v3733 = vmul.f32 %v1943, %v3543
  %v3734 = vmul.f32 %v1945, %v3545
  %v3735 = vmul.f32 %v1947, %v3547
  %v3736 = vmul.f32 %v1949, %v3549
  %v3737 = vmul.f32 %v1951, %v3551
  %v3738 = vmul.f32 %v1953, %v3553
  %v3739 = vmul.f32 %v1955, %v3555
  %v3740 = vmul.f32 %v1957, %v3557
  %v3741 = vmul.f32 %v1959, %v3559
  %v3742 = vmul.f32 %v1961, %v3561
  %v3743 = vmul.f32 %v1963, %v3563
  %v3744 = vmul.f32 %v1965, %v3565
  %v3745 = vmul.f32 %v1967, %v3567
  %v3746 = vmul.f32 %v1969, %v3569
  %v3747 = vmul.f32 %v1971, %v3571
  %v3748 = vmul.f32 %v1973, %v3573
  %v3749 = vmul.f32 %v1975, %v3575
  %v3750 = vmul.f32 %v1977, %v3577
  %v3751 = vmul.f32 %v1979, %v3579
  %v3752 = vmul.f32 %v1981, %v3581
  %v3753 = vmul.f32 %v1983, %v3583
  %v3754 = vmul.f32 %v1985, %v3585
  %v3755 = vmul.f32 %v1987, %v3587
  %v3756 = vmul.f32 %v1989, %v3589
  %v3757 = vmul.f32 %v1991, %v3591
  %v3758 = vmul.f32 %v1993, %v3593
  %v3759 = vmul.f32 %v1995, %v3595
  %v3760 = vmul.f32 %v1997, %v3597
  %v3761 = vmul.f32 %v1999, %v3599
  %v3762 = vmul.f32 %v2001, %v3601
  %v3763 = vmul.f32 %v2003, %v3603
  %v3764 = vmul.f32 %v2005, %v3605
  %v3765 = vmul.f32 %v2007, %v3607
  %v3766 = vmul.f32 %v2009, %v3609
  %v3767 = vmul.f32 %v2011, %v3611
  %v3768 = vmul.f32 %v2013, %v3613
  %v3769 = vmul.f32 %v2015, %v3615
  %v3770 = vmul.f32 %v2017, %v3617
  %v3771 = vmul.f32 %v2019, %v3619
  %v3772 = vmul.f32 %v2021, %v3621
  %v3773 = vmul.f32 %v2023, %v3623
  %v3774 = vmul.f32 %v2025, %v3625
  %v3775 = vmul.f32 %v2027, %v3627
  %v3776 = vmul.f32 %v2029, %v3629
  %v3777 = vmul.f32 %v2031, %v3631
  %v3778 = vmul.f32 %v2033, %v3633
  %v3779 = vmul.f32 %v2035, %v3635
  %v3780 = vmul.f32 %v2037, %v3637
  %v3781 = vmul.f32 %v2039, %v3639
  %v3782 = vmul.f32 %v2041, %v3641
  %v3783 = vmul.f32 %v2043, %v3643
  %v3784 = vmul.f32 %v2045, %v3645
  %v3785 = vmul.f32 %v2047, %v3647
  %v3786 = vmul.f32 %v2049, %v3649
  %v3787 = vmul.f32 %v2051, %v3651
  %v3788 = vmul.f32 %v2053, %v3653
  %v3789 = vmul.f32 %v2055, %v3655
  %v3790 = vmul.f32 %v2057, %v3657
  %v3791 = vmul.f32 %v2059, %v3659
  %v3792 = vmul.f32 %v2061, %v3661
  %v3793 = vmul.f32 %v2063, %v3663
  %v3794 = vmul.f32 %v2065, %v3665
  %v3795 = vmul.f32 %v2067, %v3667
  %3860 = vrot.lane.b32.xlu0 %v3732, 32
  %v3861 = vpop.permute.xlu0 %3860
  %3862 = vrot.lane.b32.xlu0 %v3733, 32
  %v3863 = vpop.permute.xlu0 %3862
  %3864 = vrot.lane.b32.xlu0 %v3734, 32
  %v3865 = vpop.permute.xlu0 %3864
  %3866 = vrot.lane.b32.xlu0 %v3735, 32
  %v3867 = vpop.permute.xlu0 %3866
  %3868 = vrot.lane.b32.xlu0 %v3736, 32
  %v3869 = vpop.permute.xlu0 %3868
  %3870 = vrot.lane.b32.xlu0 %v3737, 32
  %v3871 = vpop.permute.xlu0 %3870
  %3872 = vrot.lane.b32.xlu0 %v3738, 32
  %v3873 = vpop.permute.xlu0 %3872
  %3874 = vrot.lane.b32.xlu0 %v3739, 32
  %v3875 = vpop.permute.xlu0 %3874
  %3876 = vrot.lane.b32.xlu0 %v3740, 32
  %v3877 = vpop.permute.xlu0 %3876
  %3878 = vrot.lane.b32.xlu0 %v3741, 32
  %v3879 = vpop.permute.xlu0 %3878
  %3880 = vrot.lane.b32.xlu0 %v3742, 32
  %v3881 = vpop.permute.xlu0 %3880
  %3882 = vrot.lane.b32.xlu0 %v3743, 32
  %v3883 = vpop.permute.xlu0 %3882
  %3884 = vrot.lane.b32.xlu0 %v3744, 32
  %v3885 = vpop.permute.xlu0 %3884
  %3886 = vrot.lane.b32.xlu0 %v3745, 32
  %v3887 = vpop.permute.xlu0 %3886
  %3888 = vrot.lane.b32.xlu0 %v3746, 32
  %v3889 = vpop.permute.xlu0 %3888
  %3890 = vrot.lane.b32.xlu0 %v3747, 32
  %v3891 = vpop.permute.xlu0 %3890
  %3892 = vrot.lane.b32.xlu0 %v3748, 32
  %v3893 = vpop.permute.xlu0 %3892
  %3894 = vrot.lane.b32.xlu0 %v3749, 32
  %v3895 = vpop.permute.xlu0 %3894
  %3896 = vrot.lane.b32.xlu0 %v3750, 32
  %v3897 = vpop.permute.xlu0 %3896
  %3898 = vrot.lane.b32.xlu0 %v3751, 32
  %v3899 = vpop.permute.xlu0 %3898
  %3900 = vrot.lane.b32.xlu0 %v3752, 32
  %v3901 = vpop.permute.xlu0 %3900
  %3902 = vrot.lane.b32.xlu0 %v3753, 32
  %v3903 = vpop.permute.xlu0 %3902
  %3904 = vrot.lane.b32.xlu0 %v3754, 32
  %v3905 = vpop.permute.xlu0 %3904
  %3906 = vrot.lane.b32.xlu0 %v3755, 32
  %v3907 = vpop.permute.xlu0 %3906
  %3908 = vrot.lane.b32.xlu0 %v3756, 32
  %v3909 = vpop.permute.xlu0 %3908
  %3910 = vrot.lane.b32.xlu0 %v3757, 32
  %v3911 = vpop.permute.xlu0 %3910
  %3912 = vrot.lane.b32.xlu0 %v3758, 32
  %v3913 = vpop.permute.xlu0 %3912
  %3914 = vrot.lane.b32.xlu0 %v3759, 32
  %v3915 = vpop.permute.xlu0 %3914
  %3916 = vrot.lane.b32.xlu0 %v3760, 32
  %v3917 = vpop.permute.xlu0 %3916
  %3918 = vrot.lane.b32.xlu0 %v3761, 32
  %v3919 = vpop.permute.xlu0 %3918
  %3920 = vrot.lane.b32.xlu0 %v3762, 32
  %v3921 = vpop.permute.xlu0 %3920
  %3922 = vrot.lane.b32.xlu0 %v3763, 32
  %v3923 = vpop.permute.xlu0 %3922
  %3924 = vrot.lane.b32.xlu0 %v3764, 32
  %v3925 = vpop.permute.xlu0 %3924
  %3926 = vrot.lane.b32.xlu0 %v3765, 32
  %v3927 = vpop.permute.xlu0 %3926
  %3928 = vrot.lane.b32.xlu0 %v3766, 32
  %v3929 = vpop.permute.xlu0 %3928
  %3930 = vrot.lane.b32.xlu0 %v3767, 32
  %v3931 = vpop.permute.xlu0 %3930
  %3932 = vrot.lane.b32.xlu0 %v3768, 32
  %v3933 = vpop.permute.xlu0 %3932
  %3934 = vrot.lane.b32.xlu0 %v3769, 32
  %v3935 = vpop.permute.xlu0 %3934
  %3936 = vrot.lane.b32.xlu0 %v3770, 32
  %v3937 = vpop.permute.xlu0 %3936
  %3938 = vrot.lane.b32.xlu0 %v3771, 32
  %v3939 = vpop.permute.xlu0 %3938
  %3940 = vrot.lane.b32.xlu0 %v3772, 32
  %v3941 = vpop.permute.xlu0 %3940
  %3942 = vrot.lane.b32.xlu0 %v3773, 32
  %v3943 = vpop.permute.xlu0 %3942
  %3944 = vrot.lane.b32.xlu0 %v3774, 32
  %v3945 = vpop.permute.xlu0 %3944
  %3946 = vrot.lane.b32.xlu0 %v3775, 32
  %v3947 = vpop.permute.xlu0 %3946
  %3948 = vrot.lane.b32.xlu0 %v3776, 32
  %v3949 = vpop.permute.xlu0 %3948
  %3950 = vrot.lane.b32.xlu0 %v3777, 32
  %v3951 = vpop.permute.xlu0 %3950
  %3952 = vrot.lane.b32.xlu0 %v3778, 32
  %v3953 = vpop.permute.xlu0 %3952
  %3954 = vrot.lane.b32.xlu0 %v3779, 32
  %v3955 = vpop.permute.xlu0 %3954
  %3956 = vrot.lane.b32.xlu0 %v3780, 32
  %v3957 = vpop.permute.xlu0 %3956
  %3958 = vrot.lane.b32.xlu0 %v3781, 32
  %v3959 = vpop.permute.xlu0 %3958
  %3960 = vrot.lane.b32.xlu0 %v3782, 32
  %v3961 = vpop.permute.xlu0 %3960
  %3962 = vrot.lane.b32.xlu0 %v3783, 32
  %v3963 = vpop.permute.xlu0 %3962
  %3964 = vrot.lane.b32.xlu0 %v3784, 32
  %v3965 = vpop.permute.xlu0 %3964
  %3966 = vrot.lane.b32.xlu0 %v3785, 32
  %v3967 = vpop.permute.xlu0 %3966
  %3968 = vrot.lane.b32.xlu0 %v3786, 32
  %v3969 = vpop.permute.xlu0 %3968
  %3970 = vrot.lane.b32.xlu0 %v3787, 32
  %v3971 = vpop.permute.xlu0 %3970
  %3972 = vrot.lane.b32.xlu0 %v3788, 32
  %v3973 = vpop.permute.xlu0 %3972
  %3974 = vrot.lane.b32.xlu0 %v3789, 32
  %v3975 = vpop.permute.xlu0 %3974
  %3976 = vrot.lane.b32.xlu0 %v3790, 32
  %v3977 = vpop.permute.xlu0 %3976
  %3978 = vrot.lane.b32.xlu0 %v3791, 32
  %v3979 = vpop.permute.xlu0 %3978
  %3980 = vrot.lane.b32.xlu0 %v3792, 32
  %v3981 = vpop.permute.xlu0 %3980
  %3982 = vrot.lane.b32.xlu0 %v3793, 32
  %v3983 = vpop.permute.xlu0 %3982
  %3984 = vrot.lane.b32.xlu0 %v3794, 32
  %v3985 = vpop.permute.xlu0 %3984
  %3986 = vrot.lane.b32.xlu0 %v3795, 32
  %v3987 = vpop.permute.xlu0 %3986
  %v4052 = vadd.f32 %v3348, %v3861
  %v4053 = vadd.f32 %v3349, %v3863
  %v4054 = vadd.f32 %v3350, %v3865
  %v4055 = vadd.f32 %v3351, %v3867
  %v4056 = vadd.f32 %v3352, %v3869
  %v4057 = vadd.f32 %v3353, %v3871
  %v4058 = vadd.f32 %v3354, %v3873
  %v4059 = vadd.f32 %v3355, %v3875
  %v4060 = vadd.f32 %v3356, %v3877
  %v4061 = vadd.f32 %v3357, %v3879
  %v4062 = vadd.f32 %v3358, %v3881
  %v4063 = vadd.f32 %v3359, %v3883
  %v4064 = vadd.f32 %v3360, %v3885
  %v4065 = vadd.f32 %v3361, %v3887
  %v4066 = vadd.f32 %v3362, %v3889
  %v4067 = vadd.f32 %v3363, %v3891
  %v4068 = vadd.f32 %v3364, %v3893
  %v4069 = vadd.f32 %v3365, %v3895
  %v4070 = vadd.f32 %v3366, %v3897
  %v4071 = vadd.f32 %v3367, %v3899
  %v4072 = vadd.f32 %v3368, %v3901
  %v4073 = vadd.f32 %v3369, %v3903
  %v4074 = vadd.f32 %v3370, %v3905
  %v4075 = vadd.f32 %v3371, %v3907
  %v4076 = vadd.f32 %v3372, %v3909
  %v4077 = vadd.f32 %v3373, %v3911
  %v4078 = vadd.f32 %v3374, %v3913
  %v4079 = vadd.f32 %v3375, %v3915
  %v4080 = vadd.f32 %v3376, %v3917
  %v4081 = vadd.f32 %v3377, %v3919
  %v4082 = vadd.f32 %v3378, %v3921
  %v4083 = vadd.f32 %v3379, %v3923
  %v4084 = vadd.f32 %v3380, %v3925
  %v4085 = vadd.f32 %v3381, %v3927
  %v4086 = vadd.f32 %v3382, %v3929
  %v4087 = vadd.f32 %v3383, %v3931
  %v4088 = vadd.f32 %v3384, %v3933
  %v4089 = vadd.f32 %v3385, %v3935
  %v4090 = vadd.f32 %v3386, %v3937
  %v4091 = vadd.f32 %v3387, %v3939
  %v4092 = vadd.f32 %v3388, %v3941
  %v4093 = vadd.f32 %v3389, %v3943
  %v4094 = vadd.f32 %v3390, %v3945
  %v4095 = vadd.f32 %v3391, %v3947
  %v4096 = vadd.f32 %v3392, %v3949
  %v4097 = vadd.f32 %v3393, %v3951
  %v4098 = vadd.f32 %v3394, %v3953
  %v4099 = vadd.f32 %v3395, %v3955
  %v4100 = vadd.f32 %v3396, %v3957
  %v4101 = vadd.f32 %v3397, %v3959
  %v4102 = vadd.f32 %v3398, %v3961
  %v4103 = vadd.f32 %v3399, %v3963
  %v4104 = vadd.f32 %v3400, %v3965
  %v4105 = vadd.f32 %v3401, %v3967
  %v4106 = vadd.f32 %v3402, %v3969
  %v4107 = vadd.f32 %v3403, %v3971
  %v4108 = vadd.f32 %v3404, %v3973
  %v4109 = vadd.f32 %v3405, %v3975
  %v4110 = vadd.f32 %v3406, %v3977
  %v4111 = vadd.f32 %v3407, %v3979
  %v4112 = vadd.f32 %v3408, %v3981
  %v4113 = vadd.f32 %v3409, %v3983
  %v4114 = vadd.f32 %v3410, %v3985
  %v4115 = vadd.f32 %v3411, %v3987
  %v4116 = vmul.f32 %v4052, %v2133
  %v4117 = vmul.f32 %v4053, %v2135
  %v4118 = vmul.f32 %v4054, %v2137
  %v4119 = vmul.f32 %v4055, %v2139
  %v4120 = vmul.f32 %v4056, %v2141
  %v4121 = vmul.f32 %v4057, %v2143
  %v4122 = vmul.f32 %v4058, %v2145
  %v4123 = vmul.f32 %v4059, %v2147
  %v4124 = vmul.f32 %v4060, %v2149
  %v4125 = vmul.f32 %v4061, %v2151
  %v4126 = vmul.f32 %v4062, %v2153
  %v4127 = vmul.f32 %v4063, %v2155
  %v4128 = vmul.f32 %v4064, %v2157
  %v4129 = vmul.f32 %v4065, %v2159
  %v4130 = vmul.f32 %v4066, %v2161
  %v4131 = vmul.f32 %v4067, %v2163
  %v4132 = vmul.f32 %v4068, %v2165
  %v4133 = vmul.f32 %v4069, %v2167
  %v4134 = vmul.f32 %v4070, %v2169
  %v4135 = vmul.f32 %v4071, %v2171
  %v4136 = vmul.f32 %v4072, %v2173
  %v4137 = vmul.f32 %v4073, %v2175
  %v4138 = vmul.f32 %v4074, %v2177
  %v4139 = vmul.f32 %v4075, %v2179
  %v4140 = vmul.f32 %v4076, %v2181
  %v4141 = vmul.f32 %v4077, %v2183
  %v4142 = vmul.f32 %v4078, %v2185
  %v4143 = vmul.f32 %v4079, %v2187
  %v4144 = vmul.f32 %v4080, %v2189
  %v4145 = vmul.f32 %v4081, %v2191
  %v4146 = vmul.f32 %v4082, %v2193
  %v4147 = vmul.f32 %v4083, %v2195
  %v4148 = vmul.f32 %v4084, %v2197
  %v4149 = vmul.f32 %v4085, %v2199
  %v4150 = vmul.f32 %v4086, %v2201
  %v4151 = vmul.f32 %v4087, %v2203
  %v4152 = vmul.f32 %v4088, %v2205
  %v4153 = vmul.f32 %v4089, %v2207
  %v4154 = vmul.f32 %v4090, %v2209
  %v4155 = vmul.f32 %v4091, %v2211
  %v4156 = vmul.f32 %v4092, %v2213
  %v4157 = vmul.f32 %v4093, %v2215
  %v4158 = vmul.f32 %v4094, %v2217
  %v4159 = vmul.f32 %v4095, %v2219
  %v4160 = vmul.f32 %v4096, %v2221
  %v4161 = vmul.f32 %v4097, %v2223
  %v4162 = vmul.f32 %v4098, %v2225
  %v4163 = vmul.f32 %v4099, %v2227
  %v4164 = vmul.f32 %v4100, %v2229
  %v4165 = vmul.f32 %v4101, %v2231
  %v4166 = vmul.f32 %v4102, %v2233
  %v4167 = vmul.f32 %v4103, %v2235
  %v4168 = vmul.f32 %v4104, %v2237
  %v4169 = vmul.f32 %v4105, %v2239
  %v4170 = vmul.f32 %v4106, %v2241
  %v4171 = vmul.f32 %v4107, %v2243
  %v4172 = vmul.f32 %v4108, %v2245
  %v4173 = vmul.f32 %v4109, %v2247
  %v4174 = vmul.f32 %v4110, %v2249
  %v4175 = vmul.f32 %v4111, %v2251
  %v4176 = vmul.f32 %v4112, %v2253
  %v4177 = vmul.f32 %v4113, %v2255
  %v4178 = vmul.f32 %v4114, %v2257
  %v4179 = vmul.f32 %v4115, %v2259
  %4244 = vrot.lane.b32.xlu0 %v4116, 64
  %v4245 = vpop.permute.xlu0 %4244
  %4246 = vrot.lane.b32.xlu0 %v4117, 64
  %v4247 = vpop.permute.xlu0 %4246
  %4248 = vrot.lane.b32.xlu0 %v4118, 64
  %v4249 = vpop.permute.xlu0 %4248
  %4250 = vrot.lane.b32.xlu0 %v4119, 64
  %v4251 = vpop.permute.xlu0 %4250
  %4252 = vrot.lane.b32.xlu0 %v4120, 64
  %v4253 = vpop.permute.xlu0 %4252
  %4254 = vrot.lane.b32.xlu0 %v4121, 64
  %v4255 = vpop.permute.xlu0 %4254
  %4256 = vrot.lane.b32.xlu0 %v4122, 64
  %v4257 = vpop.permute.xlu0 %4256
  %4258 = vrot.lane.b32.xlu0 %v4123, 64
  %v4259 = vpop.permute.xlu0 %4258
  %4260 = vrot.lane.b32.xlu0 %v4124, 64
  %v4261 = vpop.permute.xlu0 %4260
  %4262 = vrot.lane.b32.xlu0 %v4125, 64
  %v4263 = vpop.permute.xlu0 %4262
  %4264 = vrot.lane.b32.xlu0 %v4126, 64
  %v4265 = vpop.permute.xlu0 %4264
  %4266 = vrot.lane.b32.xlu0 %v4127, 64
  %v4267 = vpop.permute.xlu0 %4266
  %4268 = vrot.lane.b32.xlu0 %v4128, 64
  %v4269 = vpop.permute.xlu0 %4268
  %4270 = vrot.lane.b32.xlu0 %v4129, 64
  %v4271 = vpop.permute.xlu0 %4270
  %4272 = vrot.lane.b32.xlu0 %v4130, 64
  %v4273 = vpop.permute.xlu0 %4272
  %4274 = vrot.lane.b32.xlu0 %v4131, 64
  %v4275 = vpop.permute.xlu0 %4274
  %4276 = vrot.lane.b32.xlu0 %v4132, 64
  %v4277 = vpop.permute.xlu0 %4276
  %4278 = vrot.lane.b32.xlu0 %v4133, 64
  %v4279 = vpop.permute.xlu0 %4278
  %4280 = vrot.lane.b32.xlu0 %v4134, 64
  %v4281 = vpop.permute.xlu0 %4280
  %4282 = vrot.lane.b32.xlu0 %v4135, 64
  %v4283 = vpop.permute.xlu0 %4282
  %4284 = vrot.lane.b32.xlu0 %v4136, 64
  %v4285 = vpop.permute.xlu0 %4284
  %4286 = vrot.lane.b32.xlu0 %v4137, 64
  %v4287 = vpop.permute.xlu0 %4286
  %4288 = vrot.lane.b32.xlu0 %v4138, 64
  %v4289 = vpop.permute.xlu0 %4288
  %4290 = vrot.lane.b32.xlu0 %v4139, 64
  %v4291 = vpop.permute.xlu0 %4290
  %4292 = vrot.lane.b32.xlu0 %v4140, 64
  %v4293 = vpop.permute.xlu0 %4292
  %4294 = vrot.lane.b32.xlu0 %v4141, 64
  %v4295 = vpop.permute.xlu0 %4294
  %4296 = vrot.lane.b32.xlu0 %v4142, 64
  %v4297 = vpop.permute.xlu0 %4296
  %4298 = vrot.lane.b32.xlu0 %v4143, 64
  %v4299 = vpop.permute.xlu0 %4298
  %4300 = vrot.lane.b32.xlu0 %v4144, 64
  %v4301 = vpop.permute.xlu0 %4300
  %4302 = vrot.lane.b32.xlu0 %v4145, 64
  %v4303 = vpop.permute.xlu0 %4302
  %4304 = vrot.lane.b32.xlu0 %v4146, 64
  %v4305 = vpop.permute.xlu0 %4304
  %4306 = vrot.lane.b32.xlu0 %v4147, 64
  %v4307 = vpop.permute.xlu0 %4306
  %4308 = vrot.lane.b32.xlu0 %v4148, 64
  %v4309 = vpop.permute.xlu0 %4308
  %4310 = vrot.lane.b32.xlu0 %v4149, 64
  %v4311 = vpop.permute.xlu0 %4310
  %4312 = vrot.lane.b32.xlu0 %v4150, 64
  %v4313 = vpop.permute.xlu0 %4312
  %4314 = vrot.lane.b32.xlu0 %v4151, 64
  %v4315 = vpop.permute.xlu0 %4314
  %4316 = vrot.lane.b32.xlu0 %v4152, 64
  %v4317 = vpop.permute.xlu0 %4316
  %4318 = vrot.lane.b32.xlu0 %v4153, 64
  %v4319 = vpop.permute.xlu0 %4318
  %4320 = vrot.lane.b32.xlu0 %v4154, 64
  %v4321 = vpop.permute.xlu0 %4320
  %4322 = vrot.lane.b32.xlu0 %v4155, 64
  %v4323 = vpop.permute.xlu0 %4322
  %4324 = vrot.lane.b32.xlu0 %v4156, 64
  %v4325 = vpop.permute.xlu0 %4324
  %4326 = vrot.lane.b32.xlu0 %v4157, 64
  %v4327 = vpop.permute.xlu0 %4326
  %4328 = vrot.lane.b32.xlu0 %v4158, 64
  %v4329 = vpop.permute.xlu0 %4328
  %4330 = vrot.lane.b32.xlu0 %v4159, 64
  %v4331 = vpop.permute.xlu0 %4330
  %4332 = vrot.lane.b32.xlu0 %v4160, 64
  %v4333 = vpop.permute.xlu0 %4332
  %4334 = vrot.lane.b32.xlu0 %v4161, 64
  %v4335 = vpop.permute.xlu0 %4334
  %4336 = vrot.lane.b32.xlu0 %v4162, 64
  %v4337 = vpop.permute.xlu0 %4336
  %4338 = vrot.lane.b32.xlu0 %v4163, 64
  %v4339 = vpop.permute.xlu0 %4338
  %4340 = vrot.lane.b32.xlu0 %v4164, 64
  %v4341 = vpop.permute.xlu0 %4340
  %4342 = vrot.lane.b32.xlu0 %v4165, 64
  %v4343 = vpop.permute.xlu0 %4342
  %4344 = vrot.lane.b32.xlu0 %v4166, 64
  %v4345 = vpop.permute.xlu0 %4344
  %4346 = vrot.lane.b32.xlu0 %v4167, 64
  %v4347 = vpop.permute.xlu0 %4346
  %4348 = vrot.lane.b32.xlu0 %v4168, 64
  %v4349 = vpop.permute.xlu0 %4348
  %4350 = vrot.lane.b32.xlu0 %v4169, 64
  %v4351 = vpop.permute.xlu0 %4350
  %4352 = vrot.lane.b32.xlu0 %v4170, 64
  %v4353 = vpop.permute.xlu0 %4352
  %4354 = vrot.lane.b32.xlu0 %v4171, 64
  %v4355 = vpop.permute.xlu0 %4354
  %4356 = vrot.lane.b32.xlu0 %v4172, 64
  %v4357 = vpop.permute.xlu0 %4356
  %4358 = vrot.lane.b32.xlu0 %v4173, 64
  %v4359 = vpop.permute.xlu0 %4358
  %4360 = vrot.lane.b32.xlu0 %v4174, 64
  %v4361 = vpop.permute.xlu0 %4360
  %4362 = vrot.lane.b32.xlu0 %v4175, 64
  %v4363 = vpop.permute.xlu0 %4362
  %4364 = vrot.lane.b32.xlu0 %v4176, 64
  %v4365 = vpop.permute.xlu0 %4364
  %4366 = vrot.lane.b32.xlu0 %v4177, 64
  %v4367 = vpop.permute.xlu0 %4366
  %4368 = vrot.lane.b32.xlu0 %v4178, 64
  %v4369 = vpop.permute.xlu0 %4368
  %4370 = vrot.lane.b32.xlu0 %v4179, 64
  %v4371 = vpop.permute.xlu0 %4370
  %v4436 = vadd.f32 %v1174, %v4245
  %v4437 = vadd.f32 %v1177, %v4247
  %v4438 = vadd.f32 %v1182, %v4249
  %v4439 = vadd.f32 %v1185, %v4251
  %v4440 = vadd.f32 %v1190, %v4253
  %v4441 = vadd.f32 %v1193, %v4255
  %v4442 = vadd.f32 %v1198, %v4257
  %v4443 = vadd.f32 %v1201, %v4259
  %v4444 = vadd.f32 %v1206, %v4261
  %v4445 = vadd.f32 %v1209, %v4263
  %v4446 = vadd.f32 %v1214, %v4265
  %v4447 = vadd.f32 %v1217, %v4267
  %v4448 = vadd.f32 %v1222, %v4269
  %v4449 = vadd.f32 %v1225, %v4271
  %v4450 = vadd.f32 %v1230, %v4273
  %v4451 = vadd.f32 %v1233, %v4275
  %v4452 = vadd.f32 %v1238, %v4277
  %v4453 = vadd.f32 %v1241, %v4279
  %v4454 = vadd.f32 %v1246, %v4281
  %v4455 = vadd.f32 %v1249, %v4283
  %v4456 = vadd.f32 %v1254, %v4285
  %v4457 = vadd.f32 %v1257, %v4287
  %v4458 = vadd.f32 %v1262, %v4289
  %v4459 = vadd.f32 %v1265, %v4291
  %v4460 = vadd.f32 %v1270, %v4293
  %v4461 = vadd.f32 %v1273, %v4295
  %v4462 = vadd.f32 %v1278, %v4297
  %v4463 = vadd.f32 %v1281, %v4299
  %v4464 = vadd.f32 %v1286, %v4301
  %v4465 = vadd.f32 %v1289, %v4303
  %v4466 = vadd.f32 %v1294, %v4305
  %v4467 = vadd.f32 %v1297, %v4307
  %v4468 = vadd.f32 %v1302, %v4309
  %v4469 = vadd.f32 %v1305, %v4311
  %v4470 = vadd.f32 %v1310, %v4313
  %v4471 = vadd.f32 %v1313, %v4315
  %v4472 = vadd.f32 %v1318, %v4317
  %v4473 = vadd.f32 %v1321, %v4319
  %v4474 = vadd.f32 %v1326, %v4321
  %v4475 = vadd.f32 %v1329, %v4323
  %v4476 = vadd.f32 %v1334, %v4325
  %v4477 = vadd.f32 %v1337, %v4327
  %v4478 = vadd.f32 %v1342, %v4329
  %v4479 = vadd.f32 %v1345, %v4331
  %v4480 = vadd.f32 %v1350, %v4333
  %v4481 = vadd.f32 %v1353, %v4335
  %v4482 = vadd.f32 %v1358, %v4337
  %v4483 = vadd.f32 %v1361, %v4339
  %v4484 = vadd.f32 %v1366, %v4341
  %v4485 = vadd.f32 %v1369, %v4343
  %v4486 = vadd.f32 %v1374, %v4345
  %v4487 = vadd.f32 %v1377, %v4347
  %v4488 = vadd.f32 %v1382, %v4349
  %v4489 = vadd.f32 %v1385, %v4351
  %v4490 = vadd.f32 %v1390, %v4353
  %v4491 = vadd.f32 %v1393, %v4355
  %v4492 = vadd.f32 %v1398, %v4357
  %v4493 = vadd.f32 %v1401, %v4359
  %v4494 = vadd.f32 %v1406, %v4361
  %v4495 = vadd.f32 %v1409, %v4363
  %v4496 = vadd.f32 %v1414, %v4365
  %v4497 = vadd.f32 %v1417, %v4367
  %v4498 = vadd.f32 %v1422, %v4369
  %v4499 = vadd.f32 %v1425, %v4371
  %v4500 = vxor.u32 %v4436, 2147483648
  %v4501 = vxor.u32 %v4437, 2147483648
  %v4502 = vxor.u32 %v4438, 2147483648
  %v4503 = vxor.u32 %v4439, 2147483648
  %v4504 = vxor.u32 %v4440, 2147483648
  %v4505 = vxor.u32 %v4441, 2147483648
  %v4506 = vxor.u32 %v4442, 2147483648
  %v4507 = vxor.u32 %v4443, 2147483648
  %v4508 = vxor.u32 %v4444, 2147483648
  %v4509 = vxor.u32 %v4445, 2147483648
  %v4510 = vxor.u32 %v4446, 2147483648
  %v4511 = vxor.u32 %v4447, 2147483648
  %v4512 = vxor.u32 %v4448, 2147483648
  %v4513 = vxor.u32 %v4449, 2147483648
  %v4514 = vxor.u32 %v4450, 2147483648
  %v4515 = vxor.u32 %v4451, 2147483648
  %v4516 = vxor.u32 %v4452, 2147483648
  %v4517 = vxor.u32 %v4453, 2147483648
  %v4518 = vxor.u32 %v4454, 2147483648
  %v4519 = vxor.u32 %v4455, 2147483648
  %v4520 = vxor.u32 %v4456, 2147483648
  %v4521 = vxor.u32 %v4457, 2147483648
  %v4522 = vxor.u32 %v4458, 2147483648
  %v4523 = vxor.u32 %v4459, 2147483648
  %v4524 = vxor.u32 %v4460, 2147483648
  %v4525 = vxor.u32 %v4461, 2147483648
  %v4526 = vxor.u32 %v4462, 2147483648
  %v4527 = vxor.u32 %v4463, 2147483648
  %v4528 = vxor.u32 %v4464, 2147483648
  %v4529 = vxor.u32 %v4465, 2147483648
  %v4530 = vxor.u32 %v4466, 2147483648
  %v4531 = vxor.u32 %v4467, 2147483648
  %v4532 = vxor.u32 %v4468, 2147483648
  %v4533 = vxor.u32 %v4469, 2147483648
  %v4534 = vxor.u32 %v4470, 2147483648
  %v4535 = vxor.u32 %v4471, 2147483648
  %v4536 = vxor.u32 %v4472, 2147483648
  %v4537 = vxor.u32 %v4473, 2147483648
  %v4538 = vxor.u32 %v4474, 2147483648
  %v4539 = vxor.u32 %v4475, 2147483648
  %v4540 = vxor.u32 %v4476, 2147483648
  %v4541 = vxor.u32 %v4477, 2147483648
  %v4542 = vxor.u32 %v4478, 2147483648
  %v4543 = vxor.u32 %v4479, 2147483648
  %v4544 = vxor.u32 %v4480, 2147483648
  %v4545 = vxor.u32 %v4481, 2147483648
  %v4546 = vxor.u32 %v4482, 2147483648
  %v4547 = vxor.u32 %v4483, 2147483648
  %v4548 = vxor.u32 %v4484, 2147483648
  %v4549 = vxor.u32 %v4485, 2147483648
  %v4550 = vxor.u32 %v4486, 2147483648
  %v4551 = vxor.u32 %v4487, 2147483648
  %v4552 = vxor.u32 %v4488, 2147483648
  %v4553 = vxor.u32 %v4489, 2147483648
  %v4554 = vxor.u32 %v4490, 2147483648
  %v4555 = vxor.u32 %v4491, 2147483648
  %v4556 = vxor.u32 %v4492, 2147483648
  %v4557 = vxor.u32 %v4493, 2147483648
  %v4558 = vxor.u32 %v4494, 2147483648
  %v4559 = vxor.u32 %v4495, 2147483648
  %v4560 = vxor.u32 %v4496, 2147483648
  %v4561 = vxor.u32 %v4497, 2147483648
  %v4562 = vxor.u32 %v4498, 2147483648
  %v4563 = vxor.u32 %v4499, 2147483648
  %v4564 = vmul.f32 %v4500, 1.442695
  %v4565 = vpow.pop %v4564
  %v4566 = vmul.f32 %v4501, 1.442695
  %v4567 = vpow.pop %v4566
  %v4568 = vmul.f32 %v4502, 1.442695
  %v4569 = vpow.pop %v4568
  %v4570 = vmul.f32 %v4503, 1.442695
  %v4571 = vpow.pop %v4570
  %v4572 = vmul.f32 %v4504, 1.442695
  %v4573 = vpow.pop %v4572
  %v4574 = vmul.f32 %v4505, 1.442695
  %v4575 = vpow.pop %v4574
  %v4576 = vmul.f32 %v4506, 1.442695
  %v4577 = vpow.pop %v4576
  %v4578 = vmul.f32 %v4507, 1.442695
  %v4579 = vpow.pop %v4578
  %v4580 = vmul.f32 %v4508, 1.442695
  %v4581 = vpow.pop %v4580
  %v4582 = vmul.f32 %v4509, 1.442695
  %v4583 = vpow.pop %v4582
  %v4584 = vmul.f32 %v4510, 1.442695
  %v4585 = vpow.pop %v4584
  %v4586 = vmul.f32 %v4511, 1.442695
  %v4587 = vpow.pop %v4586
  %v4588 = vmul.f32 %v4512, 1.442695
  %v4589 = vpow.pop %v4588
  %v4590 = vmul.f32 %v4513, 1.442695
  %v4591 = vpow.pop %v4590
  %v4592 = vmul.f32 %v4514, 1.442695
  %v4593 = vpow.pop %v4592
  %v4594 = vmul.f32 %v4515, 1.442695
  %v4595 = vpow.pop %v4594
  %v4596 = vmul.f32 %v4516, 1.442695
  %v4597 = vpow.pop %v4596
  %v4598 = vmul.f32 %v4517, 1.442695
  %v4599 = vpow.pop %v4598
  %v4600 = vmul.f32 %v4518, 1.442695
  %v4601 = vpow.pop %v4600
  %v4602 = vmul.f32 %v4519, 1.442695
  %v4603 = vpow.pop %v4602
  %v4604 = vmul.f32 %v4520, 1.442695
  %v4605 = vpow.pop %v4604
  %v4606 = vmul.f32 %v4521, 1.442695
  %v4607 = vpow.pop %v4606
  %v4608 = vmul.f32 %v4522, 1.442695
  %v4609 = vpow.pop %v4608
  %v4610 = vmul.f32 %v4523, 1.442695
  %v4611 = vpow.pop %v4610
  %v4612 = vmul.f32 %v4524, 1.442695
  %v4613 = vpow.pop %v4612
  %v4614 = vmul.f32 %v4525, 1.442695
  %v4615 = vpow.pop %v4614
  %v4616 = vmul.f32 %v4526, 1.442695
  %v4617 = vpow.pop %v4616
  %v4618 = vmul.f32 %v4527, 1.442695
  %v4619 = vpow.pop %v4618
  %v4620 = vmul.f32 %v4528, 1.442695
  %v4621 = vpow.pop %v4620
  %v4622 = vmul.f32 %v4529, 1.442695
  %v4623 = vpow.pop %v4622
  %v4624 = vmul.f32 %v4530, 1.442695
  %v4625 = vpow.pop %v4624
  %v4626 = vmul.f32 %v4531, 1.442695
  %v4627 = vpow.pop %v4626
  %v4628 = vmul.f32 %v4532, 1.442695
  %v4629 = vpow.pop %v4628
  %v4630 = vmul.f32 %v4533, 1.442695
  %v4631 = vpow.pop %v4630
  %v4632 = vmul.f32 %v4534, 1.442695
  %v4633 = vpow.pop %v4632
  %v4634 = vmul.f32 %v4535, 1.442695
  %v4635 = vpow.pop %v4634
  %v4636 = vmul.f32 %v4536, 1.442695
  %v4637 = vpow.pop %v4636
  %v4638 = vmul.f32 %v4537, 1.442695
  %v4639 = vpow.pop %v4638
  %v4640 = vmul.f32 %v4538, 1.442695
  %v4641 = vpow.pop %v4640
  %v4642 = vmul.f32 %v4539, 1.442695
  %v4643 = vpow.pop %v4642
  %v4644 = vmul.f32 %v4540, 1.442695
  %v4645 = vpow.pop %v4644
  %v4646 = vmul.f32 %v4541, 1.442695
  %v4647 = vpow.pop %v4646
  %v4648 = vmul.f32 %v4542, 1.442695
  %v4649 = vpow.pop %v4648
  %v4650 = vmul.f32 %v4543, 1.442695
  %v4651 = vpow.pop %v4650
  %v4652 = vmul.f32 %v4544, 1.442695
  %v4653 = vpow.pop %v4652
  %v4654 = vmul.f32 %v4545, 1.442695
  %v4655 = vpow.pop %v4654
  %v4656 = vmul.f32 %v4546, 1.442695
  %v4657 = vpow.pop %v4656
  %v4658 = vmul.f32 %v4547, 1.442695
  %v4659 = vpow.pop %v4658
  %v4660 = vmul.f32 %v4548, 1.442695
  %v4661 = vpow.pop %v4660
  %v4662 = vmul.f32 %v4549, 1.442695
  %v4663 = vpow.pop %v4662
  %v4664 = vmul.f32 %v4550, 1.442695
  %v4665 = vpow.pop %v4664
  %v4666 = vmul.f32 %v4551, 1.442695
  %v4667 = vpow.pop %v4666
  %v4668 = vmul.f32 %v4552, 1.442695
  %v4669 = vpow.pop %v4668
  %v4670 = vmul.f32 %v4553, 1.442695
  %v4671 = vpow.pop %v4670
  %v4672 = vmul.f32 %v4554, 1.442695
  %v4673 = vpow.pop %v4672
  %v4674 = vmul.f32 %v4555, 1.442695
  %v4675 = vpow.pop %v4674
  %v4676 = vmul.f32 %v4556, 1.442695
  %v4677 = vpow.pop %v4676
  %v4678 = vmul.f32 %v4557, 1.442695
  %v4679 = vpow.pop %v4678
  %v4680 = vmul.f32 %v4558, 1.442695
  %v4681 = vpow.pop %v4680
  %v4682 = vmul.f32 %v4559, 1.442695
  %v4683 = vpow.pop %v4682
  %v4684 = vmul.f32 %v4560, 1.442695
  %v4685 = vpow.pop %v4684
  %v4686 = vmul.f32 %v4561, 1.442695
  %v4687 = vpow.pop %v4686
  %v4688 = vmul.f32 %v4562, 1.442695
  %v4689 = vpow.pop %v4688
  %v4690 = vmul.f32 %v4563, 1.442695
  %v4691 = vpow.pop %v4690
  %v4692 = vadd.f32 %v4565, 1.0
  %v4693 = vadd.f32 %v4567, 1.0
  %v4694 = vadd.f32 %v4569, 1.0
  %v4695 = vadd.f32 %v4571, 1.0
  %v4696 = vadd.f32 %v4573, 1.0
  %v4697 = vadd.f32 %v4575, 1.0
  %v4698 = vadd.f32 %v4577, 1.0
  %v4699 = vadd.f32 %v4579, 1.0
  %v4700 = vadd.f32 %v4581, 1.0
  %v4701 = vadd.f32 %v4583, 1.0
  %v4702 = vadd.f32 %v4585, 1.0
  %v4703 = vadd.f32 %v4587, 1.0
  %v4704 = vadd.f32 %v4589, 1.0
  %v4705 = vadd.f32 %v4591, 1.0
  %v4706 = vadd.f32 %v4593, 1.0
  %v4707 = vadd.f32 %v4595, 1.0
  %v4708 = vadd.f32 %v4597, 1.0
  %v4709 = vadd.f32 %v4599, 1.0
  %v4710 = vadd.f32 %v4601, 1.0
  %v4711 = vadd.f32 %v4603, 1.0
  %v4712 = vadd.f32 %v4605, 1.0
  %v4713 = vadd.f32 %v4607, 1.0
  %v4714 = vadd.f32 %v4609, 1.0
  %v4715 = vadd.f32 %v4611, 1.0
  %v4716 = vadd.f32 %v4613, 1.0
  %v4717 = vadd.f32 %v4615, 1.0
  %v4718 = vadd.f32 %v4617, 1.0
  %v4719 = vadd.f32 %v4619, 1.0
  %v4720 = vadd.f32 %v4621, 1.0
  %v4721 = vadd.f32 %v4623, 1.0
  %v4722 = vadd.f32 %v4625, 1.0
  %v4723 = vadd.f32 %v4627, 1.0
  %v4724 = vadd.f32 %v4629, 1.0
  %v4725 = vadd.f32 %v4631, 1.0
  %v4726 = vadd.f32 %v4633, 1.0
  %v4727 = vadd.f32 %v4635, 1.0
  %v4728 = vadd.f32 %v4637, 1.0
  %v4729 = vadd.f32 %v4639, 1.0
  %v4730 = vadd.f32 %v4641, 1.0
  %v4731 = vadd.f32 %v4643, 1.0
  %v4732 = vadd.f32 %v4645, 1.0
  %v4733 = vadd.f32 %v4647, 1.0
  %v4734 = vadd.f32 %v4649, 1.0
  %v4735 = vadd.f32 %v4651, 1.0
  %v4736 = vadd.f32 %v4653, 1.0
  %v4737 = vadd.f32 %v4655, 1.0
  %v4738 = vadd.f32 %v4657, 1.0
  %v4739 = vadd.f32 %v4659, 1.0
  %v4740 = vadd.f32 %v4661, 1.0
  %v4741 = vadd.f32 %v4663, 1.0
  %v4742 = vadd.f32 %v4665, 1.0
  %v4743 = vadd.f32 %v4667, 1.0
  %v4744 = vadd.f32 %v4669, 1.0
  %v4745 = vadd.f32 %v4671, 1.0
  %v4746 = vadd.f32 %v4673, 1.0
  %v4747 = vadd.f32 %v4675, 1.0
  %v4748 = vadd.f32 %v4677, 1.0
  %v4749 = vadd.f32 %v4679, 1.0
  %v4750 = vadd.f32 %v4681, 1.0
  %v4751 = vadd.f32 %v4683, 1.0
  %v4752 = vadd.f32 %v4685, 1.0
  %v4753 = vadd.f32 %v4687, 1.0
  %v4754 = vadd.f32 %v4689, 1.0
  %v4755 = vadd.f32 %v4691, 1.0
  %v4756 = vrcp.pop %v4692
  %v4757 = vmul.f32 1.0, %v4756
  %v4758 = vrcp.pop %v4693
  %v4759 = vmul.f32 1.0, %v4758
  %v4760 = vrcp.pop %v4694
  %v4761 = vmul.f32 1.0, %v4760
  %v4762 = vrcp.pop %v4695
  %v4763 = vmul.f32 1.0, %v4762
  %v4764 = vrcp.pop %v4696
  %v4765 = vmul.f32 1.0, %v4764
  %v4766 = vrcp.pop %v4697
  %v4767 = vmul.f32 1.0, %v4766
  %v4768 = vrcp.pop %v4698
  %v4769 = vmul.f32 1.0, %v4768
  %v4770 = vrcp.pop %v4699
  %v4771 = vmul.f32 1.0, %v4770
  %v4772 = vrcp.pop %v4700
  %v4773 = vmul.f32 1.0, %v4772
  %v4774 = vrcp.pop %v4701
  %v4775 = vmul.f32 1.0, %v4774
  %v4776 = vrcp.pop %v4702
  %v4777 = vmul.f32 1.0, %v4776
  %v4778 = vrcp.pop %v4703
  %v4779 = vmul.f32 1.0, %v4778
  %v4780 = vrcp.pop %v4704
  %v4781 = vmul.f32 1.0, %v4780
  %v4782 = vrcp.pop %v4705
  %v4783 = vmul.f32 1.0, %v4782
  %v4784 = vrcp.pop %v4706
  %v4785 = vmul.f32 1.0, %v4784
  %v4786 = vrcp.pop %v4707
  %v4787 = vmul.f32 1.0, %v4786
  %v4788 = vrcp.pop %v4708
  %v4789 = vmul.f32 1.0, %v4788
  %v4790 = vrcp.pop %v4709
  %v4791 = vmul.f32 1.0, %v4790
  %v4792 = vrcp.pop %v4710
  %v4793 = vmul.f32 1.0, %v4792
  %v4794 = vrcp.pop %v4711
  %v4795 = vmul.f32 1.0, %v4794
  %v4796 = vrcp.pop %v4712
  %v4797 = vmul.f32 1.0, %v4796
  %v4798 = vrcp.pop %v4713
  %v4799 = vmul.f32 1.0, %v4798
  %v4800 = vrcp.pop %v4714
  %v4801 = vmul.f32 1.0, %v4800
  %v4802 = vrcp.pop %v4715
  %v4803 = vmul.f32 1.0, %v4802
  %v4804 = vrcp.pop %v4716
  %v4805 = vmul.f32 1.0, %v4804
  %v4806 = vrcp.pop %v4717
  %v4807 = vmul.f32 1.0, %v4806
  %v4808 = vrcp.pop %v4718
  %v4809 = vmul.f32 1.0, %v4808
  %v4810 = vrcp.pop %v4719
  %v4811 = vmul.f32 1.0, %v4810
  %v4812 = vrcp.pop %v4720
  %v4813 = vmul.f32 1.0, %v4812
  %v4814 = vrcp.pop %v4721
  %v4815 = vmul.f32 1.0, %v4814
  %v4816 = vrcp.pop %v4722
  %v4817 = vmul.f32 1.0, %v4816
  %v4818 = vrcp.pop %v4723
  %v4819 = vmul.f32 1.0, %v4818
  %v4820 = vrcp.pop %v4724
  %v4821 = vmul.f32 1.0, %v4820
  %v4822 = vrcp.pop %v4725
  %v4823 = vmul.f32 1.0, %v4822
  %v4824 = vrcp.pop %v4726
  %v4825 = vmul.f32 1.0, %v4824
  %v4826 = vrcp.pop %v4727
  %v4827 = vmul.f32 1.0, %v4826
  %v4828 = vrcp.pop %v4728
  %v4829 = vmul.f32 1.0, %v4828
  %v4830 = vrcp.pop %v4729
  %v4831 = vmul.f32 1.0, %v4830
  %v4832 = vrcp.pop %v4730
  %v4833 = vmul.f32 1.0, %v4832
  %v4834 = vrcp.pop %v4731
  %v4835 = vmul.f32 1.0, %v4834
  %v4836 = vrcp.pop %v4732
  %v4837 = vmul.f32 1.0, %v4836
  %v4838 = vrcp.pop %v4733
  %v4839 = vmul.f32 1.0, %v4838
  %v4840 = vrcp.pop %v4734
  %v4841 = vmul.f32 1.0, %v4840
  %v4842 = vrcp.pop %v4735
  %v4843 = vmul.f32 1.0, %v4842
  %v4844 = vrcp.pop %v4736
  %v4845 = vmul.f32 1.0, %v4844
  %v4846 = vrcp.pop %v4737
  %v4847 = vmul.f32 1.0, %v4846
  %v4848 = vrcp.pop %v4738
  %v4849 = vmul.f32 1.0, %v4848
  %v4850 = vrcp.pop %v4739
  %v4851 = vmul.f32 1.0, %v4850
  %v4852 = vrcp.pop %v4740
  %v4853 = vmul.f32 1.0, %v4852
  %v4854 = vrcp.pop %v4741
  %v4855 = vmul.f32 1.0, %v4854
  %v4856 = vrcp.pop %v4742
  %v4857 = vmul.f32 1.0, %v4856
  %v4858 = vrcp.pop %v4743
  %v4859 = vmul.f32 1.0, %v4858
  %v4860 = vrcp.pop %v4744
  %v4861 = vmul.f32 1.0, %v4860
  %v4862 = vrcp.pop %v4745
  %v4863 = vmul.f32 1.0, %v4862
  %v4864 = vrcp.pop %v4746
  %v4865 = vmul.f32 1.0, %v4864
  %v4866 = vrcp.pop %v4747
  %v4867 = vmul.f32 1.0, %v4866
  %v4868 = vrcp.pop %v4748
  %v4869 = vmul.f32 1.0, %v4868
  %v4870 = vrcp.pop %v4749
  %v4871 = vmul.f32 1.0, %v4870
  %v4872 = vrcp.pop %v4750
  %v4873 = vmul.f32 1.0, %v4872
  %v4874 = vrcp.pop %v4751
  %v4875 = vmul.f32 1.0, %v4874
  %v4876 = vrcp.pop %v4752
  %v4877 = vmul.f32 1.0, %v4876
  %v4878 = vrcp.pop %v4753
  %v4879 = vmul.f32 1.0, %v4878
  %v4880 = vrcp.pop %v4754
  %v4881 = vmul.f32 1.0, %v4880
  %v4882 = vrcp.pop %v4755
  %v4883 = vmul.f32 1.0, %v4882
  %v4884 = vtanh.pop %v4052
  %v4885 = vtanh.pop %v4053
  %v4886 = vtanh.pop %v4054
  %v4887 = vtanh.pop %v4055
  %v4888 = vtanh.pop %v4056
  %v4889 = vtanh.pop %v4057
  %v4890 = vtanh.pop %v4058
  %v4891 = vtanh.pop %v4059
  %v4892 = vtanh.pop %v4060
  %v4893 = vtanh.pop %v4061
  %v4894 = vtanh.pop %v4062
  %v4895 = vtanh.pop %v4063
  %v4896 = vtanh.pop %v4064
  %v4897 = vtanh.pop %v4065
  %v4898 = vtanh.pop %v4066
  %v4899 = vtanh.pop %v4067
  %v4900 = vtanh.pop %v4068
  %v4901 = vtanh.pop %v4069
  %v4902 = vtanh.pop %v4070
  %v4903 = vtanh.pop %v4071
  %v4904 = vtanh.pop %v4072
  %v4905 = vtanh.pop %v4073
  %v4906 = vtanh.pop %v4074
  %v4907 = vtanh.pop %v4075
  %v4908 = vtanh.pop %v4076
  %v4909 = vtanh.pop %v4077
  %v4910 = vtanh.pop %v4078
  %v4911 = vtanh.pop %v4079
  %v4912 = vtanh.pop %v4080
  %v4913 = vtanh.pop %v4081
  %v4914 = vtanh.pop %v4082
  %v4915 = vtanh.pop %v4083
  %v4916 = vtanh.pop %v4084
  %v4917 = vtanh.pop %v4085
  %v4918 = vtanh.pop %v4086
  %v4919 = vtanh.pop %v4087
  %v4920 = vtanh.pop %v4088
  %v4921 = vtanh.pop %v4089
  %v4922 = vtanh.pop %v4090
  %v4923 = vtanh.pop %v4091
  %v4924 = vtanh.pop %v4092
  %v4925 = vtanh.pop %v4093
  %v4926 = vtanh.pop %v4094
  %v4927 = vtanh.pop %v4095
  %v4928 = vtanh.pop %v4096
  %v4929 = vtanh.pop %v4097
  %v4930 = vtanh.pop %v4098
  %v4931 = vtanh.pop %v4099
  %v4932 = vtanh.pop %v4100
  %v4933 = vtanh.pop %v4101
  %v4934 = vtanh.pop %v4102
  %v4935 = vtanh.pop %v4103
  %v4936 = vtanh.pop %v4104
  %v4937 = vtanh.pop %v4105
  %v4938 = vtanh.pop %v4106
  %v4939 = vtanh.pop %v4107
  %v4940 = vtanh.pop %v4108
  %v4941 = vtanh.pop %v4109
  %v4942 = vtanh.pop %v4110
  %v4943 = vtanh.pop %v4111
  %v4944 = vtanh.pop %v4112
  %v4945 = vtanh.pop %v4113
  %v4946 = vtanh.pop %v4114
  %v4947 = vtanh.pop %v4115
  %5012 = vrot.lane.b32.xlu0 %v4884, 64
  %v5013 = vpop.permute.xlu0 %5012
  %5014 = vrot.lane.b32.xlu0 %v4885, 64
  %v5015 = vpop.permute.xlu0 %5014
  %5016 = vrot.lane.b32.xlu0 %v4886, 64
  %v5017 = vpop.permute.xlu0 %5016
  %5018 = vrot.lane.b32.xlu0 %v4887, 64
  %v5019 = vpop.permute.xlu0 %5018
  %5020 = vrot.lane.b32.xlu0 %v4888, 64
  %v5021 = vpop.permute.xlu0 %5020
  %5022 = vrot.lane.b32.xlu0 %v4889, 64
  %v5023 = vpop.permute.xlu0 %5022
  %5024 = vrot.lane.b32.xlu0 %v4890, 64
  %v5025 = vpop.permute.xlu0 %5024
  %5026 = vrot.lane.b32.xlu0 %v4891, 64
  %v5027 = vpop.permute.xlu0 %5026
  %5028 = vrot.lane.b32.xlu0 %v4892, 64
  %v5029 = vpop.permute.xlu0 %5028
  %5030 = vrot.lane.b32.xlu0 %v4893, 64
  %v5031 = vpop.permute.xlu0 %5030
  %5032 = vrot.lane.b32.xlu0 %v4894, 64
  %v5033 = vpop.permute.xlu0 %5032
  %5034 = vrot.lane.b32.xlu0 %v4895, 64
  %v5035 = vpop.permute.xlu0 %5034
  %5036 = vrot.lane.b32.xlu0 %v4896, 64
  %v5037 = vpop.permute.xlu0 %5036
  %5038 = vrot.lane.b32.xlu0 %v4897, 64
  %v5039 = vpop.permute.xlu0 %5038
  %5040 = vrot.lane.b32.xlu0 %v4898, 64
  %v5041 = vpop.permute.xlu0 %5040
  %5042 = vrot.lane.b32.xlu0 %v4899, 64
  %v5043 = vpop.permute.xlu0 %5042
  %5044 = vrot.lane.b32.xlu0 %v4900, 64
  %v5045 = vpop.permute.xlu0 %5044
  %5046 = vrot.lane.b32.xlu0 %v4901, 64
  %v5047 = vpop.permute.xlu0 %5046
  %5048 = vrot.lane.b32.xlu0 %v4902, 64
  %v5049 = vpop.permute.xlu0 %5048
  %5050 = vrot.lane.b32.xlu0 %v4903, 64
  %v5051 = vpop.permute.xlu0 %5050
  %5052 = vrot.lane.b32.xlu0 %v4904, 64
  %v5053 = vpop.permute.xlu0 %5052
  %5054 = vrot.lane.b32.xlu0 %v4905, 64
  %v5055 = vpop.permute.xlu0 %5054
  %5056 = vrot.lane.b32.xlu0 %v4906, 64
  %v5057 = vpop.permute.xlu0 %5056
  %5058 = vrot.lane.b32.xlu0 %v4907, 64
  %v5059 = vpop.permute.xlu0 %5058
  %5060 = vrot.lane.b32.xlu0 %v4908, 64
  %v5061 = vpop.permute.xlu0 %5060
  %5062 = vrot.lane.b32.xlu0 %v4909, 64
  %v5063 = vpop.permute.xlu0 %5062
  %5064 = vrot.lane.b32.xlu0 %v4910, 64
  %v5065 = vpop.permute.xlu0 %5064
  %5066 = vrot.lane.b32.xlu0 %v4911, 64
  %v5067 = vpop.permute.xlu0 %5066
  %5068 = vrot.lane.b32.xlu0 %v4912, 64
  %v5069 = vpop.permute.xlu0 %5068
  %5070 = vrot.lane.b32.xlu0 %v4913, 64
  %v5071 = vpop.permute.xlu0 %5070
  %5072 = vrot.lane.b32.xlu0 %v4914, 64
  %v5073 = vpop.permute.xlu0 %5072
  %5074 = vrot.lane.b32.xlu0 %v4915, 64
  %v5075 = vpop.permute.xlu0 %5074
  %5076 = vrot.lane.b32.xlu0 %v4916, 64
  %v5077 = vpop.permute.xlu0 %5076
  %5078 = vrot.lane.b32.xlu0 %v4917, 64
  %v5079 = vpop.permute.xlu0 %5078
  %5080 = vrot.lane.b32.xlu0 %v4918, 64
  %v5081 = vpop.permute.xlu0 %5080
  %5082 = vrot.lane.b32.xlu0 %v4919, 64
  %v5083 = vpop.permute.xlu0 %5082
  %5084 = vrot.lane.b32.xlu0 %v4920, 64
  %v5085 = vpop.permute.xlu0 %5084
  %5086 = vrot.lane.b32.xlu0 %v4921, 64
  %v5087 = vpop.permute.xlu0 %5086
  %5088 = vrot.lane.b32.xlu0 %v4922, 64
  %v5089 = vpop.permute.xlu0 %5088
  %5090 = vrot.lane.b32.xlu0 %v4923, 64
  %v5091 = vpop.permute.xlu0 %5090
  %5092 = vrot.lane.b32.xlu0 %v4924, 64
  %v5093 = vpop.permute.xlu0 %5092
  %5094 = vrot.lane.b32.xlu0 %v4925, 64
  %v5095 = vpop.permute.xlu0 %5094
  %5096 = vrot.lane.b32.xlu0 %v4926, 64
  %v5097 = vpop.permute.xlu0 %5096
  %5098 = vrot.lane.b32.xlu0 %v4927, 64
  %v5099 = vpop.permute.xlu0 %5098
  %5100 = vrot.lane.b32.xlu0 %v4928, 64
  %v5101 = vpop.permute.xlu0 %5100
  %5102 = vrot.lane.b32.xlu0 %v4929, 64
  %v5103 = vpop.permute.xlu0 %5102
  %5104 = vrot.lane.b32.xlu0 %v4930, 64
  %v5105 = vpop.permute.xlu0 %5104
  %5106 = vrot.lane.b32.xlu0 %v4931, 64
  %v5107 = vpop.permute.xlu0 %5106
  %5108 = vrot.lane.b32.xlu0 %v4932, 64
  %v5109 = vpop.permute.xlu0 %5108
  %5110 = vrot.lane.b32.xlu0 %v4933, 64
  %v5111 = vpop.permute.xlu0 %5110
  %5112 = vrot.lane.b32.xlu0 %v4934, 64
  %v5113 = vpop.permute.xlu0 %5112
  %5114 = vrot.lane.b32.xlu0 %v4935, 64
  %v5115 = vpop.permute.xlu0 %5114
  %5116 = vrot.lane.b32.xlu0 %v4936, 64
  %v5117 = vpop.permute.xlu0 %5116
  %5118 = vrot.lane.b32.xlu0 %v4937, 64
  %v5119 = vpop.permute.xlu0 %5118
  %5120 = vrot.lane.b32.xlu0 %v4938, 64
  %v5121 = vpop.permute.xlu0 %5120
  %5122 = vrot.lane.b32.xlu0 %v4939, 64
  %v5123 = vpop.permute.xlu0 %5122
  %5124 = vrot.lane.b32.xlu0 %v4940, 64
  %v5125 = vpop.permute.xlu0 %5124
  %5126 = vrot.lane.b32.xlu0 %v4941, 64
  %v5127 = vpop.permute.xlu0 %5126
  %5128 = vrot.lane.b32.xlu0 %v4942, 64
  %v5129 = vpop.permute.xlu0 %5128
  %5130 = vrot.lane.b32.xlu0 %v4943, 64
  %v5131 = vpop.permute.xlu0 %5130
  %5132 = vrot.lane.b32.xlu0 %v4944, 64
  %v5133 = vpop.permute.xlu0 %5132
  %5134 = vrot.lane.b32.xlu0 %v4945, 64
  %v5135 = vpop.permute.xlu0 %5134
  %5136 = vrot.lane.b32.xlu0 %v4946, 64
  %v5137 = vpop.permute.xlu0 %5136
  %5138 = vrot.lane.b32.xlu0 %v4947, 64
  %v5139 = vpop.permute.xlu0 %5138
  %v5204 = vmul.f32 %v4757, %v5013
  %v5205 = vmul.f32 %v4759, %v5015
  %v5206 = vmul.f32 %v4761, %v5017
  %v5207 = vmul.f32 %v4763, %v5019
  %v5208 = vmul.f32 %v4765, %v5021
  %v5209 = vmul.f32 %v4767, %v5023
  %v5210 = vmul.f32 %v4769, %v5025
  %v5211 = vmul.f32 %v4771, %v5027
  %v5212 = vmul.f32 %v4773, %v5029
  %v5213 = vmul.f32 %v4775, %v5031
  %v5214 = vmul.f32 %v4777, %v5033
  %v5215 = vmul.f32 %v4779, %v5035
  %v5216 = vmul.f32 %v4781, %v5037
  %v5217 = vmul.f32 %v4783, %v5039
  %v5218 = vmul.f32 %v4785, %v5041
  %v5219 = vmul.f32 %v4787, %v5043
  %v5220 = vmul.f32 %v4789, %v5045
  %v5221 = vmul.f32 %v4791, %v5047
  %v5222 = vmul.f32 %v4793, %v5049
  %v5223 = vmul.f32 %v4795, %v5051
  %v5224 = vmul.f32 %v4797, %v5053
  %v5225 = vmul.f32 %v4799, %v5055
  %v5226 = vmul.f32 %v4801, %v5057
  %v5227 = vmul.f32 %v4803, %v5059
  %v5228 = vmul.f32 %v4805, %v5061
  %v5229 = vmul.f32 %v4807, %v5063
  %v5230 = vmul.f32 %v4809, %v5065
  %v5231 = vmul.f32 %v4811, %v5067
  %v5232 = vmul.f32 %v4813, %v5069
  %v5233 = vmul.f32 %v4815, %v5071
  %v5234 = vmul.f32 %v4817, %v5073
  %v5235 = vmul.f32 %v4819, %v5075
  %v5236 = vmul.f32 %v4821, %v5077
  %v5237 = vmul.f32 %v4823, %v5079
  %v5238 = vmul.f32 %v4825, %v5081
  %v5239 = vmul.f32 %v4827, %v5083
  %v5240 = vmul.f32 %v4829, %v5085
  %v5241 = vmul.f32 %v4831, %v5087
  %v5242 = vmul.f32 %v4833, %v5089
  %v5243 = vmul.f32 %v4835, %v5091
  %v5244 = vmul.f32 %v4837, %v5093
  %v5245 = vmul.f32 %v4839, %v5095
  %v5246 = vmul.f32 %v4841, %v5097
  %v5247 = vmul.f32 %v4843, %v5099
  %v5248 = vmul.f32 %v4845, %v5101
  %v5249 = vmul.f32 %v4847, %v5103
  %v5250 = vmul.f32 %v4849, %v5105
  %v5251 = vmul.f32 %v4851, %v5107
  %v5252 = vmul.f32 %v4853, %v5109
  %v5253 = vmul.f32 %v4855, %v5111
  %v5254 = vmul.f32 %v4857, %v5113
  %v5255 = vmul.f32 %v4859, %v5115
  %v5256 = vmul.f32 %v4861, %v5117
  %v5257 = vmul.f32 %v4863, %v5119
  %v5258 = vmul.f32 %v4865, %v5121
  %v5259 = vmul.f32 %v4867, %v5123
  %v5260 = vmul.f32 %v4869, %v5125
  %v5261 = vmul.f32 %v4871, %v5127
  %v5262 = vmul.f32 %v4873, %v5129
  %v5263 = vmul.f32 %v4875, %v5131
  %v5264 = vmul.f32 %v4877, %v5133
  %v5265 = vmul.f32 %v4879, %v5135
  %v5266 = vmul.f32 %v4881, %v5137
  %v5267 = vmul.f32 %v4883, %v5139
  %5332 = vrot.lane.b32.xlu0 %v5204, 32
  %v5333 = vpop.permute.xlu0 %5332
  %5334 = vrot.lane.b32.xlu0 %v5205, 32
  %v5335 = vpop.permute.xlu0 %5334
  %5336 = vrot.lane.b32.xlu0 %v5206, 32
  %v5337 = vpop.permute.xlu0 %5336
  %5338 = vrot.lane.b32.xlu0 %v5207, 32
  %v5339 = vpop.permute.xlu0 %5338
  %5340 = vrot.lane.b32.xlu0 %v5208, 32
  %v5341 = vpop.permute.xlu0 %5340
  %5342 = vrot.lane.b32.xlu0 %v5209, 32
  %v5343 = vpop.permute.xlu0 %5342
  %5344 = vrot.lane.b32.xlu0 %v5210, 32
  %v5345 = vpop.permute.xlu0 %5344
  %5346 = vrot.lane.b32.xlu0 %v5211, 32
  %v5347 = vpop.permute.xlu0 %5346
  %5348 = vrot.lane.b32.xlu0 %v5212, 32
  %v5349 = vpop.permute.xlu0 %5348
  %5350 = vrot.lane.b32.xlu0 %v5213, 32
  %v5351 = vpop.permute.xlu0 %5350
  %5352 = vrot.lane.b32.xlu0 %v5214, 32
  %v5353 = vpop.permute.xlu0 %5352
  %5354 = vrot.lane.b32.xlu0 %v5215, 32
  %v5355 = vpop.permute.xlu0 %5354
  %5356 = vrot.lane.b32.xlu0 %v5216, 32
  %v5357 = vpop.permute.xlu0 %5356
  %5358 = vrot.lane.b32.xlu0 %v5217, 32
  %v5359 = vpop.permute.xlu0 %5358
  %5360 = vrot.lane.b32.xlu0 %v5218, 32
  %v5361 = vpop.permute.xlu0 %5360
  %5362 = vrot.lane.b32.xlu0 %v5219, 32
  %v5363 = vpop.permute.xlu0 %5362
  %5364 = vrot.lane.b32.xlu0 %v5220, 32
  %v5365 = vpop.permute.xlu0 %5364
  %5366 = vrot.lane.b32.xlu0 %v5221, 32
  %v5367 = vpop.permute.xlu0 %5366
  %5368 = vrot.lane.b32.xlu0 %v5222, 32
  %v5369 = vpop.permute.xlu0 %5368
  %5370 = vrot.lane.b32.xlu0 %v5223, 32
  %v5371 = vpop.permute.xlu0 %5370
  %5372 = vrot.lane.b32.xlu0 %v5224, 32
  %v5373 = vpop.permute.xlu0 %5372
  %5374 = vrot.lane.b32.xlu0 %v5225, 32
  %v5375 = vpop.permute.xlu0 %5374
  %5376 = vrot.lane.b32.xlu0 %v5226, 32
  %v5377 = vpop.permute.xlu0 %5376
  %5378 = vrot.lane.b32.xlu0 %v5227, 32
  %v5379 = vpop.permute.xlu0 %5378
  %5380 = vrot.lane.b32.xlu0 %v5228, 32
  %v5381 = vpop.permute.xlu0 %5380
  %5382 = vrot.lane.b32.xlu0 %v5229, 32
  %v5383 = vpop.permute.xlu0 %5382
  %5384 = vrot.lane.b32.xlu0 %v5230, 32
  %v5385 = vpop.permute.xlu0 %5384
  %5386 = vrot.lane.b32.xlu0 %v5231, 32
  %v5387 = vpop.permute.xlu0 %5386
  %5388 = vrot.lane.b32.xlu0 %v5232, 32
  %v5389 = vpop.permute.xlu0 %5388
  %5390 = vrot.lane.b32.xlu0 %v5233, 32
  %v5391 = vpop.permute.xlu0 %5390
  %5392 = vrot.lane.b32.xlu0 %v5234, 32
  %v5393 = vpop.permute.xlu0 %5392
  %5394 = vrot.lane.b32.xlu0 %v5235, 32
  %v5395 = vpop.permute.xlu0 %5394
  %5396 = vrot.lane.b32.xlu0 %v5236, 32
  %v5397 = vpop.permute.xlu0 %5396
  %5398 = vrot.lane.b32.xlu0 %v5237, 32
  %v5399 = vpop.permute.xlu0 %5398
  %5400 = vrot.lane.b32.xlu0 %v5238, 32
  %v5401 = vpop.permute.xlu0 %5400
  %5402 = vrot.lane.b32.xlu0 %v5239, 32
  %v5403 = vpop.permute.xlu0 %5402
  %5404 = vrot.lane.b32.xlu0 %v5240, 32
  %v5405 = vpop.permute.xlu0 %5404
  %5406 = vrot.lane.b32.xlu0 %v5241, 32
  %v5407 = vpop.permute.xlu0 %5406
  %5408 = vrot.lane.b32.xlu0 %v5242, 32
  %v5409 = vpop.permute.xlu0 %5408
  %5410 = vrot.lane.b32.xlu0 %v5243, 32
  %v5411 = vpop.permute.xlu0 %5410
  %5412 = vrot.lane.b32.xlu0 %v5244, 32
  %v5413 = vpop.permute.xlu0 %5412
  %5414 = vrot.lane.b32.xlu0 %v5245, 32
  %v5415 = vpop.permute.xlu0 %5414
  %5416 = vrot.lane.b32.xlu0 %v5246, 32
  %v5417 = vpop.permute.xlu0 %5416
  %5418 = vrot.lane.b32.xlu0 %v5247, 32
  %v5419 = vpop.permute.xlu0 %5418
  %5420 = vrot.lane.b32.xlu0 %v5248, 32
  %v5421 = vpop.permute.xlu0 %5420
  %5422 = vrot.lane.b32.xlu0 %v5249, 32
  %v5423 = vpop.permute.xlu0 %5422
  %5424 = vrot.lane.b32.xlu0 %v5250, 32
  %v5425 = vpop.permute.xlu0 %5424
  %5426 = vrot.lane.b32.xlu0 %v5251, 32
  %v5427 = vpop.permute.xlu0 %5426
  %5428 = vrot.lane.b32.xlu0 %v5252, 32
  %v5429 = vpop.permute.xlu0 %5428
  %5430 = vrot.lane.b32.xlu0 %v5253, 32
  %v5431 = vpop.permute.xlu0 %5430
  %5432 = vrot.lane.b32.xlu0 %v5254, 32
  %v5433 = vpop.permute.xlu0 %5432
  %5434 = vrot.lane.b32.xlu0 %v5255, 32
  %v5435 = vpop.permute.xlu0 %5434
  %5436 = vrot.lane.b32.xlu0 %v5256, 32
  %v5437 = vpop.permute.xlu0 %5436
  %5438 = vrot.lane.b32.xlu0 %v5257, 32
  %v5439 = vpop.permute.xlu0 %5438
  %5440 = vrot.lane.b32.xlu0 %v5258, 32
  %v5441 = vpop.permute.xlu0 %5440
  %5442 = vrot.lane.b32.xlu0 %v5259, 32
  %v5443 = vpop.permute.xlu0 %5442
  %5444 = vrot.lane.b32.xlu0 %v5260, 32
  %v5445 = vpop.permute.xlu0 %5444
  %5446 = vrot.lane.b32.xlu0 %v5261, 32
  %v5447 = vpop.permute.xlu0 %5446
  %5448 = vrot.lane.b32.xlu0 %v5262, 32
  %v5449 = vpop.permute.xlu0 %5448
  %5450 = vrot.lane.b32.xlu0 %v5263, 32
  %v5451 = vpop.permute.xlu0 %5450
  %5452 = vrot.lane.b32.xlu0 %v5264, 32
  %v5453 = vpop.permute.xlu0 %5452
  %5454 = vrot.lane.b32.xlu0 %v5265, 32
  %v5455 = vpop.permute.xlu0 %5454
  %5456 = vrot.lane.b32.xlu0 %v5266, 32
  %v5457 = vpop.permute.xlu0 %5456
  %5458 = vrot.lane.b32.xlu0 %v5267, 32
  %v5459 = vpop.permute.xlu0 %5458
  %vm5524 = vcmask 261120
  %v5525 = vsel %vm5524, %v5333, %v4052
  %v5526 = vsel %vm5524, %v5335, %v4053
  %v5527 = vsel %vm5524, %v5337, %v4054
  %v5528 = vsel %vm5524, %v5339, %v4055
  %v5529 = vsel %vm5524, %v5341, %v4056
  %v5530 = vsel %vm5524, %v5343, %v4057
  %v5531 = vsel %vm5524, %v5345, %v4058
  %v5532 = vsel %vm5524, %v5347, %v4059
  %v5533 = vsel %vm5524, %v5349, %v4060
  %v5534 = vsel %vm5524, %v5351, %v4061
  %v5535 = vsel %vm5524, %v5353, %v4062
  %v5536 = vsel %vm5524, %v5355, %v4063
  %v5537 = vsel %vm5524, %v5357, %v4064
  %v5538 = vsel %vm5524, %v5359, %v4065
  %v5539 = vsel %vm5524, %v5361, %v4066
  %v5540 = vsel %vm5524, %v5363, %v4067
  %v5541 = vsel %vm5524, %v5365, %v4068
  %v5542 = vsel %vm5524, %v5367, %v4069
  %v5543 = vsel %vm5524, %v5369, %v4070
  %v5544 = vsel %vm5524, %v5371, %v4071
  %v5545 = vsel %vm5524, %v5373, %v4072
  %v5546 = vsel %vm5524, %v5375, %v4073
  %v5547 = vsel %vm5524, %v5377, %v4074
  %v5548 = vsel %vm5524, %v5379, %v4075
  %v5549 = vsel %vm5524, %v5381, %v4076
  %v5550 = vsel %vm5524, %v5383, %v4077
  %v5551 = vsel %vm5524, %v5385, %v4078
  %v5552 = vsel %vm5524, %v5387, %v4079
  %v5553 = vsel %vm5524, %v5389, %v4080
  %v5554 = vsel %vm5524, %v5391, %v4081
  %v5555 = vsel %vm5524, %v5393, %v4082
  %v5556 = vsel %vm5524, %v5395, %v4083
  %v5557 = vsel %vm5524, %v5397, %v4084
  %v5558 = vsel %vm5524, %v5399, %v4085
  %v5559 = vsel %vm5524, %v5401, %v4086
  %v5560 = vsel %vm5524, %v5403, %v4087
  %v5561 = vsel %vm5524, %v5405, %v4088
  %v5562 = vsel %vm5524, %v5407, %v4089
  %v5563 = vsel %vm5524, %v5409, %v4090
  %v5564 = vsel %vm5524, %v5411, %v4091
  %v5565 = vsel %vm5524, %v5413, %v4092
  %v5566 = vsel %vm5524, %v5415, %v4093
  %v5567 = vsel %vm5524, %v5417, %v4094
  %v5568 = vsel %vm5524, %v5419, %v4095
  %v5569 = vsel %vm5524, %v5421, %v4096
  %v5570 = vsel %vm5524, %v5423, %v4097
  %v5571 = vsel %vm5524, %v5425, %v4098
  %v5572 = vsel %vm5524, %v5427, %v4099
  %v5573 = vsel %vm5524, %v5429, %v4100
  %v5574 = vsel %vm5524, %v5431, %v4101
  %v5575 = vsel %vm5524, %v5433, %v4102
  %v5576 = vsel %vm5524, %v5435, %v4103
  %v5577 = vsel %vm5524, %v5437, %v4104
  %v5578 = vsel %vm5524, %v5439, %v4105
  %v5579 = vsel %vm5524, %v5441, %v4106
  %v5580 = vsel %vm5524, %v5443, %v4107
  %v5581 = vsel %vm5524, %v5445, %v4108
  %v5582 = vsel %vm5524, %v5447, %v4109
  %v5583 = vsel %vm5524, %v5449, %v4110
  %v5584 = vsel %vm5524, %v5451, %v4111
  %v5585 = vsel %vm5524, %v5453, %v4112
  %v5586 = vsel %vm5524, %v5455, %v4113
  %v5587 = vsel %vm5524, %v5457, %v4114
  %v5588 = vsel %vm5524, %v5459, %v4115
  %vm5589 = vcmask 523264
  %5590 = vst.msk [vmem:[%s4] sm:$0xff] %vm5589, %v5525
  %5591 = vst.msk [vmem:[%s4 + $0x8] sm:$0xff] %vm5589, %v5526
  %5592 = vst.msk [vmem:[%s4 + $0x10] sm:$0xff] %vm5589, %v5527
  %5593 = vst.msk [vmem:[%s4 + $0x18] sm:$0xff] %vm5589, %v5528
  %5594 = vst.msk [vmem:[%s4 + $0x20] sm:$0xff] %vm5589, %v5529
  %5595 = vst.msk [vmem:[%s4 + $0x28] sm:$0xff] %vm5589, %v5530
  %5596 = vst.msk [vmem:[%s4 + $0x30] sm:$0xff] %vm5589, %v5531
  %5597 = vst.msk [vmem:[%s4 + $0x38] sm:$0xff] %vm5589, %v5532
  %5598 = vst.msk [vmem:[%s4 + $0x40] sm:$0xff] %vm5589, %v5533
  %5599 = vst.msk [vmem:[%s4 + $0x48] sm:$0xff] %vm5589, %v5534
  %5600 = vst.msk [vmem:[%s4 + $0x50] sm:$0xff] %vm5589, %v5535
  %5601 = vst.msk [vmem:[%s4 + $0x58] sm:$0xff] %vm5589, %v5536
  %5602 = vst.msk [vmem:[%s4 + $0x60] sm:$0xff] %vm5589, %v5537
  %5603 = vst.msk [vmem:[%s4 + $0x68] sm:$0xff] %vm5589, %v5538
  %5604 = vst.msk [vmem:[%s4 + $0x70] sm:$0xff] %vm5589, %v5539
  %5605 = vst.msk [vmem:[%s4 + $0x78] sm:$0xff] %vm5589, %v5540
  %5606 = vst.msk [vmem:[%s4 + $0x80] sm:$0xff] %vm5589, %v5541
  %5607 = vst.msk [vmem:[%s4 + $0x88] sm:$0xff] %vm5589, %v5542
  %5608 = vst.msk [vmem:[%s4 + $0x90] sm:$0xff] %vm5589, %v5543
  %5609 = vst.msk [vmem:[%s4 + $0x98] sm:$0xff] %vm5589, %v5544
  %5610 = vst.msk [vmem:[%s4 + $0xa0] sm:$0xff] %vm5589, %v5545
  %5611 = vst.msk [vmem:[%s4 + $0xa8] sm:$0xff] %vm5589, %v5546
  %5612 = vst.msk [vmem:[%s4 + $0xb0] sm:$0xff] %vm5589, %v5547
  %5613 = vst.msk [vmem:[%s4 + $0xb8] sm:$0xff] %vm5589, %v5548
  %5614 = vst.msk [vmem:[%s4 + $0xc0] sm:$0xff] %vm5589, %v5549
  %5615 = vst.msk [vmem:[%s4 + $0xc8] sm:$0xff] %vm5589, %v5550
  %5616 = vst.msk [vmem:[%s4 + $0xd0] sm:$0xff] %vm5589, %v5551
  %5617 = vst.msk [vmem:[%s4 + $0xd8] sm:$0xff] %vm5589, %v5552
  %5618 = vst.msk [vmem:[%s4 + $0xe0] sm:$0xff] %vm5589, %v5553
  %5619 = vst.msk [vmem:[%s4 + $0xe8] sm:$0xff] %vm5589, %v5554
  %5620 = vst.msk [vmem:[%s4 + $0xf0] sm:$0xff] %vm5589, %v5555
  %5621 = vst.msk [vmem:[%s4 + $0xf8] sm:$0xff] %vm5589, %v5556
  %5622 = vst.msk [vmem:[%s4 + $0x100] sm:$0xff] %vm5589, %v5557
  %5623 = vst.msk [vmem:[%s4 + $0x108] sm:$0xff] %vm5589, %v5558
  %5624 = vst.msk [vmem:[%s4 + $0x110] sm:$0xff] %vm5589, %v5559
  %5625 = vst.msk [vmem:[%s4 + $0x118] sm:$0xff] %vm5589, %v5560
  %5626 = vst.msk [vmem:[%s4 + $0x120] sm:$0xff] %vm5589, %v5561
  %5627 = vst.msk [vmem:[%s4 + $0x128] sm:$0xff] %vm5589, %v5562
  %5628 = vst.msk [vmem:[%s4 + $0x130] sm:$0xff] %vm5589, %v5563
  %5629 = vst.msk [vmem:[%s4 + $0x138] sm:$0xff] %vm5589, %v5564
  %5630 = vst.msk [vmem:[%s4 + $0x140] sm:$0xff] %vm5589, %v5565
  %5631 = vst.msk [vmem:[%s4 + $0x148] sm:$0xff] %vm5589, %v5566
  %5632 = vst.msk [vmem:[%s4 + $0x150] sm:$0xff] %vm5589, %v5567
  %5633 = vst.msk [vmem:[%s4 + $0x158] sm:$0xff] %vm5589, %v5568
  %5634 = vst.msk [vmem:[%s4 + $0x160] sm:$0xff] %vm5589, %v5569
  %5635 = vst.msk [vmem:[%s4 + $0x168] sm:$0xff] %vm5589, %v5570
  %5636 = vst.msk [vmem:[%s4 + $0x170] sm:$0xff] %vm5589, %v5571
  %5637 = vst.msk [vmem:[%s4 + $0x178] sm:$0xff] %vm5589, %v5572
  %5638 = vst.msk [vmem:[%s4 + $0x180] sm:$0xff] %vm5589, %v5573
  %5639 = vst.msk [vmem:[%s4 + $0x188] sm:$0xff] %vm5589, %v5574
  %5640 = vst.msk [vmem:[%s4 + $0x190] sm:$0xff] %vm5589, %v5575
  %5641 = vst.msk [vmem:[%s4 + $0x198] sm:$0xff] %vm5589, %v5576
  %5642 = vst.msk [vmem:[%s4 + $0x1a0] sm:$0xff] %vm5589, %v5577
  %5643 = vst.msk [vmem:[%s4 + $0x1a8] sm:$0xff] %vm5589, %v5578
  %5644 = vst.msk [vmem:[%s4 + $0x1b0] sm:$0xff] %vm5589, %v5579
  %5645 = vst.msk [vmem:[%s4 + $0x1b8] sm:$0xff] %vm5589, %v5580
  %5646 = vst.msk [vmem:[%s4 + $0x1c0] sm:$0xff] %vm5589, %v5581
  %5647 = vst.msk [vmem:[%s4 + $0x1c8] sm:$0xff] %vm5589, %v5582
  %5648 = vst.msk [vmem:[%s4 + $0x1d0] sm:$0xff] %vm5589, %v5583
  %5649 = vst.msk [vmem:[%s4 + $0x1d8] sm:$0xff] %vm5589, %v5584
  %5650 = vst.msk [vmem:[%s4 + $0x1e0] sm:$0xff] %vm5589, %v5585
  %5651 = vst.msk [vmem:[%s4 + $0x1e8] sm:$0xff] %vm5589, %v5586
  %5652 = vst.msk [vmem:[%s4 + $0x1f0] sm:$0xff] %vm5589, %v5587
  %5653 = vst.msk [vmem:[%s4 + $0x1f8] sm:$0xff] %vm5589, %v5588
  // Predicated region
  $region18: #{convlstm_cell.1} parent=0 // pred_check
    _
  $region19: #{convlstm_cell.1} parent=0 // pred_check_branch
    %5655 = sbr.rel (0) target = $region21
  $region20: #{convlstm_cell.1} parent=0 // pred_region
    _
  $region21: #{convlstm_cell.1} parent=0 // pred_fallthru
    _
  // Predicated region
  $region22: #{convlstm_cell.1} parent=0 // pred_check
    _
  $region23: #{convlstm_cell.1} parent=0 // pred_check_branch
    %5657 = sbr.rel (0) target = $region25
  $region24: #{convlstm_cell.1} parent=0 // pred_region
    _
  $region25: #{convlstm_cell.1} parent=0 // pred_fallthru
    _

</llo_original>
